<compile_context>
chip_gen: v7x
topology: tpu7x:2x2x1
jax: 0.10.0
libtpu: 0.0.40
codegen_flags: <defaults>
</compile_context>

<pallas_src>
import functools
import math

import jax
import jax.numpy as jnp
import numpy as np
from jax.experimental import pallas as pl
from jax.experimental.pallas import tpu as pltpu

HIDDEN_SIZE = 128
INPUT_SIZE = 6
LINEAR1_OUT = 32
NUM_LAYERS = 2
OUTPUT_SIZE = 3
OUT_PAD = 128          # lane-dense padded output width
SUBLANE = 8            # f32 sublane tile


# ---------------------------------------------------------------------------
# Fused Pallas kernel
# ---------------------------------------------------------------------------
def _lstm_cell(gates, c_prev, H):
    """LSTM cell with gate columns packed as (i, f, o, g): one wide sigmoid over
    3H lanes + one tanh over H lanes (2 EUP chains per cell instead of 4)."""
    sig = jax.nn.sigmoid(gates[:, :3 * H])
    i_g = sig[:, 0 * H:1 * H]
    f_g = sig[:, 1 * H:2 * H]
    o_g = sig[:, 2 * H:3 * H]
    g_g = jnp.tanh(gates[:, 3 * H:4 * H])
    c_new = f_g * c_prev + i_g * g_g
    h_new = o_g * jnp.tanh(c_new)
    return h_new, c_new


def _classify_fused_kernel(x_ref, w_in_ref, b_in_ref,
                           w_ih0_ref, b0_ref,
                           w_pack_ref, b1_ref,
                           w_out_ref, b_out_ref,
                           h0_ref, c0_ref,
                           out_ref, hT_ref, cT_ref,
                           gx_ref, *, BP, T, H):
    """Whole Classify.forward in one kernel invocation (no grid).

    x_ref   : (T*BP, 6) f32   time-major rows (row = t*BP + b), batch padded to BP
    w_in    : (6, 32) f32,   b_in : (1, 32) f32
    w_ih0   : (32, 4H) bf16, b0   : (1, 4H) f32   (b_ih0+b_hh0; gate order i,f,o,g)
    w_pack  : (2H, 8H) bf16  = [[W_hh0, W_ih1], [0, W_hh1]]  (gate order i,f,o,g per layer)
    b1      : (1, 4H) f32    (b_ih1+b_hh1)
    w_out   : (H, 128) bf16 (zero-padded cols), b_out: (1, 128) f32
    h0, c0  : (NUM_LAYERS, BP, H) f32 initial state
    out     : (BP, 128) f32;  hT, cT : (NUM_LAYERS, BP, H) f32 (aliased onto h0/c0)
    gx      : (T*BP, 4H) f32 VMEM scratch — hoisted layer-0 input gates (+bias)
    """
    G = 4 * H

    # ---- input Linear(6->32) + relu for all T*BP rows (tiny matmul, f32), then the
    #      hoisted layer-0 input-gate matmul (+bias) staged in tile-aligned scratch ----
    mid = jnp.dot(x_ref[...], w_in_ref[...],
                  preferred_element_type=jnp.float32) + b_in_ref[...]
    mid = jnp.maximum(mid, 0.0)                                          # (T*BP, 32) f32
    gx_ref[...] = jnp.dot(mid.astype(jnp.bfloat16), w_ih0_ref[...],
                          preferred_element_type=jnp.float32) + b0_ref[...]

    # ---- recurrent state, carried in values (f32) -----------------------------------
    h0 = h0_ref[0]
    c0 = c0_ref[0]
    h1 = h0_ref[1]
    c1 = c0_ref[1]
    b1 = b1_ref[...]

    # ---- wavefront over the two stacked LSTM layers ----------------------------------
    # Step s computes layer-0 cell at time s and layer-1 cell at time s-1.  Both depend
    # only on state produced at step s-1, so their gate matmuls fuse into a single
    # (BP,2H)@(2H,8H) bf16 MXU matmul (f32 accumulation) and their gate math co-issues.
    # T is small and static -> fully unrolled.
    for s in range(T + 1):
        hcat = jnp.concatenate([h0, h1], axis=1).astype(jnp.bfloat16)    # (BP, 2H)
        gates = jnp.dot(hcat, w_pack_ref[...],
                        preferred_element_type=jnp.float32)              # (BP, 8H) f32
        if s >= 1:                       # layer-1 cell for time s-1
            h1, c1 = _lstm_cell(gates[:, G:] + b1, c1, H)
        if s < T:                        # layer-0 cell for time s
            h0, c0 = _lstm_cell(gates[:, :G] + gx_ref[s * BP:(s + 1) * BP, :], c0, H)

    hT_ref[0] = h0
    cT_ref[0] = c0
    hT_ref[1] = h1
    cT_ref[1] = c1

    # ---- out_layer(relu(h1_{T-1})): lane-dense (BP, 128) store ------------------------
    y = jnp.dot(jnp.maximum(h1, 0.0).astype(jnp.bfloat16), w_out_ref[...],
                preferred_element_type=jnp.float32) + b_out_ref[...]
    out_ref[...] = y


# ---------------------------------------------------------------------------
# One-time parameter repack (wrapper-side layout plumbing, PyTorch layout in HBM)
# ---------------------------------------------------------------------------
def _reorder_ifog(w):
    """Reorder gate columns (i, f, g, o) -> (i, f, o, g). Works for (*, 4H)."""
    H = HIDDEN_SIZE
    return jnp.concatenate([w[..., 0:2 * H], w[..., 3 * H:4 * H], w[..., 2 * H:3 * H]],
                           axis=-1)


def pack_params(params):
    """Repack PyTorch-layout params into the kernel-facing layout (do this once).

    * gate columns (i,f,g,o) -> (i,f,o,g) so one sigmoid covers 3H lanes per cell
    * fuse the two recurrent matmul weights into one (2H, 8H) block [[W_hh0,W_ih1],[0,W_hh1]]
    * cast matmul operands to bf16 (f32 accumulation happens in the kernel); biases stay f32
    * pad the out-layer weight/bias to 128 lanes for a lane-dense output store
    """
    H = HIDDEN_SIZE
    p0, p1 = params["lstm"]
    w_ih0 = _reorder_ifog(p0["w_ih"])
    w_hh0 = _reorder_ifog(p0["w_hh"])
    b0 = _reorder_ifog(p0["b"])
    w_ih1 = _reorder_ifog(p1["w_ih"])
    w_hh1 = _reorder_ifog(p1["w_hh"])
    b1 = _reorder_ifog(p1["b"])
    w_pack = jnp.concatenate(
        [jnp.concatenate([w_hh0, w_ih1], axis=1),
         jnp.concatenate([jnp.zeros((H, 4 * H), jnp.float32), w_hh1], axis=1)],
        axis=0)                                                           # (2H, 8H)
    w_out = jnp.zeros((H, OUT_PAD), jnp.float32).at[:, :OUTPUT_SIZE].set(params["w_out"])
    b_out = jnp.zeros((1, OUT_PAD), jnp.float32).at[:, :OUTPUT_SIZE].set(params["b_out"])
    bf16 = lambda a: a.astype(jnp.bfloat16)
    return {
        "w_in": params["w_in"], "b_in": params["b_in"],   # tiny first matmul stays f32
        "w_ih0": bf16(w_ih0), "b0": b0,
        "w_pack": bf16(w_pack), "b1": b1,
        "w_out": bf16(w_out), "b_out": b_out,
    }


# ---------------------------------------------------------------------------
# Wrapper
# ---------------------------------------------------------------------------
def classify_forward(packed, x, h_n, c_n):
    # x: (B, T, INPUT_SIZE); h_n, c_n: (NUM_LAYERS, B, HIDDEN_SIZE)
    B, T, D = x.shape
    H = HIDDEN_SIZE
    assert D == INPUT_SIZE
    assert H % 128 == 0, "gate slicing assumes a lane-aligned hidden size"
    assert h_n.shape == (NUM_LAYERS, B, H) and c_n.shape == (NUM_LAYERS, B, H)
    BP = max(SUBLANE, ((B + SUBLANE - 1) // SUBLANE) * SUBLANE)   # batch padded to sublane tile

    # Layout plumbing outside the kernel: time-major rows, batch padded to a full
    # (8,128) tile so every per-step slice inside the serial loop is tile-aligned.
    x_tm = jnp.pad(jnp.transpose(x, (1, 0, 2)), ((0, 0), (0, BP - B), (0, 0)))
    x_tm = x_tm.reshape(T * BP, D)
    h0 = jnp.pad(h_n, ((0, 0), (0, BP - B), (0, 0)))
    c0 = jnp.pad(c_n, ((0, 0), (0, BP - B), (0, 0)))

    kernel = functools.partial(_classify_fused_kernel, BP=BP, T=T, H=H)
    out_p, h_new, c_new = pl.pallas_call(
        kernel,
        out_shape=(
            jax.ShapeDtypeStruct((BP, OUT_PAD), jnp.float32),
            jax.ShapeDtypeStruct((NUM_LAYERS, BP, H), jnp.float32),
            jax.ShapeDtypeStruct((NUM_LAYERS, BP, H), jnp.float32),
        ),
        scratch_shapes=[pltpu.VMEM((T * BP, 4 * H), jnp.float32)],
        # Recurrent state is updated in place (h0 -> h_new, c0 -> c_new).
        input_output_aliases={9: 1, 10: 2},
    )(x_tm,
      packed["w_in"], packed["b_in"],
      packed["w_ih0"], packed["b0"],
      packed["w_pack"], packed["b1"],
      packed["w_out"], packed["b_out"],
      h0, c0)
    return out_p[:B, :OUTPUT_SIZE], h_new[:, :B, :], c_new[:, :B, :]


# ---------------------------------------------------------------------------
# Parameter construction (deterministic, PyTorch-style uniform init, PyTorch layout)
# ---------------------------------------------------------------------------
def init_params(key):
    def uniform(key, shape, fan):
        k = 1.0 / math.sqrt(fan)
        return jax.random.uniform(key, shape, jnp.float32, -k, k)

    keys = jax.random.split(key, 4 + 4 * NUM_LAYERS)
    params = {}
    # input_layer: Linear(6 -> 32). Stored as (in, out).
    params["w_in"] = uniform(keys[0], (INPUT_SIZE, LINEAR1_OUT), INPUT_SIZE)
    params["b_in"] = uniform(keys[1], (1, LINEAR1_OUT), INPUT_SIZE)
    # out_layer: Linear(128 -> 3)
    params["w_out"] = uniform(keys[2], (HIDDEN_SIZE, OUTPUT_SIZE), HIDDEN_SIZE)
    params["b_out"] = uniform(keys[3], (1, OUTPUT_SIZE), HIDDEN_SIZE)
    # LSTM layers (PyTorch gate order i, f, g, o; weights stored transposed: (in, 4H))
    lstm = []
    for layer in range(NUM_LAYERS):
        d_in = LINEAR1_OUT if layer == 0 else HIDDEN_SIZE
        kbase = 4 + 4 * layer
        w_ih = uniform(keys[kbase + 0], (d_in, 4 * HIDDEN_SIZE), HIDDEN_SIZE)
        w_hh = uniform(keys[kbase + 1], (HIDDEN_SIZE, 4 * HIDDEN_SIZE), HIDDEN_SIZE)
        b_ih = uniform(keys[kbase + 2], (1, 4 * HIDDEN_SIZE), HIDDEN_SIZE)
        b_hh = uniform(keys[kbase + 3], (1, 4 * HIDDEN_SIZE), HIDDEN_SIZE)
        lstm.append({"w_ih": w_ih, "w_hh": w_hh, "b": b_ih + b_hh})
    params["lstm"] = lstm
    return params


# ---------------------------------------------------------------------------
# Pure-JAX reference (PyTorch gate order / separate matmuls).
# matmul_dtype=bf16 mimics the kernel's mixed-precision policy (bf16 operands,
# f32 accumulation) for a tight numerical check of the wavefront/packing logic.
# ---------------------------------------------------------------------------
def _reference_forward(params, x, h_n, c_n, *, matmul_dtype=jnp.float32):
    H = HIDDEN_SIZE
    B, T, _ = x.shape

    def mm(a, b):
        return jnp.dot(a.astype(matmul_dtype), b.astype(matmul_dtype),
                       preferred_element_type=jnp.float32)

    mid = jnp.maximum(
        jnp.dot(x.reshape(B * T, INPUT_SIZE), params["w_in"],
                preferred_element_type=jnp.float32).reshape(B, T, LINEAR1_OUT)
        + params["b_in"], 0.0)
    layer_in = mid
    hs, cs = [], []
    for layer in range(NUM_LAYERS):
        p = params["lstm"][layer]
        h = h_n[layer]
        c = c_n[layer]
        outs = []
        for t in range(T):
            gates = mm(layer_in[:, t, :], p["w_ih"]) + mm(h, p["w_hh"]) + p["b"]
            i_g = jax.nn.sigmoid(gates[:, 0 * H:1 * H])
            f_g = jax.nn.sigmoid(gates[:, 1 * H:2 * H])
            g_g = jnp.tanh(gates[:, 2 * H:3 * H])
            o_g = jax.nn.sigmoid(gates[:, 3 * H:4 * H])
            c = f_g * c + i_g * g_g
            h = o_g * jnp.tanh(c)
            outs.append(h)
        layer_in = jnp.stack(outs, axis=1)
        hs.append(h)
        cs.append(c)
    out = mm(jnp.maximum(layer_in[:, -1, :], 0.0), params["w_out"]) + params["b_out"]
    return out, jnp.stack(hs, axis=0), jnp.stack(cs, axis=0)


if __name__ == "__main__":
    key = jax.random.PRNGKey(0)
    k_param, k_x, k_h, k_c = jax.random.split(key, 4)

    B, T = 2, 8
    params = init_params(k_param)
    packed = pack_params(params)          # one-time kernel-facing repack
    x = jax.random.normal(k_x, (B, T, INPUT_SIZE), jnp.float32)
    h_n = jax.random.normal(k_h, (NUM_LAYERS, B, HIDDEN_SIZE), jnp.float32)
    c_n = jax.random.normal(k_c, (NUM_LAYERS, B, HIDDEN_SIZE), jnp.float32)

    fwd = jax.jit(classify_forward)
    out, h_new, c_new = fwd(packed, x, h_n, c_n)
    jax.block_until_ready((out, h_new, c_new))

    assert out.shape == (B, OUTPUT_SIZE)
    assert h_new.shape == (NUM_LAYERS, B, HIDDEN_SIZE)
    assert c_new.shape == (NUM_LAYERS, B, HIDDEN_SIZE)

    # Tight check vs a reference using the same precision policy (bf16 matmul
    # operands, f32 accumulation) -> validates the wavefront/packing/gate-reorder logic.
    ref_out, ref_h, ref_c = _reference_forward(params, x, h_n, c_n,
                                               matmul_dtype=jnp.bfloat16)
    np.testing.assert_allclose(np.asarray(out), np.asarray(ref_out), rtol=2e-3, atol=2e-3)
    np.testing.assert_allclose(np.asarray(h_new), np.asarray(ref_h), rtol=2e-3, atol=2e-3)
    np.testing.assert_allclose(np.asarray(c_new), np.asarray(ref_c), rtol=2e-3, atol=2e-3)

    # Drift sanity check vs the pure-f32 (PyTorch-equivalent) math: bf16 matmul
    # operands introduce only small bounded error over T=8 steps.
    ref_out32, ref_h32, ref_c32 = _reference_forward(params, x, h_n, c_n)
    np.testing.assert_allclose(np.asarray(out), np.asarray(ref_out32), rtol=5e-2, atol=5e-2)
    np.testing.assert_allclose(np.asarray(h_new), np.asarray(ref_h32), rtol=5e-2, atol=5e-2)
    np.testing.assert_allclose(np.asarray(c_new), np.asarray(ref_c32), rtol=5e-2, atol=5e-2)

    print("KERNEL_OK")
</pallas_src>

<mosaic_0001>
module attributes {stable_mosaic.version = 11 : i64} {
  func.func @_classify_fused_kernel(%arg0: memref<64x6xf32, #tpu.memory_space<vmem>>, %arg1: memref<6x32xf32, #tpu.memory_space<vmem>>, %arg2: memref<1x32xf32, #tpu.memory_space<vmem>>, %arg3: memref<32x512xbf16, #tpu.memory_space<vmem>>, %arg4: memref<1x512xf32, #tpu.memory_space<vmem>>, %arg5: memref<256x1024xbf16, #tpu.memory_space<vmem>>, %arg6: memref<1x512xf32, #tpu.memory_space<vmem>>, %arg7: memref<128x128xbf16, #tpu.memory_space<vmem>>, %arg8: memref<1x128xf32, #tpu.memory_space<vmem>>, %arg9: memref<2x8x128xf32, #tpu.memory_space<vmem>>, %arg10: memref<2x8x128xf32, #tpu.memory_space<vmem>>, %arg11: memref<8x128xf32, #tpu.memory_space<vmem>>, %arg12: memref<2x8x128xf32, #tpu.memory_space<vmem>>, %arg13: memref<2x8x128xf32, #tpu.memory_space<vmem>>, %arg14: memref<64x512xf32, #tpu.memory_space<vmem>>) attributes {dimension_semantics = [], scalar_prefetch = 0 : i64, scratch_operands = 1 : i64, tpu.core_type = #tpu.core_type<tc>} {
    %c0 = arith.constant 0 : index
    %c0_0 = arith.constant 0 : index
    %0 = vector.load %arg0[%c0, %c0_0] : memref<64x6xf32, #tpu.memory_space<vmem>>, vector<64x6xf32>
    %c0_1 = arith.constant 0 : index
    %c0_2 = arith.constant 0 : index
    %1 = vector.load %arg1[%c0_1, %c0_2] : memref<6x32xf32, #tpu.memory_space<vmem>>, vector<6x32xf32>
    %cst = arith.constant dense<0.000000e+00> : vector<64x32xf32>
    %2 = tpu.matmul %0, %1, %cst {dimension_numbers = #tpu.dot_dimension_numbers<[1], [0], [0], [1], [0, 0, 1, 1], [], []>} : vector<64x6xf32>, vector<6x32xf32>, vector<64x32xf32> -> vector<64x32xf32>
    %c0_3 = arith.constant 0 : index
    %c0_4 = arith.constant 0 : index
    %3 = vector.load %arg2[%c0_3, %c0_4] : memref<1x32xf32, #tpu.memory_space<vmem>>, vector<1x32xf32>
    %4 = vector.broadcast %3 : vector<1x32xf32> to vector<64x32xf32>
    %5 = arith.addf %2, %4 : vector<64x32xf32>
    %cst_5 = arith.constant 0.000000e+00 : f32
    %6 = vector.broadcast %cst_5 : f32 to vector<64x32xf32>
    %7 = arith.maximumf %5, %6 : vector<64x32xf32>
    %8 = arith.truncf %7 : vector<64x32xf32> to vector<64x32xbf16>
    %c0_6 = arith.constant 0 : index
    %c0_7 = arith.constant 0 : index
    %9 = vector.load %arg3[%c0_6, %c0_7] : memref<32x512xbf16, #tpu.memory_space<vmem>>, vector<32x512xbf16>
    %cst_8 = arith.constant dense<0.000000e+00> : vector<64x512xf32>
    %10 = tpu.matmul %8, %9, %cst_8 {dimension_numbers = #tpu.dot_dimension_numbers<[1], [0], [0], [1], [0, 0, 1, 1], [], []>} : vector<64x32xbf16>, vector<32x512xbf16>, vector<64x512xf32> -> vector<64x512xf32>
    %c0_9 = arith.constant 0 : index
    %c0_10 = arith.constant 0 : index
    %11 = vector.load %arg4[%c0_9, %c0_10] : memref<1x512xf32, #tpu.memory_space<vmem>>, vector<1x512xf32>
    %12 = vector.broadcast %11 : vector<1x512xf32> to vector<64x512xf32>
    %13 = arith.addf %10, %12 : vector<64x512xf32>
    %c0_11 = arith.constant 0 : index
    %c0_12 = arith.constant 0 : index
    %14 = vector.load %arg14[%c0_11, %c0_12] : memref<64x512xf32, #tpu.memory_space<vmem>>, vector<64x512xf32>
    tpu.vector_store %arg14[%c0_11, %c0_12], %13 {strides = array<i32>} : memref<64x512xf32, #tpu.memory_space<vmem>>, vector<64x512xf32>,
    %c0_13 = arith.constant 0 : index
    %c0_14 = arith.constant 0 : index
    %c0_15 = arith.constant 0 : index
    %15 = vector.load %arg9[%c0_13, %c0_14, %c0_15] : memref<2x8x128xf32, #tpu.memory_space<vmem>>, vector<1x8x128xf32>
    %16 = vector.shape_cast %15 : vector<1x8x128xf32> to vector<8x128xf32>
    %c0_16 = arith.constant 0 : index
    %c0_17 = arith.constant 0 : index
    %c0_18 = arith.constant 0 : index
    %17 = vector.load %arg10[%c0_16, %c0_17, %c0_18] : memref<2x8x128xf32, #tpu.memory_space<vmem>>, vector<1x8x128xf32>
    %18 = vector.shape_cast %17 : vector<1x8x128xf32> to vector<8x128xf32>
    %c1 = arith.constant 1 : index
    %c0_19 = arith.constant 0 : index
    %c0_20 = arith.constant 0 : index
    %19 = vector.load %arg9[%c1, %c0_19, %c0_20] : memref<2x8x128xf32, #tpu.memory_space<vmem>>, vector<1x8x128xf32>
    %20 = vector.shape_cast %19 : vector<1x8x128xf32> to vector<8x128xf32>
    %c1_21 = arith.constant 1 : index
    %c0_22 = arith.constant 0 : index
    %c0_23 = arith.constant 0 : index
    %21 = vector.load %arg10[%c1_21, %c0_22, %c0_23] : memref<2x8x128xf32, #tpu.memory_space<vmem>>, vector<1x8x128xf32>
    %22 = vector.shape_cast %21 : vector<1x8x128xf32> to vector<8x128xf32>
    %c0_24 = arith.constant 0 : index
    %c0_25 = arith.constant 0 : index
    %23 = vector.load %arg6[%c0_24, %c0_25] : memref<1x512xf32, #tpu.memory_space<vmem>>, vector<1x512xf32>
    %24 = tpu.concatenate %16, %20 in 1 : vector<8x128xf32>, vector<8x128xf32> -> vector<8x256xf32>
    %25 = arith.truncf %24 : vector<8x256xf32> to vector<8x256xbf16>
    %c0_26 = arith.constant 0 : index
    %c0_27 = arith.constant 0 : index
    %26 = vector.load %arg5[%c0_26, %c0_27] : memref<256x1024xbf16, #tpu.memory_space<vmem>>, vector<256x1024xbf16>
    %cst_28 = arith.constant dense<0.000000e+00> : vector<8x1024xf32>
    %27 = tpu.matmul %25, %26, %cst_28 {dimension_numbers = #tpu.dot_dimension_numbers<[1], [0], [0], [1], [0, 0, 1, 1], [], []>} : vector<8x256xbf16>, vector<256x1024xbf16>, vector<8x1024xf32> -> vector<8x1024xf32>
    %28 = vector.extract_strided_slice %27 {offsets = [0, 0], sizes = [8, 512], strides = [1, 1]} : vector<8x1024xf32> to vector<8x512xf32>
    %c0_29 = arith.constant 0 : index
    %c0_30 = arith.constant 0 : index
    %29 = vector.load %arg14[%c0_29, %c0_30] : memref<64x512xf32, #tpu.memory_space<vmem>>, vector<8x512xf32>
    %30 = arith.addf %28, %29 : vector<8x512xf32>
    %31 = vector.extract_strided_slice %30 {offsets = [0, 0], sizes = [8, 384], strides = [1, 1]} : vector<8x512xf32> to vector<8x384xf32>
    %32 = arith.negf %31 : vector<8x384xf32>
    %33 = math.exp %32 : vector<8x384xf32>
    %cst_31 = arith.constant 1.000000e+00 : f32
    %34 = vector.broadcast %cst_31 : f32 to vector<8x384xf32>
    %35 = arith.addf %34, %33 : vector<8x384xf32>
    %36 = arith.divf %34, %35 : vector<8x384xf32>
    %37 = vector.extract_strided_slice %36 {offsets = [0, 0], sizes = [8, 128], strides = [1, 1]} : vector<8x384xf32> to vector<8x128xf32>
    %38 = vector.extract_strided_slice %36 {offsets = [0, 128], sizes = [8, 128], strides = [1, 1]} : vector<8x384xf32> to vector<8x128xf32>
    %39 = vector.extract_strided_slice %36 {offsets = [0, 256], sizes = [8, 128], strides = [1, 1]} : vector<8x384xf32> to vector<8x128xf32>
    %40 = vector.extract_strided_slice %30 {offsets = [0, 384], sizes = [8, 128], strides = [1, 1]} : vector<8x512xf32> to vector<8x128xf32>
    %41 = math.tanh %40 : vector<8x128xf32>
    %42 = arith.mulf %38, %18 : vector<8x128xf32>
    %43 = arith.mulf %37, %41 : vector<8x128xf32>
    %44 = arith.addf %42, %43 : vector<8x128xf32>
    %45 = math.tanh %44 : vector<8x128xf32>
    %46 = arith.mulf %39, %45 : vector<8x128xf32>
    %47 = tpu.concatenate %46, %20 in 1 : vector<8x128xf32>, vector<8x128xf32> -> vector<8x256xf32>
    %48 = arith.truncf %47 : vector<8x256xf32> to vector<8x256xbf16>
    %c0_32 = arith.constant 0 : index
    %c0_33 = arith.constant 0 : index
    %49 = vector.load %arg5[%c0_32, %c0_33] : memref<256x1024xbf16, #tpu.memory_space<vmem>>, vector<256x1024xbf16>
    %cst_34 = arith.constant dense<0.000000e+00> : vector<8x1024xf32>
    %50 = tpu.matmul %48, %49, %cst_34 {dimension_numbers = #tpu.dot_dimension_numbers<[1], [0], [0], [1], [0, 0, 1, 1], [], []>} : vector<8x256xbf16>, vector<256x1024xbf16>, vector<8x1024xf32> -> vector<8x1024xf32>
    %51 = vector.extract_strided_slice %50 {offsets = [0, 512], sizes = [8, 512], strides = [1, 1]} : vector<8x1024xf32> to vector<8x512xf32>
    %52 = vector.broadcast %23 : vector<1x512xf32> to vector<8x512xf32>
    %53 = arith.addf %51, %52 : vector<8x512xf32>
    %54 = vector.extract_strided_slice %53 {offsets = [0, 0], sizes = [8, 384], strides = [1, 1]} : vector<8x512xf32> to vector<8x384xf32>
    %55 = arith.negf %54 : vector<8x384xf32>
    %56 = math.exp %55 : vector<8x384xf32>
    %cst_35 = arith.constant 1.000000e+00 : f32
    %57 = vector.broadcast %cst_35 : f32 to vector<8x384xf32>
    %58 = arith.addf %57, %56 : vector<8x384xf32>
    %59 = arith.divf %57, %58 : vector<8x384xf32>
    %60 = vector.extract_strided_slice %59 {offsets = [0, 0], sizes = [8, 128], strides = [1, 1]} : vector<8x384xf32> to vector<8x128xf32>
    %61 = vector.extract_strided_slice %59 {offsets = [0, 128], sizes = [8, 128], strides = [1, 1]} : vector<8x384xf32> to vector<8x128xf32>
    %62 = vector.extract_strided_slice %59 {offsets = [0, 256], sizes = [8, 128], strides = [1, 1]} : vector<8x384xf32> to vector<8x128xf32>
    %63 = vector.extract_strided_slice %53 {offsets = [0, 384], sizes = [8, 128], strides = [1, 1]} : vector<8x512xf32> to vector<8x128xf32>
    %64 = math.tanh %63 : vector<8x128xf32>
    %65 = arith.mulf %61, %22 : vector<8x128xf32>
    %66 = arith.mulf %60, %64 : vector<8x128xf32>
    %67 = arith.addf %65, %66 : vector<8x128xf32>
    %68 = math.tanh %67 : vector<8x128xf32>
    %69 = arith.mulf %62, %68 : vector<8x128xf32>
    %70 = vector.extract_strided_slice %50 {offsets = [0, 0], sizes = [8, 512], strides = [1, 1]} : vector<8x1024xf32> to vector<8x512xf32>
    %c8 = arith.constant 8 : index
    %c0_36 = arith.constant 0 : index
    %71 = vector.load %arg14[%c8, %c0_36] : memref<64x512xf32, #tpu.memory_space<vmem>>, vector<8x512xf32>
    %72 = arith.addf %70, %71 : vector<8x512xf32>
    %73 = vector.extract_strided_slice %72 {offsets = [0, 0], sizes = [8, 384], strides = [1, 1]} : vector<8x512xf32> to vector<8x384xf32>
    %74 = arith.negf %73 : vector<8x384xf32>
    %75 = math.exp %74 : vector<8x384xf32>
    %cst_37 = arith.constant 1.000000e+00 : f32
    %76 = vector.broadcast %cst_37 : f32 to vector<8x384xf32>
    %77 = arith.addf %76, %75 : vector<8x384xf32>
    %78 = arith.divf %76, %77 : vector<8x384xf32>
    %79 = vector.extract_strided_slice %78 {offsets = [0, 0], sizes = [8, 128], strides = [1, 1]} : vector<8x384xf32> to vector<8x128xf32>
    %80 = vector.extract_strided_slice %78 {offsets = [0, 128], sizes = [8, 128], strides = [1, 1]} : vector<8x384xf32> to vector<8x128xf32>
    %81 = vector.extract_strided_slice %78 {offsets = [0, 256], sizes = [8, 128], strides = [1, 1]} : vector<8x384xf32> to vector<8x128xf32>
    %82 = vector.extract_strided_slice %72 {offsets = [0, 384], sizes = [8, 128], strides = [1, 1]} : vector<8x512xf32> to vector<8x128xf32>
    %83 = math.tanh %82 : vector<8x128xf32>
    %84 = arith.mulf %80, %44 : vector<8x128xf32>
    %85 = arith.mulf %79, %83 : vector<8x128xf32>
    %86 = arith.addf %84, %85 : vector<8x128xf32>
    %87 = math.tanh %86 : vector<8x128xf32>
    %88 = arith.mulf %81, %87 : vector<8x128xf32>
    %89 = tpu.concatenate %88, %69 in 1 : vector<8x128xf32>, vector<8x128xf32> -> vector<8x256xf32>
    %90 = arith.truncf %89 : vector<8x256xf32> to vector<8x256xbf16>
    %c0_38 = arith.constant 0 : index
    %c0_39 = arith.constant 0 : index
    %91 = vector.load %arg5[%c0_38, %c0_39] : memref<256x1024xbf16, #tpu.memory_space<vmem>>, vector<256x1024xbf16>
    %cst_40 = arith.constant dense<0.000000e+00> : vector<8x1024xf32>
    %92 = tpu.matmul %90, %91, %cst_40 {dimension_numbers = #tpu.dot_dimension_numbers<[1], [0], [0], [1], [0, 0, 1, 1], [], []>} : vector<8x256xbf16>, vector<256x1024xbf16>, vector<8x1024xf32> -> vector<8x1024xf32>
    %93 = vector.extract_strided_slice %92 {offsets = [0, 512], sizes = [8, 512], strides = [1, 1]} : vector<8x1024xf32> to vector<8x512xf32>
    %94 = vector.broadcast %23 : vector<1x512xf32> to vector<8x512xf32>
    %95 = arith.addf %93, %94 : vector<8x512xf32>
    %96 = vector.extract_strided_slice %95 {offsets = [0, 0], sizes = [8, 384], strides = [1, 1]} : vector<8x512xf32> to vector<8x384xf32>
    %97 = arith.negf %96 : vector<8x384xf32>
    %98 = math.exp %97 : vector<8x384xf32>
    %cst_41 = arith.constant 1.000000e+00 : f32
    %99 = vector.broadcast %cst_41 : f32 to vector<8x384xf32>
    %100 = arith.addf %99, %98 : vector<8x384xf32>
    %101 = arith.divf %99, %100 : vector<8x384xf32>
    %102 = vector.extract_strided_slice %101 {offsets = [0, 0], sizes = [8, 128], strides = [1, 1]} : vector<8x384xf32> to vector<8x128xf32>
    %103 = vector.extract_strided_slice %101 {offsets = [0, 128], sizes = [8, 128], strides = [1, 1]} : vector<8x384xf32> to vector<8x128xf32>
    %104 = vector.extract_strided_slice %101 {offsets = [0, 256], sizes = [8, 128], strides = [1, 1]} : vector<8x384xf32> to vector<8x128xf32>
    %105 = vector.extract_strided_slice %95 {offsets = [0, 384], sizes = [8, 128], strides = [1, 1]} : vector<8x512xf32> to vector<8x128xf32>
    %106 = math.tanh %105 : vector<8x128xf32>
    %107 = arith.mulf %103, %67 : vector<8x128xf32>
    %108 = arith.mulf %102, %106 : vector<8x128xf32>
    %109 = arith.addf %107, %108 : vector<8x128xf32>
    %110 = math.tanh %109 : vector<8x128xf32>
    %111 = arith.mulf %104, %110 : vector<8x128xf32>
    %112 = vector.extract_strided_slice %92 {offsets = [0, 0], sizes = [8, 512], strides = [1, 1]} : vector<8x1024xf32> to vector<8x512xf32>
    %c16 = arith.constant 16 : index
    %c0_42 = arith.constant 0 : index
    %113 = vector.load %arg14[%c16, %c0_42] : memref<64x512xf32, #tpu.memory_space<vmem>>, vector<8x512xf32>
    %114 = arith.addf %112, %113 : vector<8x512xf32>
    %115 = vector.extract_strided_slice %114 {offsets = [0, 0], sizes = [8, 384], strides = [1, 1]} : vector<8x512xf32> to vector<8x384xf32>
    %116 = arith.negf %115 : vector<8x384xf32>
    %117 = math.exp %116 : vector<8x384xf32>
    %cst_43 = arith.constant 1.000000e+00 : f32
    %118 = vector.broadcast %cst_43 : f32 to vector<8x384xf32>
    %119 = arith.addf %118, %117 : vector<8x384xf32>
    %120 = arith.divf %118, %119 : vector<8x384xf32>
    %121 = vector.extract_strided_slice %120 {offsets = [0, 0], sizes = [8, 128], strides = [1, 1]} : vector<8x384xf32> to vector<8x128xf32>
    %122 = vector.extract_strided_slice %120 {offsets = [0, 128], sizes = [8, 128], strides = [1, 1]} : vector<8x384xf32> to vector<8x128xf32>
    %123 = vector.extract_strided_slice %120 {offsets = [0, 256], sizes = [8, 128], strides = [1, 1]} : vector<8x384xf32> to vector<8x128xf32>
    %124 = vector.extract_strided_slice %114 {offsets = [0, 384], sizes = [8, 128], strides = [1, 1]} : vector<8x512xf32> to vector<8x128xf32>
    %125 = math.tanh %124 : vector<8x128xf32>
    %126 = arith.mulf %122, %86 : vector<8x128xf32>
    %127 = arith.mulf %121, %125 : vector<8x128xf32>
    %128 = arith.addf %126, %127 : vector<8x128xf32>
    %129 = math.tanh %128 : vector<8x128xf32>
    %130 = arith.mulf %123, %129 : vector<8x128xf32>
    %131 = tpu.concatenate %130, %111 in 1 : vector<8x128xf32>, vector<8x128xf32> -> vector<8x256xf32>
    %132 = arith.truncf %131 : vector<8x256xf32> to vector<8x256xbf16>
    %c0_44 = arith.constant 0 : index
    %c0_45 = arith.constant 0 : index
    %133 = vector.load %arg5[%c0_44, %c0_45] : memref<256x1024xbf16, #tpu.memory_space<vmem>>, vector<256x1024xbf16>
    %cst_46 = arith.constant dense<0.000000e+00> : vector<8x1024xf32>
    %134 = tpu.matmul %132, %133, %cst_46 {dimension_numbers = #tpu.dot_dimension_numbers<[1], [0], [0], [1], [0, 0, 1, 1], [], []>} : vector<8x256xbf16>, vector<256x1024xbf16>, vector<8x1024xf32> -> vector<8x1024xf32>
    %135 = vector.extract_strided_slice %134 {offsets = [0, 512], sizes = [8, 512], strides = [1, 1]} : vector<8x1024xf32> to vector<8x512xf32>
    %136 = vector.broadcast %23 : vector<1x512xf32> to vector<8x512xf32>
    %137 = arith.addf %135, %136 : vector<8x512xf32>
    %138 = vector.extract_strided_slice %137 {offsets = [0, 0], sizes = [8, 384], strides = [1, 1]} : vector<8x512xf32> to vector<8x384xf32>
    %139 = arith.negf %138 : vector<8x384xf32>
    %140 = math.exp %139 : vector<8x384xf32>
    %cst_47 = arith.constant 1.000000e+00 : f32
    %141 = vector.broadcast %cst_47 : f32 to vector<8x384xf32>
    %142 = arith.addf %141, %140 : vector<8x384xf32>
    %143 = arith.divf %141, %142 : vector<8x384xf32>
    %144 = vector.extract_strided_slice %143 {offsets = [0, 0], sizes = [8, 128], strides = [1, 1]} : vector<8x384xf32> to vector<8x128xf32>
    %145 = vector.extract_strided_slice %143 {offsets = [0, 128], sizes = [8, 128], strides = [1, 1]} : vector<8x384xf32> to vector<8x128xf32>
    %146 = vector.extract_strided_slice %143 {offsets = [0, 256], sizes = [8, 128], strides = [1, 1]} : vector<8x384xf32> to vector<8x128xf32>
    %147 = vector.extract_strided_slice %137 {offsets = [0, 384], sizes = [8, 128], strides = [1, 1]} : vector<8x512xf32> to vector<8x128xf32>
    %148 = math.tanh %147 : vector<8x128xf32>
    %149 = arith.mulf %145, %109 : vector<8x128xf32>
    %150 = arith.mulf %144, %148 : vector<8x128xf32>
    %151 = arith.addf %149, %150 : vector<8x128xf32>
    %152 = math.tanh %151 : vector<8x128xf32>
    %153 = arith.mulf %146, %152 : vector<8x128xf32>
    %154 = vector.extract_strided_slice %134 {offsets = [0, 0], sizes = [8, 512], strides = [1, 1]} : vector<8x1024xf32> to vector<8x512xf32>
    %c24 = arith.constant 24 : index
    %c0_48 = arith.constant 0 : index
    %155 = vector.load %arg14[%c24, %c0_48] : memref<64x512xf32, #tpu.memory_space<vmem>>, vector<8x512xf32>
    %156 = arith.addf %154, %155 : vector<8x512xf32>
    %157 = vector.extract_strided_slice %156 {offsets = [0, 0], sizes = [8, 384], strides = [1, 1]} : vector<8x512xf32> to vector<8x384xf32>
    %158 = arith.negf %157 : vector<8x384xf32>
    %159 = math.exp %158 : vector<8x384xf32>
    %cst_49 = arith.constant 1.000000e+00 : f32
    %160 = vector.broadcast %cst_49 : f32 to vector<8x384xf32>
    %161 = arith.addf %160, %159 : vector<8x384xf32>
    %162 = arith.divf %160, %161 : vector<8x384xf32>
    %163 = vector.extract_strided_slice %162 {offsets = [0, 0], sizes = [8, 128], strides = [1, 1]} : vector<8x384xf32> to vector<8x128xf32>
    %164 = vector.extract_strided_slice %162 {offsets = [0, 128], sizes = [8, 128], strides = [1, 1]} : vector<8x384xf32> to vector<8x128xf32>
    %165 = vector.extract_strided_slice %162 {offsets = [0, 256], sizes = [8, 128], strides = [1, 1]} : vector<8x384xf32> to vector<8x128xf32>
    %166 = vector.extract_strided_slice %156 {offsets = [0, 384], sizes = [8, 128], strides = [1, 1]} : vector<8x512xf32> to vector<8x128xf32>
    %167 = math.tanh %166 : vector<8x128xf32>
    %168 = arith.mulf %164, %128 : vector<8x128xf32>
    %169 = arith.mulf %163, %167 : vector<8x128xf32>
    %170 = arith.addf %168, %169 : vector<8x128xf32>
    %171 = math.tanh %170 : vector<8x128xf32>
    %172 = arith.mulf %165, %171 : vector<8x128xf32>
    %173 = tpu.concatenate %172, %153 in 1 : vector<8x128xf32>, vector<8x128xf32> -> vector<8x256xf32>
    %174 = arith.truncf %173 : vector<8x256xf32> to vector<8x256xbf16>
    %c0_50 = arith.constant 0 : index
    %c0_51 = arith.constant 0 : index
    %175 = vector.load %arg5[%c0_50, %c0_51] : memref<256x1024xbf16, #tpu.memory_space<vmem>>, vector<256x1024xbf16>
    %cst_52 = arith.constant dense<0.000000e+00> : vector<8x1024xf32>
    %176 = tpu.matmul %174, %175, %cst_52 {dimension_numbers = #tpu.dot_dimension_numbers<[1], [0], [0], [1], [0, 0, 1, 1], [], []>} : vector<8x256xbf16>, vector<256x1024xbf16>, vector<8x1024xf32> -> vector<8x1024xf32>
    %177 = vector.extract_strided_slice %176 {offsets = [0, 512], sizes = [8, 512], strides = [1, 1]} : vector<8x1024xf32> to vector<8x512xf32>
    %178 = vector.broadcast %23 : vector<1x512xf32> to vector<8x512xf32>
    %179 = arith.addf %177, %178 : vector<8x512xf32>
    %180 = vector.extract_strided_slice %179 {offsets = [0, 0], sizes = [8, 384], strides = [1, 1]} : vector<8x512xf32> to vector<8x384xf32>
    %181 = arith.negf %180 : vector<8x384xf32>
    %182 = math.exp %181 : vector<8x384xf32>
    %cst_53 = arith.constant 1.000000e+00 : f32
    %183 = vector.broadcast %cst_53 : f32 to vector<8x384xf32>
    %184 = arith.addf %183, %182 : vector<8x384xf32>
    %185 = arith.divf %183, %184 : vector<8x384xf32>
    %186 = vector.extract_strided_slice %185 {offsets = [0, 0], sizes = [8, 128], strides = [1, 1]} : vector<8x384xf32> to vector<8x128xf32>
    %187 = vector.extract_strided_slice %185 {offsets = [0, 128], sizes = [8, 128], strides = [1, 1]} : vector<8x384xf32> to vector<8x128xf32>
    %188 = vector.extract_strided_slice %185 {offsets = [0, 256], sizes = [8, 128], strides = [1, 1]} : vector<8x384xf32> to vector<8x128xf32>
    %189 = vector.extract_strided_slice %179 {offsets = [0, 384], sizes = [8, 128], strides = [1, 1]} : vector<8x512xf32> to vector<8x128xf32>
    %190 = math.tanh %189 : vector<8x128xf32>
    %191 = arith.mulf %187, %151 : vector<8x128xf32>
    %192 = arith.mulf %186, %190 : vector<8x128xf32>
    %193 = arith.addf %191, %192 : vector<8x128xf32>
    %194 = math.tanh %193 : vector<8x128xf32>
    %195 = arith.mulf %188, %194 : vector<8x128xf32>
    %196 = vector.extract_strided_slice %176 {offsets = [0, 0], sizes = [8, 512], strides = [1, 1]} : vector<8x1024xf32> to vector<8x512xf32>
    %c32 = arith.constant 32 : index
    %c0_54 = arith.constant 0 : index
    %197 = vector.load %arg14[%c32, %c0_54] : memref<64x512xf32, #tpu.memory_space<vmem>>, vector<8x512xf32>
    %198 = arith.addf %196, %197 : vector<8x512xf32>
    %199 = vector.extract_strided_slice %198 {offsets = [0, 0], sizes = [8, 384], strides = [1, 1]} : vector<8x512xf32> to vector<8x384xf32>
    %200 = arith.negf %199 : vector<8x384xf32>
    %201 = math.exp %200 : vector<8x384xf32>
    %cst_55 = arith.constant 1.000000e+00 : f32
    %202 = vector.broadcast %cst_55 : f32 to vector<8x384xf32>
    %203 = arith.addf %202, %201 : vector<8x384xf32>
    %204 = arith.divf %202, %203 : vector<8x384xf32>
    %205 = vector.extract_strided_slice %204 {offsets = [0, 0], sizes = [8, 128], strides = [1, 1]} : vector<8x384xf32> to vector<8x128xf32>
    %206 = vector.extract_strided_slice %204 {offsets = [0, 128], sizes = [8, 128], strides = [1, 1]} : vector<8x384xf32> to vector<8x128xf32>
    %207 = vector.extract_strided_slice %204 {offsets = [0, 256], sizes = [8, 128], strides = [1, 1]} : vector<8x384xf32> to vector<8x128xf32>
    %208 = vector.extract_strided_slice %198 {offsets = [0, 384], sizes = [8, 128], strides = [1, 1]} : vector<8x512xf32> to vector<8x128xf32>
    %209 = math.tanh %208 : vector<8x128xf32>
    %210 = arith.mulf %206, %170 : vector<8x128xf32>
    %211 = arith.mulf %205, %209 : vector<8x128xf32>
    %212 = arith.addf %210, %211 : vector<8x128xf32>
    %213 = math.tanh %212 : vector<8x128xf32>
    %214 = arith.mulf %207, %213 : vector<8x128xf32>
    %215 = tpu.concatenate %214, %195 in 1 : vector<8x128xf32>, vector<8x128xf32> -> vector<8x256xf32>
    %216 = arith.truncf %215 : vector<8x256xf32> to vector<8x256xbf16>
    %c0_56 = arith.constant 0 : index
    %c0_57 = arith.constant 0 : index
    %217 = vector.load %arg5[%c0_56, %c0_57] : memref<256x1024xbf16, #tpu.memory_space<vmem>>, vector<256x1024xbf16>
    %cst_58 = arith.constant dense<0.000000e+00> : vector<8x1024xf32>
    %218 = tpu.matmul %216, %217, %cst_58 {dimension_numbers = #tpu.dot_dimension_numbers<[1], [0], [0], [1], [0, 0, 1, 1], [], []>} : vector<8x256xbf16>, vector<256x1024xbf16>, vector<8x1024xf32> -> vector<8x1024xf32>
    %219 = vector.extract_strided_slice %218 {offsets = [0, 512], sizes = [8, 512], strides = [1, 1]} : vector<8x1024xf32> to vector<8x512xf32>
    %220 = vector.broadcast %23 : vector<1x512xf32> to vector<8x512xf32>
    %221 = arith.addf %219, %220 : vector<8x512xf32>
    %222 = vector.extract_strided_slice %221 {offsets = [0, 0], sizes = [8, 384], strides = [1, 1]} : vector<8x512xf32> to vector<8x384xf32>
    %223 = arith.negf %222 : vector<8x384xf32>
    %224 = math.exp %223 : vector<8x384xf32>
    %cst_59 = arith.constant 1.000000e+00 : f32
    %225 = vector.broadcast %cst_59 : f32 to vector<8x384xf32>
    %226 = arith.addf %225, %224 : vector<8x384xf32>
    %227 = arith.divf %225, %226 : vector<8x384xf32>
    %228 = vector.extract_strided_slice %227 {offsets = [0, 0], sizes = [8, 128], strides = [1, 1]} : vector<8x384xf32> to vector<8x128xf32>
    %229 = vector.extract_strided_slice %227 {offsets = [0, 128], sizes = [8, 128], strides = [1, 1]} : vector<8x384xf32> to vector<8x128xf32>
    %230 = vector.extract_strided_slice %227 {offsets = [0, 256], sizes = [8, 128], strides = [1, 1]} : vector<8x384xf32> to vector<8x128xf32>
    %231 = vector.extract_strided_slice %221 {offsets = [0, 384], sizes = [8, 128], strides = [1, 1]} : vector<8x512xf32> to vector<8x128xf32>
    %232 = math.tanh %231 : vector<8x128xf32>
    %233 = arith.mulf %229, %193 : vector<8x128xf32>
    %234 = arith.mulf %228, %232 : vector<8x128xf32>
    %235 = arith.addf %233, %234 : vector<8x128xf32>
    %236 = math.tanh %235 : vector<8x128xf32>
    %237 = arith.mulf %230, %236 : vector<8x128xf32>
    %238 = vector.extract_strided_slice %218 {offsets = [0, 0], sizes = [8, 512], strides = [1, 1]} : vector<8x1024xf32> to vector<8x512xf32>
    %c40 = arith.constant 40 : index
    %c0_60 = arith.constant 0 : index
    %239 = vector.load %arg14[%c40, %c0_60] : memref<64x512xf32, #tpu.memory_space<vmem>>, vector<8x512xf32>
    %240 = arith.addf %238, %239 : vector<8x512xf32>
    %241 = vector.extract_strided_slice %240 {offsets = [0, 0], sizes = [8, 384], strides = [1, 1]} : vector<8x512xf32> to vector<8x384xf32>
    %242 = arith.negf %241 : vector<8x384xf32>
    %243 = math.exp %242 : vector<8x384xf32>
    %cst_61 = arith.constant 1.000000e+00 : f32
    %244 = vector.broadcast %cst_61 : f32 to vector<8x384xf32>
    %245 = arith.addf %244, %243 : vector<8x384xf32>
    %246 = arith.divf %244, %245 : vector<8x384xf32>
    %247 = vector.extract_strided_slice %246 {offsets = [0, 0], sizes = [8, 128], strides = [1, 1]} : vector<8x384xf32> to vector<8x128xf32>
    %248 = vector.extract_strided_slice %246 {offsets = [0, 128], sizes = [8, 128], strides = [1, 1]} : vector<8x384xf32> to vector<8x128xf32>
    %249 = vector.extract_strided_slice %246 {offsets = [0, 256], sizes = [8, 128], strides = [1, 1]} : vector<8x384xf32> to vector<8x128xf32>
    %250 = vector.extract_strided_slice %240 {offsets = [0, 384], sizes = [8, 128], strides = [1, 1]} : vector<8x512xf32> to vector<8x128xf32>
    %251 = math.tanh %250 : vector<8x128xf32>
    %252 = arith.mulf %248, %212 : vector<8x128xf32>
    %253 = arith.mulf %247, %251 : vector<8x128xf32>
    %254 = arith.addf %252, %253 : vector<8x128xf32>
    %255 = math.tanh %254 : vector<8x128xf32>
    %256 = arith.mulf %249, %255 : vector<8x128xf32>
    %257 = tpu.concatenate %256, %237 in 1 : vector<8x128xf32>, vector<8x128xf32> -> vector<8x256xf32>
    %258 = arith.truncf %257 : vector<8x256xf32> to vector<8x256xbf16>
    %c0_62 = arith.constant 0 : index
    %c0_63 = arith.constant 0 : index
    %259 = vector.load %arg5[%c0_62, %c0_63] : memref<256x1024xbf16, #tpu.memory_space<vmem>>, vector<256x1024xbf16>
    %cst_64 = arith.constant dense<0.000000e+00> : vector<8x1024xf32>
    %260 = tpu.matmul %258, %259, %cst_64 {dimension_numbers = #tpu.dot_dimension_numbers<[1], [0], [0], [1], [0, 0, 1, 1], [], []>} : vector<8x256xbf16>, vector<256x1024xbf16>, vector<8x1024xf32> -> vector<8x1024xf32>
    %261 = vector.extract_strided_slice %260 {offsets = [0, 512], sizes = [8, 512], strides = [1, 1]} : vector<8x1024xf32> to vector<8x512xf32>
    %262 = vector.broadcast %23 : vector<1x512xf32> to vector<8x512xf32>
    %263 = arith.addf %261, %262 : vector<8x512xf32>
    %264 = vector.extract_strided_slice %263 {offsets = [0, 0], sizes = [8, 384], strides = [1, 1]} : vector<8x512xf32> to vector<8x384xf32>
    %265 = arith.negf %264 : vector<8x384xf32>
    %266 = math.exp %265 : vector<8x384xf32>
    %cst_65 = arith.constant 1.000000e+00 : f32
    %267 = vector.broadcast %cst_65 : f32 to vector<8x384xf32>
    %268 = arith.addf %267, %266 : vector<8x384xf32>
    %269 = arith.divf %267, %268 : vector<8x384xf32>
    %270 = vector.extract_strided_slice %269 {offsets = [0, 0], sizes = [8, 128], strides = [1, 1]} : vector<8x384xf32> to vector<8x128xf32>
    %271 = vector.extract_strided_slice %269 {offsets = [0, 128], sizes = [8, 128], strides = [1, 1]} : vector<8x384xf32> to vector<8x128xf32>
    %272 = vector.extract_strided_slice %269 {offsets = [0, 256], sizes = [8, 128], strides = [1, 1]} : vector<8x384xf32> to vector<8x128xf32>
    %273 = vector.extract_strided_slice %263 {offsets = [0, 384], sizes = [8, 128], strides = [1, 1]} : vector<8x512xf32> to vector<8x128xf32>
    %274 = math.tanh %273 : vector<8x128xf32>
    %275 = arith.mulf %271, %235 : vector<8x128xf32>
    %276 = arith.mulf %270, %274 : vector<8x128xf32>
    %277 = arith.addf %275, %276 : vector<8x128xf32>
    %278 = math.tanh %277 : vector<8x128xf32>
    %279 = arith.mulf %272, %278 : vector<8x128xf32>
    %280 = vector.extract_strided_slice %260 {offsets = [0, 0], sizes = [8, 512], strides = [1, 1]} : vector<8x1024xf32> to vector<8x512xf32>
    %c48 = arith.constant 48 : index
    %c0_66 = arith.constant 0 : index
    %281 = vector.load %arg14[%c48, %c0_66] : memref<64x512xf32, #tpu.memory_space<vmem>>, vector<8x512xf32>
    %282 = arith.addf %280, %281 : vector<8x512xf32>
    %283 = vector.extract_strided_slice %282 {offsets = [0, 0], sizes = [8, 384], strides = [1, 1]} : vector<8x512xf32> to vector<8x384xf32>
    %284 = arith.negf %283 : vector<8x384xf32>
    %285 = math.exp %284 : vector<8x384xf32>
    %cst_67 = arith.constant 1.000000e+00 : f32
    %286 = vector.broadcast %cst_67 : f32 to vector<8x384xf32>
    %287 = arith.addf %286, %285 : vector<8x384xf32>
    %288 = arith.divf %286, %287 : vector<8x384xf32>
    %289 = vector.extract_strided_slice %288 {offsets = [0, 0], sizes = [8, 128], strides = [1, 1]} : vector<8x384xf32> to vector<8x128xf32>
    %290 = vector.extract_strided_slice %288 {offsets = [0, 128], sizes = [8, 128], strides = [1, 1]} : vector<8x384xf32> to vector<8x128xf32>
    %291 = vector.extract_strided_slice %288 {offsets = [0, 256], sizes = [8, 128], strides = [1, 1]} : vector<8x384xf32> to vector<8x128xf32>
    %292 = vector.extract_strided_slice %282 {offsets = [0, 384], sizes = [8, 128], strides = [1, 1]} : vector<8x512xf32> to vector<8x128xf32>
    %293 = math.tanh %292 : vector<8x128xf32>
    %294 = arith.mulf %290, %254 : vector<8x128xf32>
    %295 = arith.mulf %289, %293 : vector<8x128xf32>
    %296 = arith.addf %294, %295 : vector<8x128xf32>
    %297 = math.tanh %296 : vector<8x128xf32>
    %298 = arith.mulf %291, %297 : vector<8x128xf32>
    %299 = tpu.concatenate %298, %279 in 1 : vector<8x128xf32>, vector<8x128xf32> -> vector<8x256xf32>
    %300 = arith.truncf %299 : vector<8x256xf32> to vector<8x256xbf16>
    %c0_68 = arith.constant 0 : index
    %c0_69 = arith.constant 0 : index
    %301 = vector.load %arg5[%c0_68, %c0_69] : memref<256x1024xbf16, #tpu.memory_space<vmem>>, vector<256x1024xbf16>
    %cst_70 = arith.constant dense<0.000000e+00> : vector<8x1024xf32>
    %302 = tpu.matmul %300, %301, %cst_70 {dimension_numbers = #tpu.dot_dimension_numbers<[1], [0], [0], [1], [0, 0, 1, 1], [], []>} : vector<8x256xbf16>, vector<256x1024xbf16>, vector<8x1024xf32> -> vector<8x1024xf32>
    %303 = vector.extract_strided_slice %302 {offsets = [0, 512], sizes = [8, 512], strides = [1, 1]} : vector<8x1024xf32> to vector<8x512xf32>
    %304 = vector.broadcast %23 : vector<1x512xf32> to vector<8x512xf32>
    %305 = arith.addf %303, %304 : vector<8x512xf32>
    %306 = vector.extract_strided_slice %305 {offsets = [0, 0], sizes = [8, 384], strides = [1, 1]} : vector<8x512xf32> to vector<8x384xf32>
    %307 = arith.negf %306 : vector<8x384xf32>
    %308 = math.exp %307 : vector<8x384xf32>
    %cst_71 = arith.constant 1.000000e+00 : f32
    %309 = vector.broadcast %cst_71 : f32 to vector<8x384xf32>
    %310 = arith.addf %309, %308 : vector<8x384xf32>
    %311 = arith.divf %309, %310 : vector<8x384xf32>
    %312 = vector.extract_strided_slice %311 {offsets = [0, 0], sizes = [8, 128], strides = [1, 1]} : vector<8x384xf32> to vector<8x128xf32>
    %313 = vector.extract_strided_slice %311 {offsets = [0, 128], sizes = [8, 128], strides = [1, 1]} : vector<8x384xf32> to vector<8x128xf32>
    %314 = vector.extract_strided_slice %311 {offsets = [0, 256], sizes = [8, 128], strides = [1, 1]} : vector<8x384xf32> to vector<8x128xf32>
    %315 = vector.extract_strided_slice %305 {offsets = [0, 384], sizes = [8, 128], strides = [1, 1]} : vector<8x512xf32> to vector<8x128xf32>
    %316 = math.tanh %315 : vector<8x128xf32>
    %317 = arith.mulf %313, %277 : vector<8x128xf32>
    %318 = arith.mulf %312, %316 : vector<8x128xf32>
    %319 = arith.addf %317, %318 : vector<8x128xf32>
    %320 = math.tanh %319 : vector<8x128xf32>
    %321 = arith.mulf %314, %320 : vector<8x128xf32>
    %322 = vector.extract_strided_slice %302 {offsets = [0, 0], sizes = [8, 512], strides = [1, 1]} : vector<8x1024xf32> to vector<8x512xf32>
    %c56 = arith.constant 56 : index
    %c0_72 = arith.constant 0 : index
    %323 = vector.load %arg14[%c56, %c0_72] : memref<64x512xf32, #tpu.memory_space<vmem>>, vector<8x512xf32>
    %324 = arith.addf %322, %323 : vector<8x512xf32>
    %325 = vector.extract_strided_slice %324 {offsets = [0, 0], sizes = [8, 384], strides = [1, 1]} : vector<8x512xf32> to vector<8x384xf32>
    %326 = arith.negf %325 : vector<8x384xf32>
    %327 = math.exp %326 : vector<8x384xf32>
    %cst_73 = arith.constant 1.000000e+00 : f32
    %328 = vector.broadcast %cst_73 : f32 to vector<8x384xf32>
    %329 = arith.addf %328, %327 : vector<8x384xf32>
    %330 = arith.divf %328, %329 : vector<8x384xf32>
    %331 = vector.extract_strided_slice %330 {offsets = [0, 0], sizes = [8, 128], strides = [1, 1]} : vector<8x384xf32> to vector<8x128xf32>
    %332 = vector.extract_strided_slice %330 {offsets = [0, 128], sizes = [8, 128], strides = [1, 1]} : vector<8x384xf32> to vector<8x128xf32>
    %333 = vector.extract_strided_slice %330 {offsets = [0, 256], sizes = [8, 128], strides = [1, 1]} : vector<8x384xf32> to vector<8x128xf32>
    %334 = vector.extract_strided_slice %324 {offsets = [0, 384], sizes = [8, 128], strides = [1, 1]} : vector<8x512xf32> to vector<8x128xf32>
    %335 = math.tanh %334 : vector<8x128xf32>
    %336 = arith.mulf %332, %296 : vector<8x128xf32>
    %337 = arith.mulf %331, %335 : vector<8x128xf32>
    %338 = arith.addf %336, %337 : vector<8x128xf32>
    %339 = math.tanh %338 : vector<8x128xf32>
    %340 = arith.mulf %333, %339 : vector<8x128xf32>
    %341 = tpu.concatenate %340, %321 in 1 : vector<8x128xf32>, vector<8x128xf32> -> vector<8x256xf32>
    %342 = arith.truncf %341 : vector<8x256xf32> to vector<8x256xbf16>
    %c0_74 = arith.constant 0 : index
    %c0_75 = arith.constant 0 : index
    %343 = vector.load %arg5[%c0_74, %c0_75] : memref<256x1024xbf16, #tpu.memory_space<vmem>>, vector<256x1024xbf16>
    %cst_76 = arith.constant dense<0.000000e+00> : vector<8x1024xf32>
    %344 = tpu.matmul %342, %343, %cst_76 {dimension_numbers = #tpu.dot_dimension_numbers<[1], [0], [0], [1], [0, 0, 1, 1], [], []>} : vector<8x256xbf16>, vector<256x1024xbf16>, vector<8x1024xf32> -> vector<8x1024xf32>
    %345 = vector.extract_strided_slice %344 {offsets = [0, 512], sizes = [8, 512], strides = [1, 1]} : vector<8x1024xf32> to vector<8x512xf32>
    %346 = vector.broadcast %23 : vector<1x512xf32> to vector<8x512xf32>
    %347 = arith.addf %345, %346 : vector<8x512xf32>
    %348 = vector.extract_strided_slice %347 {offsets = [0, 0], sizes = [8, 384], strides = [1, 1]} : vector<8x512xf32> to vector<8x384xf32>
    %349 = arith.negf %348 : vector<8x384xf32>
    %350 = math.exp %349 : vector<8x384xf32>
    %cst_77 = arith.constant 1.000000e+00 : f32
    %351 = vector.broadcast %cst_77 : f32 to vector<8x384xf32>
    %352 = arith.addf %351, %350 : vector<8x384xf32>
    %353 = arith.divf %351, %352 : vector<8x384xf32>
    %354 = vector.extract_strided_slice %353 {offsets = [0, 0], sizes = [8, 128], strides = [1, 1]} : vector<8x384xf32> to vector<8x128xf32>
    %355 = vector.extract_strided_slice %353 {offsets = [0, 128], sizes = [8, 128], strides = [1, 1]} : vector<8x384xf32> to vector<8x128xf32>
    %356 = vector.extract_strided_slice %353 {offsets = [0, 256], sizes = [8, 128], strides = [1, 1]} : vector<8x384xf32> to vector<8x128xf32>
    %357 = vector.extract_strided_slice %347 {offsets = [0, 384], sizes = [8, 128], strides = [1, 1]} : vector<8x512xf32> to vector<8x128xf32>
    %358 = math.tanh %357 : vector<8x128xf32>
    %359 = arith.mulf %355, %319 : vector<8x128xf32>
    %360 = arith.mulf %354, %358 : vector<8x128xf32>
    %361 = arith.addf %359, %360 : vector<8x128xf32>
    %362 = math.tanh %361 : vector<8x128xf32>
    %363 = arith.mulf %356, %362 : vector<8x128xf32>
    %c0_78 = arith.constant 0 : index
    %c0_79 = arith.constant 0 : index
    %c0_80 = arith.constant 0 : index
    %364 = vector.load %arg12[%c0_78, %c0_79, %c0_80] : memref<2x8x128xf32, #tpu.memory_space<vmem>>, vector<1x8x128xf32>
    %365 = vector.shape_cast %364 : vector<1x8x128xf32> to vector<8x128xf32>
    %366 = vector.shape_cast %340 : vector<8x128xf32> to vector<1x8x128xf32>
    tpu.vector_store %arg12[%c0_78, %c0_79, %c0_80], %366 {strides = array<i32>} : memref<2x8x128xf32, #tpu.memory_space<vmem>>, vector<1x8x128xf32>,
    %c0_81 = arith.constant 0 : index
    %c0_82 = arith.constant 0 : index
    %c0_83 = arith.constant 0 : index
    %367 = vector.load %arg13[%c0_81, %c0_82, %c0_83] : memref<2x8x128xf32, #tpu.memory_space<vmem>>, vector<1x8x128xf32>
    %368 = vector.shape_cast %367 : vector<1x8x128xf32> to vector<8x128xf32>
    %369 = vector.shape_cast %338 : vector<8x128xf32> to vector<1x8x128xf32>
    tpu.vector_store %arg13[%c0_81, %c0_82, %c0_83], %369 {strides = array<i32>} : memref<2x8x128xf32, #tpu.memory_space<vmem>>, vector<1x8x128xf32>,
    %c1_84 = arith.constant 1 : index
    %c0_85 = arith.constant 0 : index
    %c0_86 = arith.constant 0 : index
    %370 = vector.load %arg12[%c1_84, %c0_85, %c0_86] : memref<2x8x128xf32, #tpu.memory_space<vmem>>, vector<1x8x128xf32>
    %371 = vector.shape_cast %370 : vector<1x8x128xf32> to vector<8x128xf32>
    %372 = vector.shape_cast %363 : vector<8x128xf32> to vector<1x8x128xf32>
    tpu.vector_store %arg12[%c1_84, %c0_85, %c0_86], %372 {strides = array<i32>} : memref<2x8x128xf32, #tpu.memory_space<vmem>>, vector<1x8x128xf32>,
    %c1_87 = arith.constant 1 : index
    %c0_88 = arith.constant 0 : index
    %c0_89 = arith.constant 0 : index
    %373 = vector.load %arg13[%c1_87, %c0_88, %c0_89] : memref<2x8x128xf32, #tpu.memory_space<vmem>>, vector<1x8x128xf32>
    %374 = vector.shape_cast %373 : vector<1x8x128xf32> to vector<8x128xf32>
    %375 = vector.shape_cast %361 : vector<8x128xf32> to vector<1x8x128xf32>
    tpu.vector_store %arg13[%c1_87, %c0_88, %c0_89], %375 {strides = array<i32>} : memref<2x8x128xf32, #tpu.memory_space<vmem>>, vector<1x8x128xf32>,
    %cst_90 = arith.constant 0.000000e+00 : f32
    %376 = vector.broadcast %cst_90 : f32 to vector<8x128xf32>
    %377 = arith.maximumf %363, %376 : vector<8x128xf32>
    %378 = arith.truncf %377 : vector<8x128xf32> to vector<8x128xbf16>
    %c0_91 = arith.constant 0 : index
    %c0_92 = arith.constant 0 : index
    %379 = vector.load %arg7[%c0_91, %c0_92] : memref<128x128xbf16, #tpu.memory_space<vmem>>, vector<128x128xbf16>
    %cst_93 = arith.constant dense<0.000000e+00> : vector<8x128xf32>
    %380 = tpu.matmul %378, %379, %cst_93 {dimension_numbers = #tpu.dot_dimension_numbers<[1], [0], [0], [1], [0, 0, 1, 1], [], []>} : vector<8x128xbf16>, vector<128x128xbf16>, vector<8x128xf32> -> vector<8x128xf32>
    %c0_94 = arith.constant 0 : index
    %c0_95 = arith.constant 0 : index
    %381 = vector.load %arg8[%c0_94, %c0_95] : memref<1x128xf32, #tpu.memory_space<vmem>>, vector<1x128xf32>
    %382 = vector.broadcast %381 : vector<1x128xf32> to vector<8x128xf32>
    %383 = arith.addf %380, %382 : vector<8x128xf32>
    %c0_96 = arith.constant 0 : index
    %c0_97 = arith.constant 0 : index
    %384 = vector.load %arg11[%c0_96, %c0_97] : memref<8x128xf32, #tpu.memory_space<vmem>>, vector<8x128xf32>
    tpu.vector_store %arg11[%c0_96, %c0_97], %383 {strides = array<i32>} : memref<8x128xf32, #tpu.memory_space<vmem>>, vector<8x128xf32>,
    return
  }
}

</mosaic_0001>

<llo_original>
// kernel: classify_forward.1
$region0: #{classify_forward.1}
  #allocation0 [shape = 'u32[]', space=smem, size = 0x4, offset = 0x4, fixed_abs, tag = 'smem constant byte address 0x4 - core index']
  #allocation1 [shape = 'u32[144,128]{1,0:T(1,128)}', space=vmem, size = 0x12000, scoped, tag = 'internal scratch']
  #allocation2 [shape = 'f32[64,512]{1,0:T(8,128)}', space=vmem, size = 0x20000, scoped, tag = 'scratch operand']
  %s0 = inlined_call_operand.vmem [shape: f32[64,6], index: 0, kind: input, shape index: {}]
  %s1 = inlined_call_operand.vmem [shape: f32[6,32], index: 1, kind: input, shape index: {}]
  %s2 = inlined_call_operand.vmem [shape: f32[1,32], index: 2, kind: input, shape index: {}]
  %s3 = inlined_call_operand.vmem [shape: bf16[32,512], index: 3, kind: input, shape index: {}]
  %s4 = inlined_call_operand.vmem [shape: f32[1,512], index: 4, kind: input, shape index: {}]
  %s5 = inlined_call_operand.hbm [shape: bf16[256,1024], index: 5, kind: input, shape index: {}]
  %s6 = inlined_call_operand.vmem [shape: f32[1,512], index: 6, kind: input, shape index: {}]
  %s7 = inlined_call_operand.vmem [shape: bf16[128,128], index: 7, kind: input, shape index: {}]
  %s8 = inlined_call_operand.vmem [shape: f32[1,128], index: 8, kind: input, shape index: {}]
  %s9 = inlined_call_operand.vmem [shape: f32[2,8,128], index: 9, kind: input, shape index: {}, may-alias: {9,12}]
  %s10 = inlined_call_operand.vmem [shape: f32[2,8,128], index: 10, kind: input, shape index: {}, may-alias: {10,13}]
  %s11 = inlined_call_operand.vmem [shape: f32[8,128], index: 11, kind: output, shape index: {0}]
  %s12 = inlined_call_operand.vmem [shape: f32[2,8,128], index: 12, kind: output, shape index: {1}, may-alias: {9,12}]
  %s13 = inlined_call_operand.vmem [shape: f32[2,8,128], index: 13, kind: output, shape index: {2}, may-alias: {10,13}]
  %14 = xla_tuple %s11, %s12, %s13
  %s15 = sld [smem:[#allocation0]]
  $region74: #{classify_forward.1} parent=0
    _
  %s17 = ssub.s32 1, %s15
  %s18 = scalar_select 0, %s17, %s15
  $region1: #{classify_forward.1} parent=0
    #allocation3 [shape = 'u8[524288]{0}', space=vmem, size = 0x80000, scoped, tag = 'input window, operand 5, single buffered']
    #allocation4 [shape = 's32[1]{0}', space=sflag, size = 0x4, scoped, tag = 'scoped memory for classify_forward.1']
    %19 = vsyncpa [#allocation4], 0
    // Predicated region
    $region2: #{classify_forward.1} parent=1 // pred_check
      _
    $region3: #{classify_forward.1} parent=1 // pred_check_branch
      %21 = sbr.rel (0) target = $region5
    $region4: #{classify_forward.1} parent=1 // pred_region
      _
    $region5: #{classify_forward.1} parent=1 // pred_fallthru
      _
    // Predicated region
    $region6: #{classify_forward.1} parent=1 // pred_check
      _
    $region7: #{classify_forward.1} parent=1 // pred_check_branch
      %23 = sbr.rel (0) target = $region9
    $region8: #{classify_forward.1} parent=1 // pred_region
      _
    $region9: #{classify_forward.1} parent=1 // pred_fallthru
      _
    // Predicated region
    $region10: #{classify_forward.1} parent=1 // pred_check
      _
    $region11: #{classify_forward.1} parent=1 // pred_check_branch
      %25 = sbr.rel (0) target = $region13
    $region12: #{classify_forward.1} parent=1 // pred_region
      _
    $region13: #{classify_forward.1} parent=1 // pred_fallthru
      _
    // Predicated region
    $region14: #{classify_forward.1} parent=1 // pred_check
      _
    $region15: #{classify_forward.1} parent=1 // pred_check_branch
      %27 = sbr.rel (0) target = $region17
    $region16: #{classify_forward.1} parent=1 // pred_region
      _
    $region17: #{classify_forward.1} parent=1 // pred_fallthru
      _
    // Predicated region
    $region18: #{classify_forward.1} parent=1 // pred_check
      _
    $region19: #{classify_forward.1} parent=1 // pred_check_branch
      %29 = sbr.rel (0) target = $region21
    $region20: #{classify_forward.1} parent=1 // pred_region
      _
    $region21: #{classify_forward.1} parent=1 // pred_fallthru
      _
    // Predicated region
    $region22: #{classify_forward.1} parent=1 // pred_check
      _
    $region23: #{classify_forward.1} parent=1 // pred_check_branch
      %31 = sbr.rel (0) target = $region25
    $region24: #{classify_forward.1} parent=1 // pred_region
      %s33 = ssub.s32 16384, 16384
      %34 = vsyncadd [#allocation4], %s33
      %s35 = sshll.u32 [#allocation3], 4
      %s36 = int_to_ptr.vmem [resolvable:$true] %s35
      %41 = dma.hbm_to_vmem [thread:$0]  %s5, 16384, %s36, [#allocation4], 512, 512, 32
    $region25: #{classify_forward.1} parent=1 // pred_fallthru
      _
    // Predicated region
    $region26: #{classify_forward.1} parent=1 // pred_check
      _
    $region27: #{classify_forward.1} parent=1 // pred_check_branch
      %43 = sbr.rel (0) target = $region29
    $region28: #{classify_forward.1} parent=1 // pred_region
      _
    $region29: #{classify_forward.1} parent=1 // pred_fallthru
      _
    // Predicated region
    $region30: #{classify_forward.1} parent=1 // pred_check
      _
    $region31: #{classify_forward.1} parent=1 // pred_check_branch
      %45 = sbr.rel (0) target = $region33
    $region32: #{classify_forward.1} parent=1 // pred_region
      _
    $region33: #{classify_forward.1} parent=1 // pred_fallthru
      _
    // Predicated region
    $region34: #{classify_forward.1} parent=1 // pred_check
      _
    $region35: #{classify_forward.1} parent=1 // pred_check_branch
      %47 = sbr.rel (0) target = $region37
    $region36: #{classify_forward.1} parent=1 // pred_region
      _
    $region37: #{classify_forward.1} parent=1 // pred_fallthru
      _
    // Predicated region
    $region38: #{classify_forward.1} parent=1 // pred_check
      _
    $region39: #{classify_forward.1} parent=1 // pred_check_branch
      %49 = sbr.rel (0) target = $region41
    $region40: #{classify_forward.1} parent=1 // pred_region
      _
    $region41: #{classify_forward.1} parent=1 // pred_fallthru
      _
    // Predicated region
    $region42: #{classify_forward.1} parent=1 // pred_check
      _
    $region43: #{classify_forward.1} parent=1 // pred_check_branch
      %51 = sbr.rel (0) target = $region45
    $region44: #{classify_forward.1} parent=1 // pred_region
      _
    $region45: #{classify_forward.1} parent=1 // pred_fallthru
      _
    // Predicated region
    $region46: #{classify_forward.1} parent=1 // pred_check
      _
    $region47: #{classify_forward.1} parent=1 // pred_check_branch
      %53 = sbr.rel (0) target = $region49
    $region48: #{classify_forward.1} parent=1 // pred_region
      %54 = dma.done [#allocation4], 16384
    $region49: #{classify_forward.1} parent=1 // pred_fallthru
      _
    %v56 = vld [vmem:[%s0] sm:$0xff]
    %v57 = vld [vmem:[%s0 + $0x8] sm:$0xff]
    %v58 = vld [vmem:[%s0 + $0x10] sm:$0xff]
    %v59 = vld [vmem:[%s0 + $0x18] sm:$0xff]
    %v60 = vld [vmem:[%s0 + $0x20] sm:$0xff]
    %v61 = vld [vmem:[%s0 + $0x28] sm:$0xff]
    %v62 = vld [vmem:[%s0 + $0x30] sm:$0xff]
    %v63 = vld [vmem:[%s0 + $0x38] sm:$0xff]
    %v64 = vld [vmem:[%s1] sm:$0x3f]
    %v65 = vld [vmem:[%s2] sm:$0x1]
    %v67 = vlaneseq
    %v68 = vshrl.u32 %v67, 7
    %v69 = vsub.s32 0, %v68
    %v70 = vrot.slane %v65, %v69
    %vm72 = vcmask 48128
    %v74 = vsel %vm72, %v56, 0
    %v77 = vsel %vm72, %v57, 0
    %v80 = vsel %vm72, %v58, 0
    %v83 = vsel %vm72, %v59, 0
    %v86 = vsel %vm72, %v60, 0
    %v89 = vsel %vm72, %v61, 0
    %v92 = vsel %vm72, %v62, 0
    %v95 = vsel %vm72, %v63, 0
    %vm97 = vcmask 1045504
    %v99 = vsel %vm97, %v64, 0
    %101 = vmatprep.subr.mxu0 0.0
    %102 = vmatpush1.msra.mxu0 %v99
    %103 = vmatprep.subr.mxu0 0.0
    %104 = vmatpush1.msra.mxu0 0.0
    %105 = vmatprep.subr.mxu0 0.0
    %106 = vmatpush1.msra.mxu0 0.0
    %107 = vmatprep.subr.mxu0 0.0
    %108 = vmatpush1.msra.mxu0 0.0
    %109 = vmatprep.subr.mxu0 0.0
    %110 = vmatpush1.msra.mxu0 0.0
    %111 = vmatprep.subr.mxu0 0.0
    %112 = vmatpush1.msra.mxu0 0.0
    %113 = vmatprep.subr.mxu0 0.0
    %114 = vmatpush1.msra.mxu0 0.0
    %115 = vmatprep.subr.mxu0 0.0
    %116 = vmatpush1.msra.mxu0 0.0
    %117 = vmatprep.subr.mxu0 0.0
    %118 = vmatpush1.msra.mxu0 0.0
    %119 = vmatprep.subr.mxu0 0.0
    %120 = vmatpush1.msra.mxu0 0.0
    %121 = vmatprep.subr.mxu0 0.0
    %122 = vmatpush1.msra.mxu0 0.0
    %123 = vmatprep.subr.mxu0 0.0
    %124 = vmatpush1.msra.mxu0 0.0
    %125 = vmatprep.subr.mxu0 0.0
    %126 = vmatpush1.msra.mxu0 0.0
    %127 = vmatprep.subr.mxu0 0.0
    %128 = vmatpush1.msra.mxu0 0.0
    %129 = vmatprep.subr.mxu0 0.0
    %130 = vmatpush1.msra.mxu0 0.0
    %131 = vmatprep.subr.mxu0 0.0
    %132 = vmatpush1.msra.mxu0 0.0
    %133 = vmatprep.subr.mxu0 0.0
    %134 = vmatpush1.msra.mxu0 0.0
    %135 = vmatprep.subr.mxu0 0.0
    %136 = vmatpush1.msra.mxu0 0.0
    %137 = vmatprep.subr.mxu0 0.0
    %138 = vmatpush1.msra.mxu0 0.0
    %139 = vmatprep.subr.mxu0 0.0
    %140 = vmatpush1.msra.mxu0 0.0
    %141 = vmatprep.subr.mxu0 0.0
    %142 = vmatpush1.msra.mxu0 0.0
    %143 = vmatprep.subr.mxu0 0.0
    %144 = vmatpush1.msra.mxu0 0.0
    %145 = vmatprep.subr.mxu0 0.0
    %146 = vmatpush1.msra.mxu0 0.0
    %147 = vmatprep.subr.mxu0 0.0
    %148 = vmatpush1.msra.mxu0 0.0
    %149 = vmatprep.subr.mxu0 0.0
    %150 = vmatpush1.msra.mxu0 0.0
    %151 = vmatprep.subr.mxu0 0.0
    %152 = vmatpush1.msra.mxu0 0.0
    %153 = vmatprep.subr.mxu0 0.0
    %154 = vmatpush1.msra.mxu0 0.0
    %155 = vmatprep.subr.mxu0 0.0
    %156 = vmatpush1.msra.mxu0 0.0
    %157 = vmatprep.subr.mxu0 0.0
    %158 = vmatpush1.msra.mxu0 0.0
    %159 = vmatprep.subr.mxu0 0.0
    %160 = vmatpush1.msra.mxu0 0.0
    %161 = vmatprep.subr.mxu0 0.0
    %162 = vmatpush1.msra.mxu0 0.0
    %163 = vmatprep.subr.mxu0 0.0
    %164 = vmatpush1.msra.mxu0 0.0
    %165 = vmatprep.mubr.f32.mxu0 0.0
    %166 = vmatmul.mubr.f32.gmra.mrb[0].mxu0 %v74
    %v167 = vpop.f32.mrb[0].mxu0
    %v168 = vadd.f32 %v70, %v167
    %v169 = vpop.f32.mrb[0].mxu0
    %170 = vmatprep.mubr.f32.mxu0 0.0
    %171 = vmatmul.mubr.f32.gmra.mrb[0].mxu0 %v77
    %v172 = vpop.f32.mrb[0].mxu0
    %v173 = vadd.f32 %v70, %v172
    %v174 = vpop.f32.mrb[0].mxu0
    %175 = vmatprep.mubr.f32.mxu0 0.0
    %176 = vmatmul.mubr.f32.gmra.mrb[0].mxu0 %v80
    %v177 = vpop.f32.mrb[0].mxu0
    %v178 = vadd.f32 %v70, %v177
    %v179 = vpop.f32.mrb[0].mxu0
    %180 = vmatprep.mubr.f32.mxu0 0.0
    %181 = vmatmul.mubr.f32.gmra.mrb[0].mxu0 %v83
    %v182 = vpop.f32.mrb[0].mxu0
    %v183 = vadd.f32 %v70, %v182
    %v184 = vpop.f32.mrb[0].mxu0
    %185 = vmatprep.mubr.f32.mxu0 0.0
    %186 = vmatmul.mubr.f32.gmra.mrb[0].mxu0 %v86
    %v187 = vpop.f32.mrb[0].mxu0
    %v188 = vadd.f32 %v70, %v187
    %v189 = vpop.f32.mrb[0].mxu0
    %190 = vmatprep.mubr.f32.mxu0 0.0
    %191 = vmatmul.mubr.f32.gmra.mrb[0].mxu0 %v89
    %v192 = vpop.f32.mrb[0].mxu0
    %v193 = vadd.f32 %v70, %v192
    %v194 = vpop.f32.mrb[0].mxu0
    %195 = vmatprep.mubr.f32.mxu0 0.0
    %196 = vmatmul.mubr.f32.gmra.mrb[0].mxu0 %v92
    %v197 = vpop.f32.mrb[0].mxu0
    %v198 = vadd.f32 %v70, %v197
    %v199 = vpop.f32.mrb[0].mxu0
    %200 = vmatprep.mubr.f32.mxu0 0.0
    %201 = vmatmul.mubr.f32.gmra.mrb[0].mxu0 %v95
    %v202 = vpop.f32.mrb[0].mxu0
    %v203 = vadd.f32 %v70, %v202
    %v204 = vpop.f32.mrb[0].mxu0
    %205 = vdwg.mxu0
    %v206 = vmax.f32 %v168, 0.0
    %v207 = vmax.f32 %v173, 0.0
    %v208 = vmax.f32 %v178, 0.0
    %v209 = vmax.f32 %v183, 0.0
    %v210 = vmax.f32 %v188, 0.0
    %v211 = vmax.f32 %v193, 0.0
    %v212 = vmax.f32 %v198, 0.0
    %v213 = vmax.f32 %v203, 0.0
    %v214 = vpack.c.bf16 %v207, %v206
    %v215 = vpack.c.bf16 %v209, %v208
    %v216 = vpack.c.bf16 %v211, %v210
    %v217 = vpack.c.bf16 %v213, %v212
    %v218 = vld [vmem:[%s3] sm:$0xff]
    %v219 = vld [vmem:[%s3 + $0x8] sm:$0xff]
    %v220 = vld [vmem:[%s3 + $0x10] sm:$0xff]
    %v221 = vld [vmem:[%s3 + $0x18] sm:$0xff]
    %v222 = vld [vmem:[%s3 + $0x20] sm:$0xff]
    %v223 = vld [vmem:[%s3 + $0x28] sm:$0xff]
    %v224 = vld [vmem:[%s3 + $0x30] sm:$0xff]
    %v225 = vld [vmem:[%s3 + $0x38] sm:$0xff]
    %v226 = vld [vmem:[%s4] sm:$0xf]
    %v228 = vlaneseq
    %v229 = vshrl.u32 %v228, 7
    %v230 = vsub.s32 0, %v229
    %v231 = vrot.slane %v226, %v230
    %v232 = vlaneseq
    %v233 = vshrl.u32 %v232, 7
    %v234 = vsub.s32 1, %v233
    %v235 = vrot.slane %v226, %v234
    %v236 = vlaneseq
    %v237 = vshrl.u32 %v236, 7
    %v238 = vsub.s32 2, %v237
    %v239 = vrot.slane %v226, %v238
    %v240 = vlaneseq
    %v241 = vshrl.u32 %v240, 7
    %v242 = vsub.s32 3, %v241
    %v243 = vrot.slane %v226, %v242
    %v256 = vunpack.c.l.b16 %v218
    %v257 = vunpack.c.h.b16 %v218
    %v258 = vunpack.c.l.b16 %v219
    %v259 = vunpack.c.h.b16 %v219
    %v260 = vunpack.c.l.b16 %v220
    %v261 = vunpack.c.h.b16 %v220
    %v262 = vunpack.c.l.b16 %v221
    %v263 = vunpack.c.h.b16 %v221
    %v264 = vunpack.c.l.b16 %v222
    %v265 = vunpack.c.h.b16 %v222
    %v266 = vunpack.c.l.b16 %v223
    %v267 = vunpack.c.h.b16 %v223
    %v268 = vunpack.c.l.b16 %v224
    %v269 = vunpack.c.h.b16 %v224
    %v270 = vunpack.c.l.b16 %v225
    %v271 = vunpack.c.h.b16 %v225
    %v272 = vpack.c.b16 %v260, %v256
    %v273 = vpack.c.b16 %v261, %v257
    %v274 = vpack.c.b16 %v262, %v258
    %v275 = vpack.c.b16 %v263, %v259
    %v276 = vpack.c.b16 %v268, %v264
    %v277 = vpack.c.b16 %v269, %v265
    %v278 = vpack.c.b16 %v270, %v266
    %v279 = vpack.c.b16 %v271, %v267
    %vm288 = vcmask 261120
    %v290 = vsel %vm288, %v214, 0
    %v293 = vsel %vm288, %v215, 0
    %v296 = vsel %vm288, %v216, 0
    %v299 = vsel %vm288, %v217, 0
    %301 = vmatprep.subr.bf16.mxu0 %v273
    %302 = vmatpush1.bf16.msra.mxu0 %v272
    %303 = vmatprep.subr.bf16.mxu0 %v277
    %304 = vmatpush1.bf16.msra.mxu0 %v276
    %305 = vmatprep.subr.bf16.mxu0 0
    %306 = vmatpush1.bf16.msra.mxu0 0
    %307 = vmatprep.subr.bf16.mxu0 0
    %308 = vmatpush1.bf16.msra.mxu0 0
    %309 = vmatprep.subr.bf16.mxu0 0
    %310 = vmatpush1.bf16.msra.mxu0 0
    %311 = vmatprep.subr.bf16.mxu0 0
    %312 = vmatpush1.bf16.msra.mxu0 0
    %313 = vmatprep.subr.bf16.mxu0 0
    %314 = vmatpush1.bf16.msra.mxu0 0
    %315 = vmatprep.subr.bf16.mxu0 0
    %316 = vmatpush1.bf16.msra.mxu0 0
    %317 = vmatprep.subr.bf16.mxu0 0
    %318 = vmatpush1.bf16.msra.mxu0 0
    %319 = vmatprep.subr.bf16.mxu0 0
    %320 = vmatpush1.bf16.msra.mxu0 0
    %321 = vmatprep.subr.bf16.mxu0 0
    %322 = vmatpush1.bf16.msra.mxu0 0
    %323 = vmatprep.subr.bf16.mxu0 0
    %324 = vmatpush1.bf16.msra.mxu0 0
    %325 = vmatprep.subr.bf16.mxu0 0
    %326 = vmatpush1.bf16.msra.mxu0 0
    %327 = vmatprep.subr.bf16.mxu0 0
    %328 = vmatpush1.bf16.msra.mxu0 0
    %329 = vmatprep.subr.bf16.mxu0 0
    %330 = vmatpush1.bf16.msra.mxu0 0
    %331 = vmatprep.subr.bf16.mxu0 0
    %332 = vmatpush1.bf16.msra.mxu0 0
    %333 = vmatprep.mubr.bf16.mxu0 0
    %334 = vmatmul.mubr.bf16.gmra.mrb[0].mxu0 %v290
    %v335 = vpop.f32.mrb[0].mxu0
    %v336 = vadd.f32 %v231, %v335
    %v337 = vpop.f32.mrb[0].mxu0
    %v338 = vadd.f32 %v235, %v337
    %v339 = vpop.f32.mrb[0].mxu0
    %v340 = vadd.f32 %v231, %v339
    %v341 = vpop.f32.mrb[0].mxu0
    %v342 = vadd.f32 %v235, %v341
    %343 = vmatprep.mubr.bf16.mxu0 0
    %344 = vmatmul.mubr.bf16.gmra.mrb[0].mxu0 %v293
    %v345 = vpop.f32.mrb[0].mxu0
    %v346 = vadd.f32 %v231, %v345
    %v347 = vpop.f32.mrb[0].mxu0
    %v348 = vadd.f32 %v235, %v347
    %v349 = vpop.f32.mrb[0].mxu0
    %v350 = vadd.f32 %v231, %v349
    %v351 = vpop.f32.mrb[0].mxu0
    %v352 = vadd.f32 %v235, %v351
    %353 = vmatprep.mubr.bf16.mxu0 0
    %354 = vmatmul.mubr.bf16.gmra.mrb[0].mxu0 %v296
    %v355 = vpop.f32.mrb[0].mxu0
    %v356 = vadd.f32 %v231, %v355
    %v357 = vpop.f32.mrb[0].mxu0
    %v358 = vadd.f32 %v235, %v357
    %v359 = vpop.f32.mrb[0].mxu0
    %v360 = vadd.f32 %v231, %v359
    %v361 = vpop.f32.mrb[0].mxu0
    %v362 = vadd.f32 %v235, %v361
    %363 = vmatprep.mubr.bf16.mxu0 0
    %364 = vmatmul.mubr.bf16.gmra.mrb[0].mxu0 %v299
    %v365 = vpop.f32.mrb[0].mxu0
    %v366 = vadd.f32 %v231, %v365
    %v367 = vpop.f32.mrb[0].mxu0
    %v368 = vadd.f32 %v235, %v367
    %v369 = vpop.f32.mrb[0].mxu0
    %v370 = vadd.f32 %v231, %v369
    %v371 = vpop.f32.mrb[0].mxu0
    %v372 = vadd.f32 %v235, %v371
    %373 = vdwg.mxu0
    %374 = vmatprep.subr.bf16.mxu0 %v275
    %375 = vmatpush1.bf16.msra.mxu0 %v274
    %376 = vmatprep.subr.bf16.mxu0 %v279
    %377 = vmatpush1.bf16.msra.mxu0 %v278
    %378 = vmatprep.subr.bf16.mxu0 0
    %379 = vmatpush1.bf16.msra.mxu0 0
    %380 = vmatprep.subr.bf16.mxu0 0
    %381 = vmatpush1.bf16.msra.mxu0 0
    %382 = vmatprep.subr.bf16.mxu0 0
    %383 = vmatpush1.bf16.msra.mxu0 0
    %384 = vmatprep.subr.bf16.mxu0 0
    %385 = vmatpush1.bf16.msra.mxu0 0
    %386 = vmatprep.subr.bf16.mxu0 0
    %387 = vmatpush1.bf16.msra.mxu0 0
    %388 = vmatprep.subr.bf16.mxu0 0
    %389 = vmatpush1.bf16.msra.mxu0 0
    %390 = vmatprep.subr.bf16.mxu0 0
    %391 = vmatpush1.bf16.msra.mxu0 0
    %392 = vmatprep.subr.bf16.mxu0 0
    %393 = vmatpush1.bf16.msra.mxu0 0
    %394 = vmatprep.subr.bf16.mxu0 0
    %395 = vmatpush1.bf16.msra.mxu0 0
    %396 = vmatprep.subr.bf16.mxu0 0
    %397 = vmatpush1.bf16.msra.mxu0 0
    %398 = vmatprep.subr.bf16.mxu0 0
    %399 = vmatpush1.bf16.msra.mxu0 0
    %400 = vmatprep.subr.bf16.mxu0 0
    %401 = vmatpush1.bf16.msra.mxu0 0
    %402 = vmatprep.subr.bf16.mxu0 0
    %403 = vmatpush1.bf16.msra.mxu0 0
    %404 = vmatprep.subr.bf16.mxu0 0
    %405 = vmatpush1.bf16.msra.mxu0 0
    %406 = vmatprep.mubr.bf16.mxu0 0
    %407 = vmatmul.mubr.bf16.gmra.mrb[0].mxu0 %v290
    %v408 = vpop.f32.mrb[0].mxu0
    %v409 = vadd.f32 %v239, %v408
    %v410 = vpop.f32.mrb[0].mxu0
    %v411 = vadd.f32 %v243, %v410
    %v412 = vpop.f32.mrb[0].mxu0
    %v413 = vadd.f32 %v239, %v412
    %v414 = vpop.f32.mrb[0].mxu0
    %v415 = vadd.f32 %v243, %v414
    %416 = vmatprep.mubr.bf16.mxu0 0
    %417 = vmatmul.mubr.bf16.gmra.mrb[0].mxu0 %v293
    %v418 = vpop.f32.mrb[0].mxu0
    %v419 = vadd.f32 %v239, %v418
    %v420 = vpop.f32.mrb[0].mxu0
    %v421 = vadd.f32 %v243, %v420
    %v422 = vpop.f32.mrb[0].mxu0
    %v423 = vadd.f32 %v239, %v422
    %v424 = vpop.f32.mrb[0].mxu0
    %v425 = vadd.f32 %v243, %v424
    %426 = vmatprep.mubr.bf16.mxu0 0
    %427 = vmatmul.mubr.bf16.gmra.mrb[0].mxu0 %v296
    %v428 = vpop.f32.mrb[0].mxu0
    %v429 = vadd.f32 %v239, %v428
    %v430 = vpop.f32.mrb[0].mxu0
    %v431 = vadd.f32 %v243, %v430
    %v432 = vpop.f32.mrb[0].mxu0
    %v433 = vadd.f32 %v239, %v432
    %v434 = vpop.f32.mrb[0].mxu0
    %v435 = vadd.f32 %v243, %v434
    %436 = vmatprep.mubr.bf16.mxu0 0
    %437 = vmatmul.mubr.bf16.gmra.mrb[0].mxu0 %v299
    %v438 = vpop.f32.mrb[0].mxu0
    %v439 = vadd.f32 %v239, %v438
    %v440 = vpop.f32.mrb[0].mxu0
    %v441 = vadd.f32 %v243, %v440
    %v442 = vpop.f32.mrb[0].mxu0
    %v443 = vadd.f32 %v239, %v442
    %v444 = vpop.f32.mrb[0].mxu0
    %v445 = vadd.f32 %v243, %v444
    %446 = vdwg.mxu0
    %447 = vst [vmem:[#allocation2] sm:$0xff] %v336
    %448 = vst [vmem:[#allocation2 + $0x8] sm:$0xff] %v338
    %449 = vst [vmem:[#allocation2 + $0x10] sm:$0xff] %v409
    %450 = vst [vmem:[#allocation2 + $0x18] sm:$0xff] %v411
    %451 = vst [vmem:[#allocation2 + $0x20] sm:$0xff] %v340
    %452 = vst [vmem:[#allocation2 + $0x28] sm:$0xff] %v342
    %453 = vst [vmem:[#allocation2 + $0x30] sm:$0xff] %v413
    %454 = vst [vmem:[#allocation2 + $0x38] sm:$0xff] %v415
    %455 = vst [vmem:[#allocation2 + $0x40] sm:$0xff] %v346
    %456 = vst [vmem:[#allocation2 + $0x48] sm:$0xff] %v348
    %457 = vst [vmem:[#allocation2 + $0x50] sm:$0xff] %v419
    %458 = vst [vmem:[#allocation2 + $0x58] sm:$0xff] %v421
    %459 = vst [vmem:[#allocation2 + $0x60] sm:$0xff] %v350
    %460 = vst [vmem:[#allocation2 + $0x68] sm:$0xff] %v352
    %461 = vst [vmem:[#allocation2 + $0x70] sm:$0xff] %v423
    %462 = vst [vmem:[#allocation2 + $0x78] sm:$0xff] %v425
    %463 = vst [vmem:[#allocation2 + $0x80] sm:$0xff] %v356
    %464 = vst [vmem:[#allocation2 + $0x88] sm:$0xff] %v358
    %465 = vst [vmem:[#allocation2 + $0x90] sm:$0xff] %v429
    %466 = vst [vmem:[#allocation2 + $0x98] sm:$0xff] %v431
    %467 = vst [vmem:[#allocation2 + $0xa0] sm:$0xff] %v360
    %468 = vst [vmem:[#allocation2 + $0xa8] sm:$0xff] %v362
    %469 = vst [vmem:[#allocation2 + $0xb0] sm:$0xff] %v433
    %470 = vst [vmem:[#allocation2 + $0xb8] sm:$0xff] %v435
    %471 = vst [vmem:[#allocation2 + $0xc0] sm:$0xff] %v366
    %472 = vst [vmem:[#allocation2 + $0xc8] sm:$0xff] %v368
    %473 = vst [vmem:[#allocation2 + $0xd0] sm:$0xff] %v439
    %474 = vst [vmem:[#allocation2 + $0xd8] sm:$0xff] %v441
    %475 = vst [vmem:[#allocation2 + $0xe0] sm:$0xff] %v370
    %476 = vst [vmem:[#allocation2 + $0xe8] sm:$0xff] %v372
    %477 = vst [vmem:[#allocation2 + $0xf0] sm:$0xff] %v443
    %478 = vst [vmem:[#allocation2 + $0xf8] sm:$0xff] %v445
    %v479 = vld [vmem:[%s9] sm:$0xff]
    %v480 = vld [vmem:[%s10] sm:$0xff]
    %s481 = scalar_lea.vmem %s9, 8
    %v482 = vld [vmem:[%s481] sm:$0xff]
    %s483 = scalar_lea.vmem %s10, 8
    %v484 = vld [vmem:[%s483] sm:$0xff]
    %v485 = vld [vmem:[%s6] sm:$0xf]
    %v486 = vpack.c.bf16 %v479, %v479
    %v487 = vpack.c.bf16 %v482, %v482
    %v488 = vld [vmem:[#allocation3] sm:$0xff]
    %v489 = vld [vmem:[#allocation3 + $0x8] sm:$0xff]
    %v490 = vld [vmem:[#allocation3 + $0x10] sm:$0xff]
    %v491 = vld [vmem:[#allocation3 + $0x18] sm:$0xff]
    %v492 = vld [vmem:[#allocation3 + $0x20] sm:$0xff]
    %v493 = vld [vmem:[#allocation3 + $0x28] sm:$0xff]
    %v494 = vld [vmem:[#allocation3 + $0x30] sm:$0xff]
    %v495 = vld [vmem:[#allocation3 + $0x38] sm:$0xff]
    %v496 = vld [vmem:[#allocation3 + $0x40] sm:$0xff]
    %v497 = vld [vmem:[#allocation3 + $0x48] sm:$0xff]
    %v498 = vld [vmem:[#allocation3 + $0x50] sm:$0xff]
    %v499 = vld [vmem:[#allocation3 + $0x58] sm:$0xff]
    %v500 = vld [vmem:[#allocation3 + $0x60] sm:$0xff]
    %v501 = vld [vmem:[#allocation3 + $0x68] sm:$0xff]
    %v502 = vld [vmem:[#allocation3 + $0x70] sm:$0xff]
    %v503 = vld [vmem:[#allocation3 + $0x78] sm:$0xff]
    %v504 = vld [vmem:[#allocation3 + $0x80] sm:$0xff]
    %v505 = vld [vmem:[#allocation3 + $0x88] sm:$0xff]
    %v506 = vld [vmem:[#allocation3 + $0x90] sm:$0xff]
    %v507 = vld [vmem:[#allocation3 + $0x98] sm:$0xff]
    %v508 = vld [vmem:[#allocation3 + $0xa0] sm:$0xff]
    %v509 = vld [vmem:[#allocation3 + $0xa8] sm:$0xff]
    %v510 = vld [vmem:[#allocation3 + $0xb0] sm:$0xff]
    %v511 = vld [vmem:[#allocation3 + $0xb8] sm:$0xff]
    %v512 = vld [vmem:[#allocation3 + $0xc0] sm:$0xff]
    %v513 = vld [vmem:[#allocation3 + $0xc8] sm:$0xff]
    %v514 = vld [vmem:[#allocation3 + $0xd0] sm:$0xff]
    %v515 = vld [vmem:[#allocation3 + $0xd8] sm:$0xff]
    %v516 = vld [vmem:[#allocation3 + $0xe0] sm:$0xff]
    %v517 = vld [vmem:[#allocation3 + $0xe8] sm:$0xff]
    %v518 = vld [vmem:[#allocation3 + $0xf0] sm:$0xff]
    %v519 = vld [vmem:[#allocation3 + $0xf8] sm:$0xff]
    %v520 = vld [vmem:[#allocation3 + $0x100] sm:$0xff]
    %v521 = vld [vmem:[#allocation3 + $0x108] sm:$0xff]
    %v522 = vld [vmem:[#allocation3 + $0x110] sm:$0xff]
    %v523 = vld [vmem:[#allocation3 + $0x118] sm:$0xff]
    %v524 = vld [vmem:[#allocation3 + $0x120] sm:$0xff]
    %v525 = vld [vmem:[#allocation3 + $0x128] sm:$0xff]
    %v526 = vld [vmem:[#allocation3 + $0x130] sm:$0xff]
    %v527 = vld [vmem:[#allocation3 + $0x138] sm:$0xff]
    %v528 = vld [vmem:[#allocation3 + $0x140] sm:$0xff]
    %v529 = vld [vmem:[#allocation3 + $0x148] sm:$0xff]
    %v530 = vld [vmem:[#allocation3 + $0x150] sm:$0xff]
    %v531 = vld [vmem:[#allocation3 + $0x158] sm:$0xff]
    %v532 = vld [vmem:[#allocation3 + $0x160] sm:$0xff]
    %v533 = vld [vmem:[#allocation3 + $0x168] sm:$0xff]
    %v534 = vld [vmem:[#allocation3 + $0x170] sm:$0xff]
    %v535 = vld [vmem:[#allocation3 + $0x178] sm:$0xff]
    %v536 = vld [vmem:[#allocation3 + $0x180] sm:$0xff]
    %v537 = vld [vmem:[#allocation3 + $0x188] sm:$0xff]
    %v538 = vld [vmem:[#allocation3 + $0x190] sm:$0xff]
    %v539 = vld [vmem:[#allocation3 + $0x198] sm:$0xff]
    %v540 = vld [vmem:[#allocation3 + $0x1a0] sm:$0xff]
    %v541 = vld [vmem:[#allocation3 + $0x1a8] sm:$0xff]
    %v542 = vld [vmem:[#allocation3 + $0x1b0] sm:$0xff]
    %v543 = vld [vmem:[#allocation3 + $0x1b8] sm:$0xff]
    %v544 = vld [vmem:[#allocation3 + $0x1c0] sm:$0xff]
    %v545 = vld [vmem:[#allocation3 + $0x1c8] sm:$0xff]
    %v546 = vld [vmem:[#allocation3 + $0x1d0] sm:$0xff]
    %v547 = vld [vmem:[#allocation3 + $0x1d8] sm:$0xff]
    %v548 = vld [vmem:[#allocation3 + $0x1e0] sm:$0xff]
    %v549 = vld [vmem:[#allocation3 + $0x1e8] sm:$0xff]
    %v550 = vld [vmem:[#allocation3 + $0x1f0] sm:$0xff]
    %v551 = vld [vmem:[#allocation3 + $0x1f8] sm:$0xff]
    %v552 = vld [vmem:[#allocation3 + $0x200] sm:$0xff]
    %v553 = vld [vmem:[#allocation3 + $0x208] sm:$0xff]
    %v554 = vld [vmem:[#allocation3 + $0x210] sm:$0xff]
    %v555 = vld [vmem:[#allocation3 + $0x218] sm:$0xff]
    %v556 = vld [vmem:[#allocation3 + $0x220] sm:$0xff]
    %v557 = vld [vmem:[#allocation3 + $0x228] sm:$0xff]
    %v558 = vld [vmem:[#allocation3 + $0x230] sm:$0xff]
    %v559 = vld [vmem:[#allocation3 + $0x238] sm:$0xff]
    %v560 = vld [vmem:[#allocation3 + $0x240] sm:$0xff]
    %v561 = vld [vmem:[#allocation3 + $0x248] sm:$0xff]
    %v562 = vld [vmem:[#allocation3 + $0x250] sm:$0xff]
    %v563 = vld [vmem:[#allocation3 + $0x258] sm:$0xff]
    %v564 = vld [vmem:[#allocation3 + $0x260] sm:$0xff]
    %v565 = vld [vmem:[#allocation3 + $0x268] sm:$0xff]
    %v566 = vld [vmem:[#allocation3 + $0x270] sm:$0xff]
    %v567 = vld [vmem:[#allocation3 + $0x278] sm:$0xff]
    %v568 = vld [vmem:[#allocation3 + $0x280] sm:$0xff]
    %v569 = vld [vmem:[#allocation3 + $0x288] sm:$0xff]
    %v570 = vld [vmem:[#allocation3 + $0x290] sm:$0xff]
    %v571 = vld [vmem:[#allocation3 + $0x298] sm:$0xff]
    %v572 = vld [vmem:[#allocation3 + $0x2a0] sm:$0xff]
    %v573 = vld [vmem:[#allocation3 + $0x2a8] sm:$0xff]
    %v574 = vld [vmem:[#allocation3 + $0x2b0] sm:$0xff]
    %v575 = vld [vmem:[#allocation3 + $0x2b8] sm:$0xff]
    %v576 = vld [vmem:[#allocation3 + $0x2c0] sm:$0xff]
    %v577 = vld [vmem:[#allocation3 + $0x2c8] sm:$0xff]
    %v578 = vld [vmem:[#allocation3 + $0x2d0] sm:$0xff]
    %v579 = vld [vmem:[#allocation3 + $0x2d8] sm:$0xff]
    %v580 = vld [vmem:[#allocation3 + $0x2e0] sm:$0xff]
    %v581 = vld [vmem:[#allocation3 + $0x2e8] sm:$0xff]
    %v582 = vld [vmem:[#allocation3 + $0x2f0] sm:$0xff]
    %v583 = vld [vmem:[#allocation3 + $0x2f8] sm:$0xff]
    %v584 = vld [vmem:[#allocation3 + $0x300] sm:$0xff]
    %v585 = vld [vmem:[#allocation3 + $0x308] sm:$0xff]
    %v586 = vld [vmem:[#allocation3 + $0x310] sm:$0xff]
    %v587 = vld [vmem:[#allocation3 + $0x318] sm:$0xff]
    %v588 = vld [vmem:[#allocation3 + $0x320] sm:$0xff]
    %v589 = vld [vmem:[#allocation3 + $0x328] sm:$0xff]
    %v590 = vld [vmem:[#allocation3 + $0x330] sm:$0xff]
    %v591 = vld [vmem:[#allocation3 + $0x338] sm:$0xff]
    %v592 = vld [vmem:[#allocation3 + $0x340] sm:$0xff]
    %v593 = vld [vmem:[#allocation3 + $0x348] sm:$0xff]
    %v594 = vld [vmem:[#allocation3 + $0x350] sm:$0xff]
    %v595 = vld [vmem:[#allocation3 + $0x358] sm:$0xff]
    %v596 = vld [vmem:[#allocation3 + $0x360] sm:$0xff]
    %v597 = vld [vmem:[#allocation3 + $0x368] sm:$0xff]
    %v598 = vld [vmem:[#allocation3 + $0x370] sm:$0xff]
    %v599 = vld [vmem:[#allocation3 + $0x378] sm:$0xff]
    %v600 = vld [vmem:[#allocation3 + $0x380] sm:$0xff]
    %v601 = vld [vmem:[#allocation3 + $0x388] sm:$0xff]
    %v602 = vld [vmem:[#allocation3 + $0x390] sm:$0xff]
    %v603 = vld [vmem:[#allocation3 + $0x398] sm:$0xff]
    %v604 = vld [vmem:[#allocation3 + $0x3a0] sm:$0xff]
    %v605 = vld [vmem:[#allocation3 + $0x3a8] sm:$0xff]
    %v606 = vld [vmem:[#allocation3 + $0x3b0] sm:$0xff]
    %v607 = vld [vmem:[#allocation3 + $0x3b8] sm:$0xff]
    %v608 = vld [vmem:[#allocation3 + $0x3c0] sm:$0xff]
    %v609 = vld [vmem:[#allocation3 + $0x3c8] sm:$0xff]
    %v610 = vld [vmem:[#allocation3 + $0x3d0] sm:$0xff]
    %v611 = vld [vmem:[#allocation3 + $0x3d8] sm:$0xff]
    %v612 = vld [vmem:[#allocation3 + $0x3e0] sm:$0xff]
    %v613 = vld [vmem:[#allocation3 + $0x3e8] sm:$0xff]
    %v614 = vld [vmem:[#allocation3 + $0x3f0] sm:$0xff]
    %v615 = vld [vmem:[#allocation3 + $0x3f8] sm:$0xff]
    %v680 = vunpack.c.l.b16 %v488
    %v681 = vunpack.c.h.b16 %v488
    %v682 = vunpack.c.l.b16 %v489
    %v683 = vunpack.c.h.b16 %v489
    %v684 = vunpack.c.l.b16 %v492
    %v685 = vunpack.c.h.b16 %v492
    %v686 = vunpack.c.l.b16 %v493
    %v687 = vunpack.c.h.b16 %v493
    %v688 = vunpack.c.l.b16 %v496
    %v689 = vunpack.c.h.b16 %v496
    %v690 = vunpack.c.l.b16 %v497
    %v691 = vunpack.c.h.b16 %v497
    %v692 = vunpack.c.l.b16 %v500
    %v693 = vunpack.c.h.b16 %v500
    %v694 = vunpack.c.l.b16 %v501
    %v695 = vunpack.c.h.b16 %v501
    %v696 = vunpack.c.l.b16 %v504
    %v697 = vunpack.c.h.b16 %v504
    %v698 = vunpack.c.l.b16 %v505
    %v699 = vunpack.c.h.b16 %v505
    %v700 = vunpack.c.l.b16 %v508
    %v701 = vunpack.c.h.b16 %v508
    %v702 = vunpack.c.l.b16 %v509
    %v703 = vunpack.c.h.b16 %v509
    %v704 = vunpack.c.l.b16 %v512
    %v705 = vunpack.c.h.b16 %v512
    %v706 = vunpack.c.l.b16 %v513
    %v707 = vunpack.c.h.b16 %v513
    %v708 = vunpack.c.l.b16 %v516
    %v709 = vunpack.c.h.b16 %v516
    %v710 = vunpack.c.l.b16 %v517
    %v711 = vunpack.c.h.b16 %v517
    %v712 = vunpack.c.l.b16 %v520
    %v713 = vunpack.c.h.b16 %v520
    %v714 = vunpack.c.l.b16 %v521
    %v715 = vunpack.c.h.b16 %v521
    %v716 = vunpack.c.l.b16 %v524
    %v717 = vunpack.c.h.b16 %v524
    %v718 = vunpack.c.l.b16 %v525
    %v719 = vunpack.c.h.b16 %v525
    %v720 = vunpack.c.l.b16 %v528
    %v721 = vunpack.c.h.b16 %v528
    %v722 = vunpack.c.l.b16 %v529
    %v723 = vunpack.c.h.b16 %v529
    %v724 = vunpack.c.l.b16 %v532
    %v725 = vunpack.c.h.b16 %v532
    %v726 = vunpack.c.l.b16 %v533
    %v727 = vunpack.c.h.b16 %v533
    %v728 = vunpack.c.l.b16 %v536
    %v729 = vunpack.c.h.b16 %v536
    %v730 = vunpack.c.l.b16 %v537
    %v731 = vunpack.c.h.b16 %v537
    %v732 = vunpack.c.l.b16 %v540
    %v733 = vunpack.c.h.b16 %v540
    %v734 = vunpack.c.l.b16 %v541
    %v735 = vunpack.c.h.b16 %v541
    %v736 = vunpack.c.l.b16 %v544
    %v737 = vunpack.c.h.b16 %v544
    %v738 = vunpack.c.l.b16 %v545
    %v739 = vunpack.c.h.b16 %v545
    %v740 = vunpack.c.l.b16 %v548
    %v741 = vunpack.c.h.b16 %v548
    %v742 = vunpack.c.l.b16 %v549
    %v743 = vunpack.c.h.b16 %v549
    %v744 = vunpack.c.l.b16 %v552
    %v745 = vunpack.c.h.b16 %v552
    %v746 = vunpack.c.l.b16 %v553
    %v747 = vunpack.c.h.b16 %v553
    %v748 = vunpack.c.l.b16 %v556
    %v749 = vunpack.c.h.b16 %v556
    %v750 = vunpack.c.l.b16 %v557
    %v751 = vunpack.c.h.b16 %v557
    %v752 = vunpack.c.l.b16 %v560
    %v753 = vunpack.c.h.b16 %v560
    %v754 = vunpack.c.l.b16 %v561
    %v755 = vunpack.c.h.b16 %v561
    %v756 = vunpack.c.l.b16 %v564
    %v757 = vunpack.c.h.b16 %v564
    %v758 = vunpack.c.l.b16 %v565
    %v759 = vunpack.c.h.b16 %v565
    %v760 = vunpack.c.l.b16 %v568
    %v761 = vunpack.c.h.b16 %v568
    %v762 = vunpack.c.l.b16 %v569
    %v763 = vunpack.c.h.b16 %v569
    %v764 = vunpack.c.l.b16 %v572
    %v765 = vunpack.c.h.b16 %v572
    %v766 = vunpack.c.l.b16 %v573
    %v767 = vunpack.c.h.b16 %v573
    %v768 = vunpack.c.l.b16 %v576
    %v769 = vunpack.c.h.b16 %v576
    %v770 = vunpack.c.l.b16 %v577
    %v771 = vunpack.c.h.b16 %v577
    %v772 = vunpack.c.l.b16 %v580
    %v773 = vunpack.c.h.b16 %v580
    %v774 = vunpack.c.l.b16 %v581
    %v775 = vunpack.c.h.b16 %v581
    %v776 = vunpack.c.l.b16 %v584
    %v777 = vunpack.c.h.b16 %v584
    %v778 = vunpack.c.l.b16 %v585
    %v779 = vunpack.c.h.b16 %v585
    %v780 = vunpack.c.l.b16 %v588
    %v781 = vunpack.c.h.b16 %v588
    %v782 = vunpack.c.l.b16 %v589
    %v783 = vunpack.c.h.b16 %v589
    %v784 = vunpack.c.l.b16 %v592
    %v785 = vunpack.c.h.b16 %v592
    %v786 = vunpack.c.l.b16 %v593
    %v787 = vunpack.c.h.b16 %v593
    %v788 = vunpack.c.l.b16 %v596
    %v789 = vunpack.c.h.b16 %v596
    %v790 = vunpack.c.l.b16 %v597
    %v791 = vunpack.c.h.b16 %v597
    %v792 = vunpack.c.l.b16 %v600
    %v793 = vunpack.c.h.b16 %v600
    %v794 = vunpack.c.l.b16 %v601
    %v795 = vunpack.c.h.b16 %v601
    %v796 = vunpack.c.l.b16 %v604
    %v797 = vunpack.c.h.b16 %v604
    %v798 = vunpack.c.l.b16 %v605
    %v799 = vunpack.c.h.b16 %v605
    %v800 = vunpack.c.l.b16 %v608
    %v801 = vunpack.c.h.b16 %v608
    %v802 = vunpack.c.l.b16 %v609
    %v803 = vunpack.c.h.b16 %v609
    %v804 = vunpack.c.l.b16 %v612
    %v805 = vunpack.c.h.b16 %v612
    %v806 = vunpack.c.l.b16 %v613
    %v807 = vunpack.c.h.b16 %v613
    %v808 = vpack.c.b16 %v684, %v680
    %v809 = vpack.c.b16 %v685, %v681
    %v810 = vpack.c.b16 %v686, %v682
    %v811 = vpack.c.b16 %v687, %v683
    %v812 = vpack.c.b16 %v692, %v688
    %v813 = vpack.c.b16 %v693, %v689
    %v814 = vpack.c.b16 %v694, %v690
    %v815 = vpack.c.b16 %v695, %v691
    %v816 = vpack.c.b16 %v700, %v696
    %v817 = vpack.c.b16 %v701, %v697
    %v818 = vpack.c.b16 %v702, %v698
    %v819 = vpack.c.b16 %v703, %v699
    %v820 = vpack.c.b16 %v708, %v704
    %v821 = vpack.c.b16 %v709, %v705
    %v822 = vpack.c.b16 %v710, %v706
    %v823 = vpack.c.b16 %v711, %v707
    %v824 = vpack.c.b16 %v716, %v712
    %v825 = vpack.c.b16 %v717, %v713
    %v826 = vpack.c.b16 %v718, %v714
    %v827 = vpack.c.b16 %v719, %v715
    %v828 = vpack.c.b16 %v724, %v720
    %v829 = vpack.c.b16 %v725, %v721
    %v830 = vpack.c.b16 %v726, %v722
    %v831 = vpack.c.b16 %v727, %v723
    %v832 = vpack.c.b16 %v732, %v728
    %v833 = vpack.c.b16 %v733, %v729
    %v834 = vpack.c.b16 %v734, %v730
    %v835 = vpack.c.b16 %v735, %v731
    %v836 = vpack.c.b16 %v740, %v736
    %v837 = vpack.c.b16 %v741, %v737
    %v838 = vpack.c.b16 %v742, %v738
    %v839 = vpack.c.b16 %v743, %v739
    %v840 = vpack.c.b16 %v748, %v744
    %v841 = vpack.c.b16 %v749, %v745
    %v842 = vpack.c.b16 %v750, %v746
    %v843 = vpack.c.b16 %v751, %v747
    %v844 = vpack.c.b16 %v756, %v752
    %v845 = vpack.c.b16 %v757, %v753
    %v846 = vpack.c.b16 %v758, %v754
    %v847 = vpack.c.b16 %v759, %v755
    %v848 = vpack.c.b16 %v764, %v760
    %v849 = vpack.c.b16 %v765, %v761
    %v850 = vpack.c.b16 %v766, %v762
    %v851 = vpack.c.b16 %v767, %v763
    %v852 = vpack.c.b16 %v772, %v768
    %v853 = vpack.c.b16 %v773, %v769
    %v854 = vpack.c.b16 %v774, %v770
    %v855 = vpack.c.b16 %v775, %v771
    %v856 = vpack.c.b16 %v780, %v776
    %v857 = vpack.c.b16 %v781, %v777
    %v858 = vpack.c.b16 %v782, %v778
    %v859 = vpack.c.b16 %v783, %v779
    %v860 = vpack.c.b16 %v788, %v784
    %v861 = vpack.c.b16 %v789, %v785
    %v862 = vpack.c.b16 %v790, %v786
    %v863 = vpack.c.b16 %v791, %v787
    %v864 = vpack.c.b16 %v796, %v792
    %v865 = vpack.c.b16 %v797, %v793
    %v866 = vpack.c.b16 %v798, %v794
    %v867 = vpack.c.b16 %v799, %v795
    %v868 = vpack.c.b16 %v804, %v800
    %v869 = vpack.c.b16 %v805, %v801
    %v870 = vpack.c.b16 %v806, %v802
    %v871 = vpack.c.b16 %v807, %v803
    %936 = vmatprep.subr.bf16.mxu0 %v809
    %937 = vmatpush1.bf16.msra.mxu0 %v808
    %938 = vmatprep.subr.bf16.mxu0 %v813
    %939 = vmatpush1.bf16.msra.mxu0 %v812
    %940 = vmatprep.subr.bf16.mxu0 %v817
    %941 = vmatpush1.bf16.msra.mxu0 %v816
    %942 = vmatprep.subr.bf16.mxu0 %v821
    %943 = vmatpush1.bf16.msra.mxu0 %v820
    %944 = vmatprep.subr.bf16.mxu0 %v825
    %945 = vmatpush1.bf16.msra.mxu0 %v824
    %946 = vmatprep.subr.bf16.mxu0 %v829
    %947 = vmatpush1.bf16.msra.mxu0 %v828
    %948 = vmatprep.subr.bf16.mxu0 %v833
    %949 = vmatpush1.bf16.msra.mxu0 %v832
    %950 = vmatprep.subr.bf16.mxu0 %v837
    %951 = vmatpush1.bf16.msra.mxu0 %v836
    %952 = vmatprep.subr.bf16.mxu0 %v841
    %953 = vmatpush1.bf16.msra.mxu0 %v840
    %954 = vmatprep.subr.bf16.mxu0 %v845
    %955 = vmatpush1.bf16.msra.mxu0 %v844
    %956 = vmatprep.subr.bf16.mxu0 %v849
    %957 = vmatpush1.bf16.msra.mxu0 %v848
    %958 = vmatprep.subr.bf16.mxu0 %v853
    %959 = vmatpush1.bf16.msra.mxu0 %v852
    %960 = vmatprep.subr.bf16.mxu0 %v857
    %961 = vmatpush1.bf16.msra.mxu0 %v856
    %962 = vmatprep.subr.bf16.mxu0 %v861
    %963 = vmatpush1.bf16.msra.mxu0 %v860
    %964 = vmatprep.subr.bf16.mxu0 %v865
    %965 = vmatpush1.bf16.msra.mxu0 %v864
    %966 = vmatprep.subr.bf16.mxu0 %v869
    %967 = vmatpush1.bf16.msra.mxu0 %v868
    %968 = vmatprep.mubr.bf16.mxu0 %v487
    %969 = vmatmul.mubr.bf16.gmra.mrb[0].mxu0 %v486
    %v970 = vpop.f32.mrb[0].mxu0
    %v971 = vadd.f32 0.0, %v970
    %v972 = vpop.f32.mrb[0].mxu0
    %v973 = vadd.f32 0.0, %v972
    %v974 = vpop.f32.mrb[0].mxu0
    %v975 = vpop.f32.mrb[0].mxu0
    %976 = vdwg.mxu0
    %977 = vmatprep.subr.bf16.mxu0 %v811
    %978 = vmatpush1.bf16.msra.mxu0 %v810
    %979 = vmatprep.subr.bf16.mxu0 %v815
    %980 = vmatpush1.bf16.msra.mxu0 %v814
    %981 = vmatprep.subr.bf16.mxu0 %v819
    %982 = vmatpush1.bf16.msra.mxu0 %v818
    %983 = vmatprep.subr.bf16.mxu0 %v823
    %984 = vmatpush1.bf16.msra.mxu0 %v822
    %985 = vmatprep.subr.bf16.mxu0 %v827
    %986 = vmatpush1.bf16.msra.mxu0 %v826
    %987 = vmatprep.subr.bf16.mxu0 %v831
    %988 = vmatpush1.bf16.msra.mxu0 %v830
    %989 = vmatprep.subr.bf16.mxu0 %v835
    %990 = vmatpush1.bf16.msra.mxu0 %v834
    %991 = vmatprep.subr.bf16.mxu0 %v839
    %992 = vmatpush1.bf16.msra.mxu0 %v838
    %993 = vmatprep.subr.bf16.mxu0 %v843
    %994 = vmatpush1.bf16.msra.mxu0 %v842
    %995 = vmatprep.subr.bf16.mxu0 %v847
    %996 = vmatpush1.bf16.msra.mxu0 %v846
    %997 = vmatprep.subr.bf16.mxu0 %v851
    %998 = vmatpush1.bf16.msra.mxu0 %v850
    %999 = vmatprep.subr.bf16.mxu0 %v855
    %1000 = vmatpush1.bf16.msra.mxu0 %v854
    %1001 = vmatprep.subr.bf16.mxu0 %v859
    %1002 = vmatpush1.bf16.msra.mxu0 %v858
    %1003 = vmatprep.subr.bf16.mxu0 %v863
    %1004 = vmatpush1.bf16.msra.mxu0 %v862
    %1005 = vmatprep.subr.bf16.mxu0 %v867
    %1006 = vmatpush1.bf16.msra.mxu0 %v866
    %1007 = vmatprep.subr.bf16.mxu0 %v871
    %1008 = vmatpush1.bf16.msra.mxu0 %v870
    %1009 = vmatprep.mubr.bf16.mxu0 %v487
    %1010 = vmatmul.mubr.bf16.gmra.mrb[0].mxu0 %v486
    %v1011 = vpop.f32.mrb[0].mxu0
    %v1012 = vadd.f32 0.0, %v1011
    %v1013 = vpop.f32.mrb[0].mxu0
    %v1014 = vadd.f32 0.0, %v1013
    %v1015 = vpop.f32.mrb[0].mxu0
    %v1016 = vpop.f32.mrb[0].mxu0
    %1017 = vdwg.mxu0
    %v1018 = vld [vmem:[#allocation2] sm:$0xff]
    %v1019 = vld [vmem:[#allocation2 + $0x8] sm:$0xff]
    %v1020 = vld [vmem:[#allocation2 + $0x10] sm:$0xff]
    %v1021 = vld [vmem:[#allocation2 + $0x18] sm:$0xff]
    %v1022 = vadd.f32 %v971, %v1018
    %v1023 = vadd.f32 %v973, %v1019
    %v1024 = vadd.f32 %v1012, %v1020
    %v1025 = vadd.f32 %v1014, %v1021
    %v1026 = vxor.u32 %v1022, 2147483648
    %v1027 = vxor.u32 %v1023, 2147483648
    %v1028 = vxor.u32 %v1024, 2147483648
    %v1029 = vmul.f32 %v1026, 1.442695
    %v1030 = vpow.pop %v1029
    %v1031 = vmul.f32 %v1027, 1.442695
    %v1032 = vpow.pop %v1031
    %v1033 = vmul.f32 %v1028, 1.442695
    %v1034 = vpow.pop %v1033
    %v1035 = vadd.f32 %v1030, 1.0
    %v1036 = vadd.f32 %v1032, 1.0
    %v1037 = vadd.f32 %v1034, 1.0
    %v1038 = vrcp.pop %v1035
    %v1039 = vmul.f32 1.0, %v1038
    %v1040 = vrcp.pop %v1036
    %v1041 = vmul.f32 1.0, %v1040
    %v1042 = vrcp.pop %v1037
    %v1043 = vmul.f32 1.0, %v1042
    %v1044 = vtanh.pop %v1025
    %v1045 = vmul.f32 %v1041, %v480
    %v1046 = vmul.f32 %v1039, %v1044
    %v1047 = vadd.f32 %v1045, %v1046
    %v1048 = vtanh.pop %v1047
    %v1049 = vmul.f32 %v1043, %v1048
    %v1050 = vpack.c.bf16 %v1049, %v1049
    %v1115 = vunpack.c.l.b16 %v490
    %v1116 = vunpack.c.h.b16 %v490
    %v1117 = vunpack.c.l.b16 %v491
    %v1118 = vunpack.c.h.b16 %v491
    %v1119 = vunpack.c.l.b16 %v494
    %v1120 = vunpack.c.h.b16 %v494
    %v1121 = vunpack.c.l.b16 %v495
    %v1122 = vunpack.c.h.b16 %v495
    %v1123 = vunpack.c.l.b16 %v498
    %v1124 = vunpack.c.h.b16 %v498
    %v1125 = vunpack.c.l.b16 %v499
    %v1126 = vunpack.c.h.b16 %v499
    %v1127 = vunpack.c.l.b16 %v502
    %v1128 = vunpack.c.h.b16 %v502
    %v1129 = vunpack.c.l.b16 %v503
    %v1130 = vunpack.c.h.b16 %v503
    %v1131 = vunpack.c.l.b16 %v506
    %v1132 = vunpack.c.h.b16 %v506
    %v1133 = vunpack.c.l.b16 %v507
    %v1134 = vunpack.c.h.b16 %v507
    %v1135 = vunpack.c.l.b16 %v510
    %v1136 = vunpack.c.h.b16 %v510
    %v1137 = vunpack.c.l.b16 %v511
    %v1138 = vunpack.c.h.b16 %v511
    %v1139 = vunpack.c.l.b16 %v514
    %v1140 = vunpack.c.h.b16 %v514
    %v1141 = vunpack.c.l.b16 %v515
    %v1142 = vunpack.c.h.b16 %v515
    %v1143 = vunpack.c.l.b16 %v518
    %v1144 = vunpack.c.h.b16 %v518
    %v1145 = vunpack.c.l.b16 %v519
    %v1146 = vunpack.c.h.b16 %v519
    %v1147 = vunpack.c.l.b16 %v522
    %v1148 = vunpack.c.h.b16 %v522
    %v1149 = vunpack.c.l.b16 %v523
    %v1150 = vunpack.c.h.b16 %v523
    %v1151 = vunpack.c.l.b16 %v526
    %v1152 = vunpack.c.h.b16 %v526
    %v1153 = vunpack.c.l.b16 %v527
    %v1154 = vunpack.c.h.b16 %v527
    %v1155 = vunpack.c.l.b16 %v530
    %v1156 = vunpack.c.h.b16 %v530
    %v1157 = vunpack.c.l.b16 %v531
    %v1158 = vunpack.c.h.b16 %v531
    %v1159 = vunpack.c.l.b16 %v534
    %v1160 = vunpack.c.h.b16 %v534
    %v1161 = vunpack.c.l.b16 %v535
    %v1162 = vunpack.c.h.b16 %v535
    %v1163 = vunpack.c.l.b16 %v538
    %v1164 = vunpack.c.h.b16 %v538
    %v1165 = vunpack.c.l.b16 %v539
    %v1166 = vunpack.c.h.b16 %v539
    %v1167 = vunpack.c.l.b16 %v542
    %v1168 = vunpack.c.h.b16 %v542
    %v1169 = vunpack.c.l.b16 %v543
    %v1170 = vunpack.c.h.b16 %v543
    %v1171 = vunpack.c.l.b16 %v546
    %v1172 = vunpack.c.h.b16 %v546
    %v1173 = vunpack.c.l.b16 %v547
    %v1174 = vunpack.c.h.b16 %v547
    %v1175 = vunpack.c.l.b16 %v550
    %v1176 = vunpack.c.h.b16 %v550
    %v1177 = vunpack.c.l.b16 %v551
    %v1178 = vunpack.c.h.b16 %v551
    %v1179 = vunpack.c.l.b16 %v554
    %v1180 = vunpack.c.h.b16 %v554
    %v1181 = vunpack.c.l.b16 %v555
    %v1182 = vunpack.c.h.b16 %v555
    %v1183 = vunpack.c.l.b16 %v558
    %v1184 = vunpack.c.h.b16 %v558
    %v1185 = vunpack.c.l.b16 %v559
    %v1186 = vunpack.c.h.b16 %v559
    %v1187 = vunpack.c.l.b16 %v562
    %v1188 = vunpack.c.h.b16 %v562
    %v1189 = vunpack.c.l.b16 %v563
    %v1190 = vunpack.c.h.b16 %v563
    %v1191 = vunpack.c.l.b16 %v566
    %v1192 = vunpack.c.h.b16 %v566
    %v1193 = vunpack.c.l.b16 %v567
    %v1194 = vunpack.c.h.b16 %v567
    %v1195 = vunpack.c.l.b16 %v570
    %v1196 = vunpack.c.h.b16 %v570
    %v1197 = vunpack.c.l.b16 %v571
    %v1198 = vunpack.c.h.b16 %v571
    %v1199 = vunpack.c.l.b16 %v574
    %v1200 = vunpack.c.h.b16 %v574
    %v1201 = vunpack.c.l.b16 %v575
    %v1202 = vunpack.c.h.b16 %v575
    %v1203 = vunpack.c.l.b16 %v578
    %v1204 = vunpack.c.h.b16 %v578
    %v1205 = vunpack.c.l.b16 %v579
    %v1206 = vunpack.c.h.b16 %v579
    %v1207 = vunpack.c.l.b16 %v582
    %v1208 = vunpack.c.h.b16 %v582
    %v1209 = vunpack.c.l.b16 %v583
    %v1210 = vunpack.c.h.b16 %v583
    %v1211 = vunpack.c.l.b16 %v586
    %v1212 = vunpack.c.h.b16 %v586
    %v1213 = vunpack.c.l.b16 %v587
    %v1214 = vunpack.c.h.b16 %v587
    %v1215 = vunpack.c.l.b16 %v590
    %v1216 = vunpack.c.h.b16 %v590
    %v1217 = vunpack.c.l.b16 %v591
    %v1218 = vunpack.c.h.b16 %v591
    %v1219 = vunpack.c.l.b16 %v594
    %v1220 = vunpack.c.h.b16 %v594
    %v1221 = vunpack.c.l.b16 %v595
    %v1222 = vunpack.c.h.b16 %v595
    %v1223 = vunpack.c.l.b16 %v598
    %v1224 = vunpack.c.h.b16 %v598
    %v1225 = vunpack.c.l.b16 %v599
    %v1226 = vunpack.c.h.b16 %v599
    %v1227 = vunpack.c.l.b16 %v602
    %v1228 = vunpack.c.h.b16 %v602
    %v1229 = vunpack.c.l.b16 %v603
    %v1230 = vunpack.c.h.b16 %v603
    %v1231 = vunpack.c.l.b16 %v606
    %v1232 = vunpack.c.h.b16 %v606
    %v1233 = vunpack.c.l.b16 %v607
    %v1234 = vunpack.c.h.b16 %v607
    %v1235 = vunpack.c.l.b16 %v610
    %v1236 = vunpack.c.h.b16 %v610
    %v1237 = vunpack.c.l.b16 %v611
    %v1238 = vunpack.c.h.b16 %v611
    %v1239 = vunpack.c.l.b16 %v614
    %v1240 = vunpack.c.h.b16 %v614
    %v1241 = vunpack.c.l.b16 %v615
    %v1242 = vunpack.c.h.b16 %v615
    %v1243 = vpack.c.b16 %v1119, %v1115
    %v1244 = vpack.c.b16 %v1120, %v1116
    %v1245 = vpack.c.b16 %v1121, %v1117
    %v1246 = vpack.c.b16 %v1122, %v1118
    %v1247 = vpack.c.b16 %v1127, %v1123
    %v1248 = vpack.c.b16 %v1128, %v1124
    %v1249 = vpack.c.b16 %v1129, %v1125
    %v1250 = vpack.c.b16 %v1130, %v1126
    %v1251 = vpack.c.b16 %v1135, %v1131
    %v1252 = vpack.c.b16 %v1136, %v1132
    %v1253 = vpack.c.b16 %v1137, %v1133
    %v1254 = vpack.c.b16 %v1138, %v1134
    %v1255 = vpack.c.b16 %v1143, %v1139
    %v1256 = vpack.c.b16 %v1144, %v1140
    %v1257 = vpack.c.b16 %v1145, %v1141
    %v1258 = vpack.c.b16 %v1146, %v1142
    %v1259 = vpack.c.b16 %v1151, %v1147
    %v1260 = vpack.c.b16 %v1152, %v1148
    %v1261 = vpack.c.b16 %v1153, %v1149
    %v1262 = vpack.c.b16 %v1154, %v1150
    %v1263 = vpack.c.b16 %v1159, %v1155
    %v1264 = vpack.c.b16 %v1160, %v1156
    %v1265 = vpack.c.b16 %v1161, %v1157
    %v1266 = vpack.c.b16 %v1162, %v1158
    %v1267 = vpack.c.b16 %v1167, %v1163
    %v1268 = vpack.c.b16 %v1168, %v1164
    %v1269 = vpack.c.b16 %v1169, %v1165
    %v1270 = vpack.c.b16 %v1170, %v1166
    %v1271 = vpack.c.b16 %v1175, %v1171
    %v1272 = vpack.c.b16 %v1176, %v1172
    %v1273 = vpack.c.b16 %v1177, %v1173
    %v1274 = vpack.c.b16 %v1178, %v1174
    %v1275 = vpack.c.b16 %v1183, %v1179
    %v1276 = vpack.c.b16 %v1184, %v1180
    %v1277 = vpack.c.b16 %v1185, %v1181
    %v1278 = vpack.c.b16 %v1186, %v1182
    %v1279 = vpack.c.b16 %v1191, %v1187
    %v1280 = vpack.c.b16 %v1192, %v1188
    %v1281 = vpack.c.b16 %v1193, %v1189
    %v1282 = vpack.c.b16 %v1194, %v1190
    %v1283 = vpack.c.b16 %v1199, %v1195
    %v1284 = vpack.c.b16 %v1200, %v1196
    %v1285 = vpack.c.b16 %v1201, %v1197
    %v1286 = vpack.c.b16 %v1202, %v1198
    %v1287 = vpack.c.b16 %v1207, %v1203
    %v1288 = vpack.c.b16 %v1208, %v1204
    %v1289 = vpack.c.b16 %v1209, %v1205
    %v1290 = vpack.c.b16 %v1210, %v1206
    %v1291 = vpack.c.b16 %v1215, %v1211
    %v1292 = vpack.c.b16 %v1216, %v1212
    %v1293 = vpack.c.b16 %v1217, %v1213
    %v1294 = vpack.c.b16 %v1218, %v1214
    %v1295 = vpack.c.b16 %v1223, %v1219
    %v1296 = vpack.c.b16 %v1224, %v1220
    %v1297 = vpack.c.b16 %v1225, %v1221
    %v1298 = vpack.c.b16 %v1226, %v1222
    %v1299 = vpack.c.b16 %v1231, %v1227
    %v1300 = vpack.c.b16 %v1232, %v1228
    %v1301 = vpack.c.b16 %v1233, %v1229
    %v1302 = vpack.c.b16 %v1234, %v1230
    %v1303 = vpack.c.b16 %v1239, %v1235
    %v1304 = vpack.c.b16 %v1240, %v1236
    %v1305 = vpack.c.b16 %v1241, %v1237
    %v1306 = vpack.c.b16 %v1242, %v1238
    %1371 = vmatprep.subr.bf16.mxu0 %v809
    %1372 = vmatpush1.bf16.msra.mxu0 %v808
    %1373 = vmatprep.subr.bf16.mxu0 %v813
    %1374 = vmatpush1.bf16.msra.mxu0 %v812
    %1375 = vmatprep.subr.bf16.mxu0 %v817
    %1376 = vmatpush1.bf16.msra.mxu0 %v816
    %1377 = vmatprep.subr.bf16.mxu0 %v821
    %1378 = vmatpush1.bf16.msra.mxu0 %v820
    %1379 = vmatprep.subr.bf16.mxu0 %v825
    %1380 = vmatpush1.bf16.msra.mxu0 %v824
    %1381 = vmatprep.subr.bf16.mxu0 %v829
    %1382 = vmatpush1.bf16.msra.mxu0 %v828
    %1383 = vmatprep.subr.bf16.mxu0 %v833
    %1384 = vmatpush1.bf16.msra.mxu0 %v832
    %1385 = vmatprep.subr.bf16.mxu0 %v837
    %1386 = vmatpush1.bf16.msra.mxu0 %v836
    %1387 = vmatprep.subr.bf16.mxu0 %v841
    %1388 = vmatpush1.bf16.msra.mxu0 %v840
    %1389 = vmatprep.subr.bf16.mxu0 %v845
    %1390 = vmatpush1.bf16.msra.mxu0 %v844
    %1391 = vmatprep.subr.bf16.mxu0 %v849
    %1392 = vmatpush1.bf16.msra.mxu0 %v848
    %1393 = vmatprep.subr.bf16.mxu0 %v853
    %1394 = vmatpush1.bf16.msra.mxu0 %v852
    %1395 = vmatprep.subr.bf16.mxu0 %v857
    %1396 = vmatpush1.bf16.msra.mxu0 %v856
    %1397 = vmatprep.subr.bf16.mxu0 %v861
    %1398 = vmatpush1.bf16.msra.mxu0 %v860
    %1399 = vmatprep.subr.bf16.mxu0 %v865
    %1400 = vmatpush1.bf16.msra.mxu0 %v864
    %1401 = vmatprep.subr.bf16.mxu0 %v869
    %1402 = vmatpush1.bf16.msra.mxu0 %v868
    %1403 = vmatprep.mubr.bf16.mxu0 %v487
    %1404 = vmatmul.mubr.bf16.gmra.mrb[0].mxu0 %v1050
    %v1405 = vpop.f32.mrb[0].mxu0
    %v1406 = vadd.f32 0.0, %v1405
    %v1407 = vpop.f32.mrb[0].mxu0
    %v1408 = vadd.f32 0.0, %v1407
    %v1409 = vpop.f32.mrb[0].mxu0
    %v1410 = vpop.f32.mrb[0].mxu0
    %1411 = vdwg.mxu0
    %1412 = vmatprep.subr.bf16.mxu0 %v811
    %1413 = vmatpush1.bf16.msra.mxu0 %v810
    %1414 = vmatprep.subr.bf16.mxu0 %v815
    %1415 = vmatpush1.bf16.msra.mxu0 %v814
    %1416 = vmatprep.subr.bf16.mxu0 %v819
    %1417 = vmatpush1.bf16.msra.mxu0 %v818
    %1418 = vmatprep.subr.bf16.mxu0 %v823
    %1419 = vmatpush1.bf16.msra.mxu0 %v822
    %1420 = vmatprep.subr.bf16.mxu0 %v827
    %1421 = vmatpush1.bf16.msra.mxu0 %v826
    %1422 = vmatprep.subr.bf16.mxu0 %v831
    %1423 = vmatpush1.bf16.msra.mxu0 %v830
    %1424 = vmatprep.subr.bf16.mxu0 %v835
    %1425 = vmatpush1.bf16.msra.mxu0 %v834
    %1426 = vmatprep.subr.bf16.mxu0 %v839
    %1427 = vmatpush1.bf16.msra.mxu0 %v838
    %1428 = vmatprep.subr.bf16.mxu0 %v843
    %1429 = vmatpush1.bf16.msra.mxu0 %v842
    %1430 = vmatprep.subr.bf16.mxu0 %v847
    %1431 = vmatpush1.bf16.msra.mxu0 %v846
    %1432 = vmatprep.subr.bf16.mxu0 %v851
    %1433 = vmatpush1.bf16.msra.mxu0 %v850
    %1434 = vmatprep.subr.bf16.mxu0 %v855
    %1435 = vmatpush1.bf16.msra.mxu0 %v854
    %1436 = vmatprep.subr.bf16.mxu0 %v859
    %1437 = vmatpush1.bf16.msra.mxu0 %v858
    %1438 = vmatprep.subr.bf16.mxu0 %v863
    %1439 = vmatpush1.bf16.msra.mxu0 %v862
    %1440 = vmatprep.subr.bf16.mxu0 %v867
    %1441 = vmatpush1.bf16.msra.mxu0 %v866
    %1442 = vmatprep.subr.bf16.mxu0 %v871
    %1443 = vmatpush1.bf16.msra.mxu0 %v870
    %1444 = vmatprep.mubr.bf16.mxu0 %v487
    %1445 = vmatmul.mubr.bf16.gmra.mrb[0].mxu0 %v1050
    %v1446 = vpop.f32.mrb[0].mxu0
    %v1447 = vadd.f32 0.0, %v1446
    %v1448 = vpop.f32.mrb[0].mxu0
    %v1449 = vadd.f32 0.0, %v1448
    %v1450 = vpop.f32.mrb[0].mxu0
    %v1451 = vpop.f32.mrb[0].mxu0
    %1452 = vdwg.mxu0
    %1453 = vmatprep.subr.bf16.mxu0 %v1244
    %1454 = vmatpush1.bf16.msra.mxu0 %v1243
    %1455 = vmatprep.subr.bf16.mxu0 %v1248
    %1456 = vmatpush1.bf16.msra.mxu0 %v1247
    %1457 = vmatprep.subr.bf16.mxu0 %v1252
    %1458 = vmatpush1.bf16.msra.mxu0 %v1251
    %1459 = vmatprep.subr.bf16.mxu0 %v1256
    %1460 = vmatpush1.bf16.msra.mxu0 %v1255
    %1461 = vmatprep.subr.bf16.mxu0 %v1260
    %1462 = vmatpush1.bf16.msra.mxu0 %v1259
    %1463 = vmatprep.subr.bf16.mxu0 %v1264
    %1464 = vmatpush1.bf16.msra.mxu0 %v1263
    %1465 = vmatprep.subr.bf16.mxu0 %v1268
    %1466 = vmatpush1.bf16.msra.mxu0 %v1267
    %1467 = vmatprep.subr.bf16.mxu0 %v1272
    %1468 = vmatpush1.bf16.msra.mxu0 %v1271
    %1469 = vmatprep.subr.bf16.mxu0 %v1276
    %1470 = vmatpush1.bf16.msra.mxu0 %v1275
    %1471 = vmatprep.subr.bf16.mxu0 %v1280
    %1472 = vmatpush1.bf16.msra.mxu0 %v1279
    %1473 = vmatprep.subr.bf16.mxu0 %v1284
    %1474 = vmatpush1.bf16.msra.mxu0 %v1283
    %1475 = vmatprep.subr.bf16.mxu0 %v1288
    %1476 = vmatpush1.bf16.msra.mxu0 %v1287
    %1477 = vmatprep.subr.bf16.mxu0 %v1292
    %1478 = vmatpush1.bf16.msra.mxu0 %v1291
    %1479 = vmatprep.subr.bf16.mxu0 %v1296
    %1480 = vmatpush1.bf16.msra.mxu0 %v1295
    %1481 = vmatprep.subr.bf16.mxu0 %v1300
    %1482 = vmatpush1.bf16.msra.mxu0 %v1299
    %1483 = vmatprep.subr.bf16.mxu0 %v1304
    %1484 = vmatpush1.bf16.msra.mxu0 %v1303
    %1485 = vmatprep.mubr.bf16.mxu0 %v487
    %1486 = vmatmul.mubr.bf16.gmra.mrb[0].mxu0 %v1050
    %v1487 = vpop.f32.mrb[0].mxu0
    %v1488 = vadd.f32 0.0, %v1487
    %v1489 = vpop.f32.mrb[0].mxu0
    %v1490 = vadd.f32 0.0, %v1489
    %v1491 = vpop.f32.mrb[0].mxu0
    %v1492 = vpop.f32.mrb[0].mxu0
    %1493 = vdwg.mxu0
    %1494 = vmatprep.subr.bf16.mxu0 %v1246
    %1495 = vmatpush1.bf16.msra.mxu0 %v1245
    %1496 = vmatprep.subr.bf16.mxu0 %v1250
    %1497 = vmatpush1.bf16.msra.mxu0 %v1249
    %1498 = vmatprep.subr.bf16.mxu0 %v1254
    %1499 = vmatpush1.bf16.msra.mxu0 %v1253
    %1500 = vmatprep.subr.bf16.mxu0 %v1258
    %1501 = vmatpush1.bf16.msra.mxu0 %v1257
    %1502 = vmatprep.subr.bf16.mxu0 %v1262
    %1503 = vmatpush1.bf16.msra.mxu0 %v1261
    %1504 = vmatprep.subr.bf16.mxu0 %v1266
    %1505 = vmatpush1.bf16.msra.mxu0 %v1265
    %1506 = vmatprep.subr.bf16.mxu0 %v1270
    %1507 = vmatpush1.bf16.msra.mxu0 %v1269
    %1508 = vmatprep.subr.bf16.mxu0 %v1274
    %1509 = vmatpush1.bf16.msra.mxu0 %v1273
    %1510 = vmatprep.subr.bf16.mxu0 %v1278
    %1511 = vmatpush1.bf16.msra.mxu0 %v1277
    %1512 = vmatprep.subr.bf16.mxu0 %v1282
    %1513 = vmatpush1.bf16.msra.mxu0 %v1281
    %1514 = vmatprep.subr.bf16.mxu0 %v1286
    %1515 = vmatpush1.bf16.msra.mxu0 %v1285
    %1516 = vmatprep.subr.bf16.mxu0 %v1290
    %1517 = vmatpush1.bf16.msra.mxu0 %v1289
    %1518 = vmatprep.subr.bf16.mxu0 %v1294
    %1519 = vmatpush1.bf16.msra.mxu0 %v1293
    %1520 = vmatprep.subr.bf16.mxu0 %v1298
    %1521 = vmatpush1.bf16.msra.mxu0 %v1297
    %1522 = vmatprep.subr.bf16.mxu0 %v1302
    %1523 = vmatpush1.bf16.msra.mxu0 %v1301
    %1524 = vmatprep.subr.bf16.mxu0 %v1306
    %1525 = vmatpush1.bf16.msra.mxu0 %v1305
    %1526 = vmatprep.mubr.bf16.mxu0 %v487
    %1527 = vmatmul.mubr.bf16.gmra.mrb[0].mxu0 %v1050
    %v1528 = vpop.f32.mrb[0].mxu0
    %v1529 = vadd.f32 0.0, %v1528
    %v1530 = vpop.f32.mrb[0].mxu0
    %v1531 = vadd.f32 0.0, %v1530
    %v1532 = vpop.f32.mrb[0].mxu0
    %v1533 = vpop.f32.mrb[0].mxu0
    %1534 = vdwg.mxu0
    %v1536 = vlaneseq
    %v1537 = vshrl.u32 %v1536, 7
    %v1538 = vsub.s32 0, %v1537
    %v1539 = vrot.slane %v485, %v1538
    %v1540 = vlaneseq
    %v1541 = vshrl.u32 %v1540, 7
    %v1542 = vsub.s32 1, %v1541
    %v1543 = vrot.slane %v485, %v1542
    %v1544 = vlaneseq
    %v1545 = vshrl.u32 %v1544, 7
    %v1546 = vsub.s32 2, %v1545
    %v1547 = vrot.slane %v485, %v1546
    %v1548 = vlaneseq
    %v1549 = vshrl.u32 %v1548, 7
    %v1550 = vsub.s32 3, %v1549
    %v1551 = vrot.slane %v485, %v1550
    %v1556 = vadd.f32 %v1488, %v1539
    %v1557 = vadd.f32 %v1490, %v1543
    %v1558 = vadd.f32 %v1529, %v1547
    %v1559 = vadd.f32 %v1531, %v1551
    %v1560 = vxor.u32 %v1556, 2147483648
    %v1561 = vxor.u32 %v1557, 2147483648
    %v1562 = vxor.u32 %v1558, 2147483648
    %v1563 = vmul.f32 %v1560, 1.442695
    %v1564 = vpow.pop %v1563
    %v1565 = vmul.f32 %v1561, 1.442695
    %v1566 = vpow.pop %v1565
    %v1567 = vmul.f32 %v1562, 1.442695
    %v1568 = vpow.pop %v1567
    %v1569 = vadd.f32 %v1564, 1.0
    %v1570 = vadd.f32 %v1566, 1.0
    %v1571 = vadd.f32 %v1568, 1.0
    %v1572 = vrcp.pop %v1569
    %v1573 = vmul.f32 1.0, %v1572
    %v1574 = vrcp.pop %v1570
    %v1575 = vmul.f32 1.0, %v1574
    %v1576 = vrcp.pop %v1571
    %v1577 = vmul.f32 1.0, %v1576
    %v1578 = vtanh.pop %v1559
    %v1579 = vmul.f32 %v1575, %v484
    %v1580 = vmul.f32 %v1573, %v1578
    %v1581 = vadd.f32 %v1579, %v1580
    %v1582 = vtanh.pop %v1581
    %v1583 = vmul.f32 %v1577, %v1582
    %v1584 = vld [vmem:[#allocation2 + $0x20] sm:$0xff]
    %v1585 = vld [vmem:[#allocation2 + $0x28] sm:$0xff]
    %v1586 = vld [vmem:[#allocation2 + $0x30] sm:$0xff]
    %v1587 = vld [vmem:[#allocation2 + $0x38] sm:$0xff]
    %v1588 = vadd.f32 %v1406, %v1584
    %v1589 = vadd.f32 %v1408, %v1585
    %v1590 = vadd.f32 %v1447, %v1586
    %v1591 = vadd.f32 %v1449, %v1587
    %v1592 = vxor.u32 %v1588, 2147483648
    %v1593 = vxor.u32 %v1589, 2147483648
    %v1594 = vxor.u32 %v1590, 2147483648
    %v1595 = vmul.f32 %v1592, 1.442695
    %v1596 = vpow.pop %v1595
    %v1597 = vmul.f32 %v1593, 1.442695
    %v1598 = vpow.pop %v1597
    %v1599 = vmul.f32 %v1594, 1.442695
    %v1600 = vpow.pop %v1599
    %v1601 = vadd.f32 %v1596, 1.0
    %v1602 = vadd.f32 %v1598, 1.0
    %v1603 = vadd.f32 %v1600, 1.0
    %v1604 = vrcp.pop %v1601
    %v1605 = vmul.f32 1.0, %v1604
    %v1606 = vrcp.pop %v1602
    %v1607 = vmul.f32 1.0, %v1606
    %v1608 = vrcp.pop %v1603
    %v1609 = vmul.f32 1.0, %v1608
    %v1610 = vtanh.pop %v1591
    %v1611 = vmul.f32 %v1607, %v1047
    %v1612 = vmul.f32 %v1605, %v1610
    %v1613 = vadd.f32 %v1611, %v1612
    %v1614 = vtanh.pop %v1613
    %v1615 = vmul.f32 %v1609, %v1614
    %v1616 = vpack.c.bf16 %v1615, %v1615
    %v1617 = vpack.c.bf16 %v1583, %v1583
    %1618 = vmatprep.subr.bf16.mxu0 %v809
    %1619 = vmatpush1.bf16.msra.mxu0 %v808
    %1620 = vmatprep.subr.bf16.mxu0 %v813
    %1621 = vmatpush1.bf16.msra.mxu0 %v812
    %1622 = vmatprep.subr.bf16.mxu0 %v817
    %1623 = vmatpush1.bf16.msra.mxu0 %v816
    %1624 = vmatprep.subr.bf16.mxu0 %v821
    %1625 = vmatpush1.bf16.msra.mxu0 %v820
    %1626 = vmatprep.subr.bf16.mxu0 %v825
    %1627 = vmatpush1.bf16.msra.mxu0 %v824
    %1628 = vmatprep.subr.bf16.mxu0 %v829
    %1629 = vmatpush1.bf16.msra.mxu0 %v828
    %1630 = vmatprep.subr.bf16.mxu0 %v833
    %1631 = vmatpush1.bf16.msra.mxu0 %v832
    %1632 = vmatprep.subr.bf16.mxu0 %v837
    %1633 = vmatpush1.bf16.msra.mxu0 %v836
    %1634 = vmatprep.subr.bf16.mxu0 %v841
    %1635 = vmatpush1.bf16.msra.mxu0 %v840
    %1636 = vmatprep.subr.bf16.mxu0 %v845
    %1637 = vmatpush1.bf16.msra.mxu0 %v844
    %1638 = vmatprep.subr.bf16.mxu0 %v849
    %1639 = vmatpush1.bf16.msra.mxu0 %v848
    %1640 = vmatprep.subr.bf16.mxu0 %v853
    %1641 = vmatpush1.bf16.msra.mxu0 %v852
    %1642 = vmatprep.subr.bf16.mxu0 %v857
    %1643 = vmatpush1.bf16.msra.mxu0 %v856
    %1644 = vmatprep.subr.bf16.mxu0 %v861
    %1645 = vmatpush1.bf16.msra.mxu0 %v860
    %1646 = vmatprep.subr.bf16.mxu0 %v865
    %1647 = vmatpush1.bf16.msra.mxu0 %v864
    %1648 = vmatprep.subr.bf16.mxu0 %v869
    %1649 = vmatpush1.bf16.msra.mxu0 %v868
    %1650 = vmatprep.mubr.bf16.mxu0 %v1617
    %1651 = vmatmul.mubr.bf16.gmra.mrb[0].mxu0 %v1616
    %v1652 = vpop.f32.mrb[0].mxu0
    %v1653 = vadd.f32 0.0, %v1652
    %v1654 = vpop.f32.mrb[0].mxu0
    %v1655 = vadd.f32 0.0, %v1654
    %v1656 = vpop.f32.mrb[0].mxu0
    %v1657 = vpop.f32.mrb[0].mxu0
    %1658 = vdwg.mxu0
    %1659 = vmatprep.subr.bf16.mxu0 %v811
    %1660 = vmatpush1.bf16.msra.mxu0 %v810
    %1661 = vmatprep.subr.bf16.mxu0 %v815
    %1662 = vmatpush1.bf16.msra.mxu0 %v814
    %1663 = vmatprep.subr.bf16.mxu0 %v819
    %1664 = vmatpush1.bf16.msra.mxu0 %v818
    %1665 = vmatprep.subr.bf16.mxu0 %v823
    %1666 = vmatpush1.bf16.msra.mxu0 %v822
    %1667 = vmatprep.subr.bf16.mxu0 %v827
    %1668 = vmatpush1.bf16.msra.mxu0 %v826
    %1669 = vmatprep.subr.bf16.mxu0 %v831
    %1670 = vmatpush1.bf16.msra.mxu0 %v830
    %1671 = vmatprep.subr.bf16.mxu0 %v835
    %1672 = vmatpush1.bf16.msra.mxu0 %v834
    %1673 = vmatprep.subr.bf16.mxu0 %v839
    %1674 = vmatpush1.bf16.msra.mxu0 %v838
    %1675 = vmatprep.subr.bf16.mxu0 %v843
    %1676 = vmatpush1.bf16.msra.mxu0 %v842
    %1677 = vmatprep.subr.bf16.mxu0 %v847
    %1678 = vmatpush1.bf16.msra.mxu0 %v846
    %1679 = vmatprep.subr.bf16.mxu0 %v851
    %1680 = vmatpush1.bf16.msra.mxu0 %v850
    %1681 = vmatprep.subr.bf16.mxu0 %v855
    %1682 = vmatpush1.bf16.msra.mxu0 %v854
    %1683 = vmatprep.subr.bf16.mxu0 %v859
    %1684 = vmatpush1.bf16.msra.mxu0 %v858
    %1685 = vmatprep.subr.bf16.mxu0 %v863
    %1686 = vmatpush1.bf16.msra.mxu0 %v862
    %1687 = vmatprep.subr.bf16.mxu0 %v867
    %1688 = vmatpush1.bf16.msra.mxu0 %v866
    %1689 = vmatprep.subr.bf16.mxu0 %v871
    %1690 = vmatpush1.bf16.msra.mxu0 %v870
    %1691 = vmatprep.mubr.bf16.mxu0 %v1617
    %1692 = vmatmul.mubr.bf16.gmra.mrb[0].mxu0 %v1616
    %v1693 = vpop.f32.mrb[0].mxu0
    %v1694 = vadd.f32 0.0, %v1693
    %v1695 = vpop.f32.mrb[0].mxu0
    %v1696 = vadd.f32 0.0, %v1695
    %v1697 = vpop.f32.mrb[0].mxu0
    %v1698 = vpop.f32.mrb[0].mxu0
    %1699 = vdwg.mxu0
    %1700 = vmatprep.subr.bf16.mxu0 %v1244
    %1701 = vmatpush1.bf16.msra.mxu0 %v1243
    %1702 = vmatprep.subr.bf16.mxu0 %v1248
    %1703 = vmatpush1.bf16.msra.mxu0 %v1247
    %1704 = vmatprep.subr.bf16.mxu0 %v1252
    %1705 = vmatpush1.bf16.msra.mxu0 %v1251
    %1706 = vmatprep.subr.bf16.mxu0 %v1256
    %1707 = vmatpush1.bf16.msra.mxu0 %v1255
    %1708 = vmatprep.subr.bf16.mxu0 %v1260
    %1709 = vmatpush1.bf16.msra.mxu0 %v1259
    %1710 = vmatprep.subr.bf16.mxu0 %v1264
    %1711 = vmatpush1.bf16.msra.mxu0 %v1263
    %1712 = vmatprep.subr.bf16.mxu0 %v1268
    %1713 = vmatpush1.bf16.msra.mxu0 %v1267
    %1714 = vmatprep.subr.bf16.mxu0 %v1272
    %1715 = vmatpush1.bf16.msra.mxu0 %v1271
    %1716 = vmatprep.subr.bf16.mxu0 %v1276
    %1717 = vmatpush1.bf16.msra.mxu0 %v1275
    %1718 = vmatprep.subr.bf16.mxu0 %v1280
    %1719 = vmatpush1.bf16.msra.mxu0 %v1279
    %1720 = vmatprep.subr.bf16.mxu0 %v1284
    %1721 = vmatpush1.bf16.msra.mxu0 %v1283
    %1722 = vmatprep.subr.bf16.mxu0 %v1288
    %1723 = vmatpush1.bf16.msra.mxu0 %v1287
    %1724 = vmatprep.subr.bf16.mxu0 %v1292
    %1725 = vmatpush1.bf16.msra.mxu0 %v1291
    %1726 = vmatprep.subr.bf16.mxu0 %v1296
    %1727 = vmatpush1.bf16.msra.mxu0 %v1295
    %1728 = vmatprep.subr.bf16.mxu0 %v1300
    %1729 = vmatpush1.bf16.msra.mxu0 %v1299
    %1730 = vmatprep.subr.bf16.mxu0 %v1304
    %1731 = vmatpush1.bf16.msra.mxu0 %v1303
    %1732 = vmatprep.mubr.bf16.mxu0 %v1617
    %1733 = vmatmul.mubr.bf16.gmra.mrb[0].mxu0 %v1616
    %v1734 = vpop.f32.mrb[0].mxu0
    %v1735 = vadd.f32 0.0, %v1734
    %v1736 = vpop.f32.mrb[0].mxu0
    %v1737 = vadd.f32 0.0, %v1736
    %v1738 = vpop.f32.mrb[0].mxu0
    %v1739 = vpop.f32.mrb[0].mxu0
    %1740 = vdwg.mxu0
    %1741 = vmatprep.subr.bf16.mxu0 %v1246
    %1742 = vmatpush1.bf16.msra.mxu0 %v1245
    %1743 = vmatprep.subr.bf16.mxu0 %v1250
    %1744 = vmatpush1.bf16.msra.mxu0 %v1249
    %1745 = vmatprep.subr.bf16.mxu0 %v1254
    %1746 = vmatpush1.bf16.msra.mxu0 %v1253
    %1747 = vmatprep.subr.bf16.mxu0 %v1258
    %1748 = vmatpush1.bf16.msra.mxu0 %v1257
    %1749 = vmatprep.subr.bf16.mxu0 %v1262
    %1750 = vmatpush1.bf16.msra.mxu0 %v1261
    %1751 = vmatprep.subr.bf16.mxu0 %v1266
    %1752 = vmatpush1.bf16.msra.mxu0 %v1265
    %1753 = vmatprep.subr.bf16.mxu0 %v1270
    %1754 = vmatpush1.bf16.msra.mxu0 %v1269
    %1755 = vmatprep.subr.bf16.mxu0 %v1274
    %1756 = vmatpush1.bf16.msra.mxu0 %v1273
    %1757 = vmatprep.subr.bf16.mxu0 %v1278
    %1758 = vmatpush1.bf16.msra.mxu0 %v1277
    %1759 = vmatprep.subr.bf16.mxu0 %v1282
    %1760 = vmatpush1.bf16.msra.mxu0 %v1281
    %1761 = vmatprep.subr.bf16.mxu0 %v1286
    %1762 = vmatpush1.bf16.msra.mxu0 %v1285
    %1763 = vmatprep.subr.bf16.mxu0 %v1290
    %1764 = vmatpush1.bf16.msra.mxu0 %v1289
    %1765 = vmatprep.subr.bf16.mxu0 %v1294
    %1766 = vmatpush1.bf16.msra.mxu0 %v1293
    %1767 = vmatprep.subr.bf16.mxu0 %v1298
    %1768 = vmatpush1.bf16.msra.mxu0 %v1297
    %1769 = vmatprep.subr.bf16.mxu0 %v1302
    %1770 = vmatpush1.bf16.msra.mxu0 %v1301
    %1771 = vmatprep.subr.bf16.mxu0 %v1306
    %1772 = vmatpush1.bf16.msra.mxu0 %v1305
    %1773 = vmatprep.mubr.bf16.mxu0 %v1617
    %1774 = vmatmul.mubr.bf16.gmra.mrb[0].mxu0 %v1616
    %v1775 = vpop.f32.mrb[0].mxu0
    %v1776 = vadd.f32 0.0, %v1775
    %v1777 = vpop.f32.mrb[0].mxu0
    %v1778 = vadd.f32 0.0, %v1777
    %v1779 = vpop.f32.mrb[0].mxu0
    %v1780 = vpop.f32.mrb[0].mxu0
    %1781 = vdwg.mxu0
    %v1782 = vadd.f32 %v1735, %v1539
    %v1783 = vadd.f32 %v1737, %v1543
    %v1784 = vadd.f32 %v1776, %v1547
    %v1785 = vadd.f32 %v1778, %v1551
    %v1786 = vxor.u32 %v1782, 2147483648
    %v1787 = vxor.u32 %v1783, 2147483648
    %v1788 = vxor.u32 %v1784, 2147483648
    %v1789 = vmul.f32 %v1786, 1.442695
    %v1790 = vpow.pop %v1789
    %v1791 = vmul.f32 %v1787, 1.442695
    %v1792 = vpow.pop %v1791
    %v1793 = vmul.f32 %v1788, 1.442695
    %v1794 = vpow.pop %v1793
    %v1795 = vadd.f32 %v1790, 1.0
    %v1796 = vadd.f32 %v1792, 1.0
    %v1797 = vadd.f32 %v1794, 1.0
    %v1798 = vrcp.pop %v1795
    %v1799 = vmul.f32 1.0, %v1798
    %v1800 = vrcp.pop %v1796
    %v1801 = vmul.f32 1.0, %v1800
    %v1802 = vrcp.pop %v1797
    %v1803 = vmul.f32 1.0, %v1802
    %v1804 = vtanh.pop %v1785
    %v1805 = vmul.f32 %v1801, %v1581
    %v1806 = vmul.f32 %v1799, %v1804
    %v1807 = vadd.f32 %v1805, %v1806
    %v1808 = vtanh.pop %v1807
    %v1809 = vmul.f32 %v1803, %v1808
    %v1810 = vld [vmem:[#allocation2 + $0x40] sm:$0xff]
    %v1811 = vld [vmem:[#allocation2 + $0x48] sm:$0xff]
    %v1812 = vld [vmem:[#allocation2 + $0x50] sm:$0xff]
    %v1813 = vld [vmem:[#allocation2 + $0x58] sm:$0xff]
    %v1814 = vadd.f32 %v1653, %v1810
    %v1815 = vadd.f32 %v1655, %v1811
    %v1816 = vadd.f32 %v1694, %v1812
    %v1817 = vadd.f32 %v1696, %v1813
    %v1818 = vxor.u32 %v1814, 2147483648
    %v1819 = vxor.u32 %v1815, 2147483648
    %v1820 = vxor.u32 %v1816, 2147483648
    %v1821 = vmul.f32 %v1818, 1.442695
    %v1822 = vpow.pop %v1821
    %v1823 = vmul.f32 %v1819, 1.442695
    %v1824 = vpow.pop %v1823
    %v1825 = vmul.f32 %v1820, 1.442695
    %v1826 = vpow.pop %v1825
    %v1827 = vadd.f32 %v1822, 1.0
    %v1828 = vadd.f32 %v1824, 1.0
    %v1829 = vadd.f32 %v1826, 1.0
    %v1830 = vrcp.pop %v1827
    %v1831 = vmul.f32 1.0, %v1830
    %v1832 = vrcp.pop %v1828
    %v1833 = vmul.f32 1.0, %v1832
    %v1834 = vrcp.pop %v1829
    %v1835 = vmul.f32 1.0, %v1834
    %v1836 = vtanh.pop %v1817
    %v1837 = vmul.f32 %v1833, %v1613
    %v1838 = vmul.f32 %v1831, %v1836
    %v1839 = vadd.f32 %v1837, %v1838
    %v1840 = vtanh.pop %v1839
    %v1841 = vmul.f32 %v1835, %v1840
    %v1842 = vpack.c.bf16 %v1841, %v1841
    %v1843 = vpack.c.bf16 %v1809, %v1809
    %1844 = vmatprep.subr.bf16.mxu0 %v809
    %1845 = vmatpush1.bf16.msra.mxu0 %v808
    %1846 = vmatprep.subr.bf16.mxu0 %v813
    %1847 = vmatpush1.bf16.msra.mxu0 %v812
    %1848 = vmatprep.subr.bf16.mxu0 %v817
    %1849 = vmatpush1.bf16.msra.mxu0 %v816
    %1850 = vmatprep.subr.bf16.mxu0 %v821
    %1851 = vmatpush1.bf16.msra.mxu0 %v820
    %1852 = vmatprep.subr.bf16.mxu0 %v825
    %1853 = vmatpush1.bf16.msra.mxu0 %v824
    %1854 = vmatprep.subr.bf16.mxu0 %v829
    %1855 = vmatpush1.bf16.msra.mxu0 %v828
    %1856 = vmatprep.subr.bf16.mxu0 %v833
    %1857 = vmatpush1.bf16.msra.mxu0 %v832
    %1858 = vmatprep.subr.bf16.mxu0 %v837
    %1859 = vmatpush1.bf16.msra.mxu0 %v836
    %1860 = vmatprep.subr.bf16.mxu0 %v841
    %1861 = vmatpush1.bf16.msra.mxu0 %v840
    %1862 = vmatprep.subr.bf16.mxu0 %v845
    %1863 = vmatpush1.bf16.msra.mxu0 %v844
    %1864 = vmatprep.subr.bf16.mxu0 %v849
    %1865 = vmatpush1.bf16.msra.mxu0 %v848
    %1866 = vmatprep.subr.bf16.mxu0 %v853
    %1867 = vmatpush1.bf16.msra.mxu0 %v852
    %1868 = vmatprep.subr.bf16.mxu0 %v857
    %1869 = vmatpush1.bf16.msra.mxu0 %v856
    %1870 = vmatprep.subr.bf16.mxu0 %v861
    %1871 = vmatpush1.bf16.msra.mxu0 %v860
    %1872 = vmatprep.subr.bf16.mxu0 %v865
    %1873 = vmatpush1.bf16.msra.mxu0 %v864
    %1874 = vmatprep.subr.bf16.mxu0 %v869
    %1875 = vmatpush1.bf16.msra.mxu0 %v868
    %1876 = vmatprep.mubr.bf16.mxu0 %v1843
    %1877 = vmatmul.mubr.bf16.gmra.mrb[0].mxu0 %v1842
    %v1878 = vpop.f32.mrb[0].mxu0
    %v1879 = vadd.f32 0.0, %v1878
    %v1880 = vpop.f32.mrb[0].mxu0
    %v1881 = vadd.f32 0.0, %v1880
    %v1882 = vpop.f32.mrb[0].mxu0
    %v1883 = vpop.f32.mrb[0].mxu0
    %1884 = vdwg.mxu0
    %1885 = vmatprep.subr.bf16.mxu0 %v811
    %1886 = vmatpush1.bf16.msra.mxu0 %v810
    %1887 = vmatprep.subr.bf16.mxu0 %v815
    %1888 = vmatpush1.bf16.msra.mxu0 %v814
    %1889 = vmatprep.subr.bf16.mxu0 %v819
    %1890 = vmatpush1.bf16.msra.mxu0 %v818
    %1891 = vmatprep.subr.bf16.mxu0 %v823
    %1892 = vmatpush1.bf16.msra.mxu0 %v822
    %1893 = vmatprep.subr.bf16.mxu0 %v827
    %1894 = vmatpush1.bf16.msra.mxu0 %v826
    %1895 = vmatprep.subr.bf16.mxu0 %v831
    %1896 = vmatpush1.bf16.msra.mxu0 %v830
    %1897 = vmatprep.subr.bf16.mxu0 %v835
    %1898 = vmatpush1.bf16.msra.mxu0 %v834
    %1899 = vmatprep.subr.bf16.mxu0 %v839
    %1900 = vmatpush1.bf16.msra.mxu0 %v838
    %1901 = vmatprep.subr.bf16.mxu0 %v843
    %1902 = vmatpush1.bf16.msra.mxu0 %v842
    %1903 = vmatprep.subr.bf16.mxu0 %v847
    %1904 = vmatpush1.bf16.msra.mxu0 %v846
    %1905 = vmatprep.subr.bf16.mxu0 %v851
    %1906 = vmatpush1.bf16.msra.mxu0 %v850
    %1907 = vmatprep.subr.bf16.mxu0 %v855
    %1908 = vmatpush1.bf16.msra.mxu0 %v854
    %1909 = vmatprep.subr.bf16.mxu0 %v859
    %1910 = vmatpush1.bf16.msra.mxu0 %v858
    %1911 = vmatprep.subr.bf16.mxu0 %v863
    %1912 = vmatpush1.bf16.msra.mxu0 %v862
    %1913 = vmatprep.subr.bf16.mxu0 %v867
    %1914 = vmatpush1.bf16.msra.mxu0 %v866
    %1915 = vmatprep.subr.bf16.mxu0 %v871
    %1916 = vmatpush1.bf16.msra.mxu0 %v870
    %1917 = vmatprep.mubr.bf16.mxu0 %v1843
    %1918 = vmatmul.mubr.bf16.gmra.mrb[0].mxu0 %v1842
    %v1919 = vpop.f32.mrb[0].mxu0
    %v1920 = vadd.f32 0.0, %v1919
    %v1921 = vpop.f32.mrb[0].mxu0
    %v1922 = vadd.f32 0.0, %v1921
    %v1923 = vpop.f32.mrb[0].mxu0
    %v1924 = vpop.f32.mrb[0].mxu0
    %1925 = vdwg.mxu0
    %1926 = vmatprep.subr.bf16.mxu0 %v1244
    %1927 = vmatpush1.bf16.msra.mxu0 %v1243
    %1928 = vmatprep.subr.bf16.mxu0 %v1248
    %1929 = vmatpush1.bf16.msra.mxu0 %v1247
    %1930 = vmatprep.subr.bf16.mxu0 %v1252
    %1931 = vmatpush1.bf16.msra.mxu0 %v1251
    %1932 = vmatprep.subr.bf16.mxu0 %v1256
    %1933 = vmatpush1.bf16.msra.mxu0 %v1255
    %1934 = vmatprep.subr.bf16.mxu0 %v1260
    %1935 = vmatpush1.bf16.msra.mxu0 %v1259
    %1936 = vmatprep.subr.bf16.mxu0 %v1264
    %1937 = vmatpush1.bf16.msra.mxu0 %v1263
    %1938 = vmatprep.subr.bf16.mxu0 %v1268
    %1939 = vmatpush1.bf16.msra.mxu0 %v1267
    %1940 = vmatprep.subr.bf16.mxu0 %v1272
    %1941 = vmatpush1.bf16.msra.mxu0 %v1271
    %1942 = vmatprep.subr.bf16.mxu0 %v1276
    %1943 = vmatpush1.bf16.msra.mxu0 %v1275
    %1944 = vmatprep.subr.bf16.mxu0 %v1280
    %1945 = vmatpush1.bf16.msra.mxu0 %v1279
    %1946 = vmatprep.subr.bf16.mxu0 %v1284
    %1947 = vmatpush1.bf16.msra.mxu0 %v1283
    %1948 = vmatprep.subr.bf16.mxu0 %v1288
    %1949 = vmatpush1.bf16.msra.mxu0 %v1287
    %1950 = vmatprep.subr.bf16.mxu0 %v1292
    %1951 = vmatpush1.bf16.msra.mxu0 %v1291
    %1952 = vmatprep.subr.bf16.mxu0 %v1296
    %1953 = vmatpush1.bf16.msra.mxu0 %v1295
    %1954 = vmatprep.subr.bf16.mxu0 %v1300
    %1955 = vmatpush1.bf16.msra.mxu0 %v1299
    %1956 = vmatprep.subr.bf16.mxu0 %v1304
    %1957 = vmatpush1.bf16.msra.mxu0 %v1303
    %1958 = vmatprep.mubr.bf16.mxu0 %v1843
    %1959 = vmatmul.mubr.bf16.gmra.mrb[0].mxu0 %v1842
    %v1960 = vpop.f32.mrb[0].mxu0
    %v1961 = vadd.f32 0.0, %v1960
    %v1962 = vpop.f32.mrb[0].mxu0
    %v1963 = vadd.f32 0.0, %v1962
    %v1964 = vpop.f32.mrb[0].mxu0
    %v1965 = vpop.f32.mrb[0].mxu0
    %1966 = vdwg.mxu0
    %1967 = vmatprep.subr.bf16.mxu0 %v1246
    %1968 = vmatpush1.bf16.msra.mxu0 %v1245
    %1969 = vmatprep.subr.bf16.mxu0 %v1250
    %1970 = vmatpush1.bf16.msra.mxu0 %v1249
    %1971 = vmatprep.subr.bf16.mxu0 %v1254
    %1972 = vmatpush1.bf16.msra.mxu0 %v1253
    %1973 = vmatprep.subr.bf16.mxu0 %v1258
    %1974 = vmatpush1.bf16.msra.mxu0 %v1257
    %1975 = vmatprep.subr.bf16.mxu0 %v1262
    %1976 = vmatpush1.bf16.msra.mxu0 %v1261
    %1977 = vmatprep.subr.bf16.mxu0 %v1266
    %1978 = vmatpush1.bf16.msra.mxu0 %v1265
    %1979 = vmatprep.subr.bf16.mxu0 %v1270
    %1980 = vmatpush1.bf16.msra.mxu0 %v1269
    %1981 = vmatprep.subr.bf16.mxu0 %v1274
    %1982 = vmatpush1.bf16.msra.mxu0 %v1273
    %1983 = vmatprep.subr.bf16.mxu0 %v1278
    %1984 = vmatpush1.bf16.msra.mxu0 %v1277
    %1985 = vmatprep.subr.bf16.mxu0 %v1282
    %1986 = vmatpush1.bf16.msra.mxu0 %v1281
    %1987 = vmatprep.subr.bf16.mxu0 %v1286
    %1988 = vmatpush1.bf16.msra.mxu0 %v1285
    %1989 = vmatprep.subr.bf16.mxu0 %v1290
    %1990 = vmatpush1.bf16.msra.mxu0 %v1289
    %1991 = vmatprep.subr.bf16.mxu0 %v1294
    %1992 = vmatpush1.bf16.msra.mxu0 %v1293
    %1993 = vmatprep.subr.bf16.mxu0 %v1298
    %1994 = vmatpush1.bf16.msra.mxu0 %v1297
    %1995 = vmatprep.subr.bf16.mxu0 %v1302
    %1996 = vmatpush1.bf16.msra.mxu0 %v1301
    %1997 = vmatprep.subr.bf16.mxu0 %v1306
    %1998 = vmatpush1.bf16.msra.mxu0 %v1305
    %1999 = vmatprep.mubr.bf16.mxu0 %v1843
    %2000 = vmatmul.mubr.bf16.gmra.mrb[0].mxu0 %v1842
    %v2001 = vpop.f32.mrb[0].mxu0
    %v2002 = vadd.f32 0.0, %v2001
    %v2003 = vpop.f32.mrb[0].mxu0
    %v2004 = vadd.f32 0.0, %v2003
    %v2005 = vpop.f32.mrb[0].mxu0
    %v2006 = vpop.f32.mrb[0].mxu0
    %2007 = vdwg.mxu0
    %v2008 = vadd.f32 %v1961, %v1539
    %v2009 = vadd.f32 %v1963, %v1543
    %v2010 = vadd.f32 %v2002, %v1547
    %v2011 = vadd.f32 %v2004, %v1551
    %v2012 = vxor.u32 %v2008, 2147483648
    %v2013 = vxor.u32 %v2009, 2147483648
    %v2014 = vxor.u32 %v2010, 2147483648
    %v2015 = vmul.f32 %v2012, 1.442695
    %v2016 = vpow.pop %v2015
    %v2017 = vmul.f32 %v2013, 1.442695
    %v2018 = vpow.pop %v2017
    %v2019 = vmul.f32 %v2014, 1.442695
    %v2020 = vpow.pop %v2019
    %v2021 = vadd.f32 %v2016, 1.0
    %v2022 = vadd.f32 %v2018, 1.0
    %v2023 = vadd.f32 %v2020, 1.0
    %v2024 = vrcp.pop %v2021
    %v2025 = vmul.f32 1.0, %v2024
    %v2026 = vrcp.pop %v2022
    %v2027 = vmul.f32 1.0, %v2026
    %v2028 = vrcp.pop %v2023
    %v2029 = vmul.f32 1.0, %v2028
    %v2030 = vtanh.pop %v2011
    %v2031 = vmul.f32 %v2027, %v1807
    %v2032 = vmul.f32 %v2025, %v2030
    %v2033 = vadd.f32 %v2031, %v2032
    %v2034 = vtanh.pop %v2033
    %v2035 = vmul.f32 %v2029, %v2034
    %v2036 = vld [vmem:[#allocation2 + $0x60] sm:$0xff]
    %v2037 = vld [vmem:[#allocation2 + $0x68] sm:$0xff]
    %v2038 = vld [vmem:[#allocation2 + $0x70] sm:$0xff]
    %v2039 = vld [vmem:[#allocation2 + $0x78] sm:$0xff]
    %v2040 = vadd.f32 %v1879, %v2036
    %v2041 = vadd.f32 %v1881, %v2037
    %v2042 = vadd.f32 %v1920, %v2038
    %v2043 = vadd.f32 %v1922, %v2039
    %v2044 = vxor.u32 %v2040, 2147483648
    %v2045 = vxor.u32 %v2041, 2147483648
    %v2046 = vxor.u32 %v2042, 2147483648
    %v2047 = vmul.f32 %v2044, 1.442695
    %v2048 = vpow.pop %v2047
    %v2049 = vmul.f32 %v2045, 1.442695
    %v2050 = vpow.pop %v2049
    %v2051 = vmul.f32 %v2046, 1.442695
    %v2052 = vpow.pop %v2051
    %v2053 = vadd.f32 %v2048, 1.0
    %v2054 = vadd.f32 %v2050, 1.0
    %v2055 = vadd.f32 %v2052, 1.0
    %v2056 = vrcp.pop %v2053
    %v2057 = vmul.f32 1.0, %v2056
    %v2058 = vrcp.pop %v2054
    %v2059 = vmul.f32 1.0, %v2058
    %v2060 = vrcp.pop %v2055
    %v2061 = vmul.f32 1.0, %v2060
    %v2062 = vtanh.pop %v2043
    %v2063 = vmul.f32 %v2059, %v1839
    %v2064 = vmul.f32 %v2057, %v2062
    %v2065 = vadd.f32 %v2063, %v2064
    %v2066 = vtanh.pop %v2065
    %v2067 = vmul.f32 %v2061, %v2066
    %v2068 = vpack.c.bf16 %v2067, %v2067
    %v2069 = vpack.c.bf16 %v2035, %v2035
    %2070 = vmatprep.subr.bf16.mxu0 %v809
    %2071 = vmatpush1.bf16.msra.mxu0 %v808
    %2072 = vmatprep.subr.bf16.mxu0 %v813
    %2073 = vmatpush1.bf16.msra.mxu0 %v812
    %2074 = vmatprep.subr.bf16.mxu0 %v817
    %2075 = vmatpush1.bf16.msra.mxu0 %v816
    %2076 = vmatprep.subr.bf16.mxu0 %v821
    %2077 = vmatpush1.bf16.msra.mxu0 %v820
    %2078 = vmatprep.subr.bf16.mxu0 %v825
    %2079 = vmatpush1.bf16.msra.mxu0 %v824
    %2080 = vmatprep.subr.bf16.mxu0 %v829
    %2081 = vmatpush1.bf16.msra.mxu0 %v828
    %2082 = vmatprep.subr.bf16.mxu0 %v833
    %2083 = vmatpush1.bf16.msra.mxu0 %v832
    %2084 = vmatprep.subr.bf16.mxu0 %v837
    %2085 = vmatpush1.bf16.msra.mxu0 %v836
    %2086 = vmatprep.subr.bf16.mxu0 %v841
    %2087 = vmatpush1.bf16.msra.mxu0 %v840
    %2088 = vmatprep.subr.bf16.mxu0 %v845
    %2089 = vmatpush1.bf16.msra.mxu0 %v844
    %2090 = vmatprep.subr.bf16.mxu0 %v849
    %2091 = vmatpush1.bf16.msra.mxu0 %v848
    %2092 = vmatprep.subr.bf16.mxu0 %v853
    %2093 = vmatpush1.bf16.msra.mxu0 %v852
    %2094 = vmatprep.subr.bf16.mxu0 %v857
    %2095 = vmatpush1.bf16.msra.mxu0 %v856
    %2096 = vmatprep.subr.bf16.mxu0 %v861
    %2097 = vmatpush1.bf16.msra.mxu0 %v860
    %2098 = vmatprep.subr.bf16.mxu0 %v865
    %2099 = vmatpush1.bf16.msra.mxu0 %v864
    %2100 = vmatprep.subr.bf16.mxu0 %v869
    %2101 = vmatpush1.bf16.msra.mxu0 %v868
    %2102 = vmatprep.mubr.bf16.mxu0 %v2069
    %2103 = vmatmul.mubr.bf16.gmra.mrb[0].mxu0 %v2068
    %v2104 = vpop.f32.mrb[0].mxu0
    %v2105 = vadd.f32 0.0, %v2104
    %v2106 = vpop.f32.mrb[0].mxu0
    %v2107 = vadd.f32 0.0, %v2106
    %v2108 = vpop.f32.mrb[0].mxu0
    %v2109 = vpop.f32.mrb[0].mxu0
    %2110 = vdwg.mxu0
    %2111 = vmatprep.subr.bf16.mxu0 %v811
    %2112 = vmatpush1.bf16.msra.mxu0 %v810
    %2113 = vmatprep.subr.bf16.mxu0 %v815
    %2114 = vmatpush1.bf16.msra.mxu0 %v814
    %2115 = vmatprep.subr.bf16.mxu0 %v819
    %2116 = vmatpush1.bf16.msra.mxu0 %v818
    %2117 = vmatprep.subr.bf16.mxu0 %v823
    %2118 = vmatpush1.bf16.msra.mxu0 %v822
    %2119 = vmatprep.subr.bf16.mxu0 %v827
    %2120 = vmatpush1.bf16.msra.mxu0 %v826
    %2121 = vmatprep.subr.bf16.mxu0 %v831
    %2122 = vmatpush1.bf16.msra.mxu0 %v830
    %2123 = vmatprep.subr.bf16.mxu0 %v835
    %2124 = vmatpush1.bf16.msra.mxu0 %v834
    %2125 = vmatprep.subr.bf16.mxu0 %v839
    %2126 = vmatpush1.bf16.msra.mxu0 %v838
    %2127 = vmatprep.subr.bf16.mxu0 %v843
    %2128 = vmatpush1.bf16.msra.mxu0 %v842
    %2129 = vmatprep.subr.bf16.mxu0 %v847
    %2130 = vmatpush1.bf16.msra.mxu0 %v846
    %2131 = vmatprep.subr.bf16.mxu0 %v851
    %2132 = vmatpush1.bf16.msra.mxu0 %v850
    %2133 = vmatprep.subr.bf16.mxu0 %v855
    %2134 = vmatpush1.bf16.msra.mxu0 %v854
    %2135 = vmatprep.subr.bf16.mxu0 %v859
    %2136 = vmatpush1.bf16.msra.mxu0 %v858
    %2137 = vmatprep.subr.bf16.mxu0 %v863
    %2138 = vmatpush1.bf16.msra.mxu0 %v862
    %2139 = vmatprep.subr.bf16.mxu0 %v867
    %2140 = vmatpush1.bf16.msra.mxu0 %v866
    %2141 = vmatprep.subr.bf16.mxu0 %v871
    %2142 = vmatpush1.bf16.msra.mxu0 %v870
    %2143 = vmatprep.mubr.bf16.mxu0 %v2069
    %2144 = vmatmul.mubr.bf16.gmra.mrb[0].mxu0 %v2068
    %v2145 = vpop.f32.mrb[0].mxu0
    %v2146 = vadd.f32 0.0, %v2145
    %v2147 = vpop.f32.mrb[0].mxu0
    %v2148 = vadd.f32 0.0, %v2147
    %v2149 = vpop.f32.mrb[0].mxu0
    %v2150 = vpop.f32.mrb[0].mxu0
    %2151 = vdwg.mxu0
    %2152 = vmatprep.subr.bf16.mxu0 %v1244
    %2153 = vmatpush1.bf16.msra.mxu0 %v1243
    %2154 = vmatprep.subr.bf16.mxu0 %v1248
    %2155 = vmatpush1.bf16.msra.mxu0 %v1247
    %2156 = vmatprep.subr.bf16.mxu0 %v1252
    %2157 = vmatpush1.bf16.msra.mxu0 %v1251
    %2158 = vmatprep.subr.bf16.mxu0 %v1256
    %2159 = vmatpush1.bf16.msra.mxu0 %v1255
    %2160 = vmatprep.subr.bf16.mxu0 %v1260
    %2161 = vmatpush1.bf16.msra.mxu0 %v1259
    %2162 = vmatprep.subr.bf16.mxu0 %v1264
    %2163 = vmatpush1.bf16.msra.mxu0 %v1263
    %2164 = vmatprep.subr.bf16.mxu0 %v1268
    %2165 = vmatpush1.bf16.msra.mxu0 %v1267
    %2166 = vmatprep.subr.bf16.mxu0 %v1272
    %2167 = vmatpush1.bf16.msra.mxu0 %v1271
    %2168 = vmatprep.subr.bf16.mxu0 %v1276
    %2169 = vmatpush1.bf16.msra.mxu0 %v1275
    %2170 = vmatprep.subr.bf16.mxu0 %v1280
    %2171 = vmatpush1.bf16.msra.mxu0 %v1279
    %2172 = vmatprep.subr.bf16.mxu0 %v1284
    %2173 = vmatpush1.bf16.msra.mxu0 %v1283
    %2174 = vmatprep.subr.bf16.mxu0 %v1288
    %2175 = vmatpush1.bf16.msra.mxu0 %v1287
    %2176 = vmatprep.subr.bf16.mxu0 %v1292
    %2177 = vmatpush1.bf16.msra.mxu0 %v1291
    %2178 = vmatprep.subr.bf16.mxu0 %v1296
    %2179 = vmatpush1.bf16.msra.mxu0 %v1295
    %2180 = vmatprep.subr.bf16.mxu0 %v1300
    %2181 = vmatpush1.bf16.msra.mxu0 %v1299
    %2182 = vmatprep.subr.bf16.mxu0 %v1304
    %2183 = vmatpush1.bf16.msra.mxu0 %v1303
    %2184 = vmatprep.mubr.bf16.mxu0 %v2069
    %2185 = vmatmul.mubr.bf16.gmra.mrb[0].mxu0 %v2068
    %v2186 = vpop.f32.mrb[0].mxu0
    %v2187 = vadd.f32 0.0, %v2186
    %v2188 = vpop.f32.mrb[0].mxu0
    %v2189 = vadd.f32 0.0, %v2188
    %v2190 = vpop.f32.mrb[0].mxu0
    %v2191 = vpop.f32.mrb[0].mxu0
    %2192 = vdwg.mxu0
    %2193 = vmatprep.subr.bf16.mxu0 %v1246
    %2194 = vmatpush1.bf16.msra.mxu0 %v1245
    %2195 = vmatprep.subr.bf16.mxu0 %v1250
    %2196 = vmatpush1.bf16.msra.mxu0 %v1249
    %2197 = vmatprep.subr.bf16.mxu0 %v1254
    %2198 = vmatpush1.bf16.msra.mxu0 %v1253
    %2199 = vmatprep.subr.bf16.mxu0 %v1258
    %2200 = vmatpush1.bf16.msra.mxu0 %v1257
    %2201 = vmatprep.subr.bf16.mxu0 %v1262
    %2202 = vmatpush1.bf16.msra.mxu0 %v1261
    %2203 = vmatprep.subr.bf16.mxu0 %v1266
    %2204 = vmatpush1.bf16.msra.mxu0 %v1265
    %2205 = vmatprep.subr.bf16.mxu0 %v1270
    %2206 = vmatpush1.bf16.msra.mxu0 %v1269
    %2207 = vmatprep.subr.bf16.mxu0 %v1274
    %2208 = vmatpush1.bf16.msra.mxu0 %v1273
    %2209 = vmatprep.subr.bf16.mxu0 %v1278
    %2210 = vmatpush1.bf16.msra.mxu0 %v1277
    %2211 = vmatprep.subr.bf16.mxu0 %v1282
    %2212 = vmatpush1.bf16.msra.mxu0 %v1281
    %2213 = vmatprep.subr.bf16.mxu0 %v1286
    %2214 = vmatpush1.bf16.msra.mxu0 %v1285
    %2215 = vmatprep.subr.bf16.mxu0 %v1290
    %2216 = vmatpush1.bf16.msra.mxu0 %v1289
    %2217 = vmatprep.subr.bf16.mxu0 %v1294
    %2218 = vmatpush1.bf16.msra.mxu0 %v1293
    %2219 = vmatprep.subr.bf16.mxu0 %v1298
    %2220 = vmatpush1.bf16.msra.mxu0 %v1297
    %2221 = vmatprep.subr.bf16.mxu0 %v1302
    %2222 = vmatpush1.bf16.msra.mxu0 %v1301
    %2223 = vmatprep.subr.bf16.mxu0 %v1306
    %2224 = vmatpush1.bf16.msra.mxu0 %v1305
    %2225 = vmatprep.mubr.bf16.mxu0 %v2069
    %2226 = vmatmul.mubr.bf16.gmra.mrb[0].mxu0 %v2068
    %v2227 = vpop.f32.mrb[0].mxu0
    %v2228 = vadd.f32 0.0, %v2227
    %v2229 = vpop.f32.mrb[0].mxu0
    %v2230 = vadd.f32 0.0, %v2229
    %v2231 = vpop.f32.mrb[0].mxu0
    %v2232 = vpop.f32.mrb[0].mxu0
    %2233 = vdwg.mxu0
    %v2234 = vadd.f32 %v2187, %v1539
    %v2235 = vadd.f32 %v2189, %v1543
    %v2236 = vadd.f32 %v2228, %v1547
    %v2237 = vadd.f32 %v2230, %v1551
    %v2238 = vxor.u32 %v2234, 2147483648
    %v2239 = vxor.u32 %v2235, 2147483648
    %v2240 = vxor.u32 %v2236, 2147483648
    %v2241 = vmul.f32 %v2238, 1.442695
    %v2242 = vpow.pop %v2241
    %v2243 = vmul.f32 %v2239, 1.442695
    %v2244 = vpow.pop %v2243
    %v2245 = vmul.f32 %v2240, 1.442695
    %v2246 = vpow.pop %v2245
    %v2247 = vadd.f32 %v2242, 1.0
    %v2248 = vadd.f32 %v2244, 1.0
    %v2249 = vadd.f32 %v2246, 1.0
    %v2250 = vrcp.pop %v2247
    %v2251 = vmul.f32 1.0, %v2250
    %v2252 = vrcp.pop %v2248
    %v2253 = vmul.f32 1.0, %v2252
    %v2254 = vrcp.pop %v2249
    %v2255 = vmul.f32 1.0, %v2254
    %v2256 = vtanh.pop %v2237
    %v2257 = vmul.f32 %v2253, %v2033
    %v2258 = vmul.f32 %v2251, %v2256
    %v2259 = vadd.f32 %v2257, %v2258
    %v2260 = vtanh.pop %v2259
    %v2261 = vmul.f32 %v2255, %v2260
    %v2262 = vld [vmem:[#allocation2 + $0x80] sm:$0xff]
    %v2263 = vld [vmem:[#allocation2 + $0x88] sm:$0xff]
    %v2264 = vld [vmem:[#allocation2 + $0x90] sm:$0xff]
    %v2265 = vld [vmem:[#allocation2 + $0x98] sm:$0xff]
    %v2266 = vadd.f32 %v2105, %v2262
    %v2267 = vadd.f32 %v2107, %v2263
    %v2268 = vadd.f32 %v2146, %v2264
    %v2269 = vadd.f32 %v2148, %v2265
    %v2270 = vxor.u32 %v2266, 2147483648
    %v2271 = vxor.u32 %v2267, 2147483648
    %v2272 = vxor.u32 %v2268, 2147483648
    %v2273 = vmul.f32 %v2270, 1.442695
    %v2274 = vpow.pop %v2273
    %v2275 = vmul.f32 %v2271, 1.442695
    %v2276 = vpow.pop %v2275
    %v2277 = vmul.f32 %v2272, 1.442695
    %v2278 = vpow.pop %v2277
    %v2279 = vadd.f32 %v2274, 1.0
    %v2280 = vadd.f32 %v2276, 1.0
    %v2281 = vadd.f32 %v2278, 1.0
    %v2282 = vrcp.pop %v2279
    %v2283 = vmul.f32 1.0, %v2282
    %v2284 = vrcp.pop %v2280
    %v2285 = vmul.f32 1.0, %v2284
    %v2286 = vrcp.pop %v2281
    %v2287 = vmul.f32 1.0, %v2286
    %v2288 = vtanh.pop %v2269
    %v2289 = vmul.f32 %v2285, %v2065
    %v2290 = vmul.f32 %v2283, %v2288
    %v2291 = vadd.f32 %v2289, %v2290
    %v2292 = vtanh.pop %v2291
    %v2293 = vmul.f32 %v2287, %v2292
    %v2294 = vpack.c.bf16 %v2293, %v2293
    %v2295 = vpack.c.bf16 %v2261, %v2261
    %2296 = vmatprep.subr.bf16.mxu0 %v809
    %2297 = vmatpush1.bf16.msra.mxu0 %v808
    %2298 = vmatprep.subr.bf16.mxu0 %v813
    %2299 = vmatpush1.bf16.msra.mxu0 %v812
    %2300 = vmatprep.subr.bf16.mxu0 %v817
    %2301 = vmatpush1.bf16.msra.mxu0 %v816
    %2302 = vmatprep.subr.bf16.mxu0 %v821
    %2303 = vmatpush1.bf16.msra.mxu0 %v820
    %2304 = vmatprep.subr.bf16.mxu0 %v825
    %2305 = vmatpush1.bf16.msra.mxu0 %v824
    %2306 = vmatprep.subr.bf16.mxu0 %v829
    %2307 = vmatpush1.bf16.msra.mxu0 %v828
    %2308 = vmatprep.subr.bf16.mxu0 %v833
    %2309 = vmatpush1.bf16.msra.mxu0 %v832
    %2310 = vmatprep.subr.bf16.mxu0 %v837
    %2311 = vmatpush1.bf16.msra.mxu0 %v836
    %2312 = vmatprep.subr.bf16.mxu0 %v841
    %2313 = vmatpush1.bf16.msra.mxu0 %v840
    %2314 = vmatprep.subr.bf16.mxu0 %v845
    %2315 = vmatpush1.bf16.msra.mxu0 %v844
    %2316 = vmatprep.subr.bf16.mxu0 %v849
    %2317 = vmatpush1.bf16.msra.mxu0 %v848
    %2318 = vmatprep.subr.bf16.mxu0 %v853
    %2319 = vmatpush1.bf16.msra.mxu0 %v852
    %2320 = vmatprep.subr.bf16.mxu0 %v857
    %2321 = vmatpush1.bf16.msra.mxu0 %v856
    %2322 = vmatprep.subr.bf16.mxu0 %v861
    %2323 = vmatpush1.bf16.msra.mxu0 %v860
    %2324 = vmatprep.subr.bf16.mxu0 %v865
    %2325 = vmatpush1.bf16.msra.mxu0 %v864
    %2326 = vmatprep.subr.bf16.mxu0 %v869
    %2327 = vmatpush1.bf16.msra.mxu0 %v868
    %2328 = vmatprep.mubr.bf16.mxu0 %v2295
    %2329 = vmatmul.mubr.bf16.gmra.mrb[0].mxu0 %v2294
    %v2330 = vpop.f32.mrb[0].mxu0
    %v2331 = vadd.f32 0.0, %v2330
    %v2332 = vpop.f32.mrb[0].mxu0
    %v2333 = vadd.f32 0.0, %v2332
    %v2334 = vpop.f32.mrb[0].mxu0
    %v2335 = vpop.f32.mrb[0].mxu0
    %2336 = vdwg.mxu0
    %2337 = vmatprep.subr.bf16.mxu0 %v811
    %2338 = vmatpush1.bf16.msra.mxu0 %v810
    %2339 = vmatprep.subr.bf16.mxu0 %v815
    %2340 = vmatpush1.bf16.msra.mxu0 %v814
    %2341 = vmatprep.subr.bf16.mxu0 %v819
    %2342 = vmatpush1.bf16.msra.mxu0 %v818
    %2343 = vmatprep.subr.bf16.mxu0 %v823
    %2344 = vmatpush1.bf16.msra.mxu0 %v822
    %2345 = vmatprep.subr.bf16.mxu0 %v827
    %2346 = vmatpush1.bf16.msra.mxu0 %v826
    %2347 = vmatprep.subr.bf16.mxu0 %v831
    %2348 = vmatpush1.bf16.msra.mxu0 %v830
    %2349 = vmatprep.subr.bf16.mxu0 %v835
    %2350 = vmatpush1.bf16.msra.mxu0 %v834
    %2351 = vmatprep.subr.bf16.mxu0 %v839
    %2352 = vmatpush1.bf16.msra.mxu0 %v838
    %2353 = vmatprep.subr.bf16.mxu0 %v843
    %2354 = vmatpush1.bf16.msra.mxu0 %v842
    %2355 = vmatprep.subr.bf16.mxu0 %v847
    %2356 = vmatpush1.bf16.msra.mxu0 %v846
    %2357 = vmatprep.subr.bf16.mxu0 %v851
    %2358 = vmatpush1.bf16.msra.mxu0 %v850
    %2359 = vmatprep.subr.bf16.mxu0 %v855
    %2360 = vmatpush1.bf16.msra.mxu0 %v854
    %2361 = vmatprep.subr.bf16.mxu0 %v859
    %2362 = vmatpush1.bf16.msra.mxu0 %v858
    %2363 = vmatprep.subr.bf16.mxu0 %v863
    %2364 = vmatpush1.bf16.msra.mxu0 %v862
    %2365 = vmatprep.subr.bf16.mxu0 %v867
    %2366 = vmatpush1.bf16.msra.mxu0 %v866
    %2367 = vmatprep.subr.bf16.mxu0 %v871
    %2368 = vmatpush1.bf16.msra.mxu0 %v870
    %2369 = vmatprep.mubr.bf16.mxu0 %v2295
    %2370 = vmatmul.mubr.bf16.gmra.mrb[0].mxu0 %v2294
    %v2371 = vpop.f32.mrb[0].mxu0
    %v2372 = vadd.f32 0.0, %v2371
    %v2373 = vpop.f32.mrb[0].mxu0
    %v2374 = vadd.f32 0.0, %v2373
    %v2375 = vpop.f32.mrb[0].mxu0
    %v2376 = vpop.f32.mrb[0].mxu0
    %2377 = vdwg.mxu0
    %2378 = vmatprep.subr.bf16.mxu0 %v1244
    %2379 = vmatpush1.bf16.msra.mxu0 %v1243
    %2380 = vmatprep.subr.bf16.mxu0 %v1248
    %2381 = vmatpush1.bf16.msra.mxu0 %v1247
    %2382 = vmatprep.subr.bf16.mxu0 %v1252
    %2383 = vmatpush1.bf16.msra.mxu0 %v1251
    %2384 = vmatprep.subr.bf16.mxu0 %v1256
    %2385 = vmatpush1.bf16.msra.mxu0 %v1255
    %2386 = vmatprep.subr.bf16.mxu0 %v1260
    %2387 = vmatpush1.bf16.msra.mxu0 %v1259
    %2388 = vmatprep.subr.bf16.mxu0 %v1264
    %2389 = vmatpush1.bf16.msra.mxu0 %v1263
    %2390 = vmatprep.subr.bf16.mxu0 %v1268
    %2391 = vmatpush1.bf16.msra.mxu0 %v1267
    %2392 = vmatprep.subr.bf16.mxu0 %v1272
    %2393 = vmatpush1.bf16.msra.mxu0 %v1271
    %2394 = vmatprep.subr.bf16.mxu0 %v1276
    %2395 = vmatpush1.bf16.msra.mxu0 %v1275
    %2396 = vmatprep.subr.bf16.mxu0 %v1280
    %2397 = vmatpush1.bf16.msra.mxu0 %v1279
    %2398 = vmatprep.subr.bf16.mxu0 %v1284
    %2399 = vmatpush1.bf16.msra.mxu0 %v1283
    %2400 = vmatprep.subr.bf16.mxu0 %v1288
    %2401 = vmatpush1.bf16.msra.mxu0 %v1287
    %2402 = vmatprep.subr.bf16.mxu0 %v1292
    %2403 = vmatpush1.bf16.msra.mxu0 %v1291
    %2404 = vmatprep.subr.bf16.mxu0 %v1296
    %2405 = vmatpush1.bf16.msra.mxu0 %v1295
    %2406 = vmatprep.subr.bf16.mxu0 %v1300
    %2407 = vmatpush1.bf16.msra.mxu0 %v1299
    %2408 = vmatprep.subr.bf16.mxu0 %v1304
    %2409 = vmatpush1.bf16.msra.mxu0 %v1303
    %2410 = vmatprep.mubr.bf16.mxu0 %v2295
    %2411 = vmatmul.mubr.bf16.gmra.mrb[0].mxu0 %v2294
    %v2412 = vpop.f32.mrb[0].mxu0
    %v2413 = vadd.f32 0.0, %v2412
    %v2414 = vpop.f32.mrb[0].mxu0
    %v2415 = vadd.f32 0.0, %v2414
    %v2416 = vpop.f32.mrb[0].mxu0
    %v2417 = vpop.f32.mrb[0].mxu0
    %2418 = vdwg.mxu0
    %2419 = vmatprep.subr.bf16.mxu0 %v1246
    %2420 = vmatpush1.bf16.msra.mxu0 %v1245
    %2421 = vmatprep.subr.bf16.mxu0 %v1250
    %2422 = vmatpush1.bf16.msra.mxu0 %v1249
    %2423 = vmatprep.subr.bf16.mxu0 %v1254
    %2424 = vmatpush1.bf16.msra.mxu0 %v1253
    %2425 = vmatprep.subr.bf16.mxu0 %v1258
    %2426 = vmatpush1.bf16.msra.mxu0 %v1257
    %2427 = vmatprep.subr.bf16.mxu0 %v1262
    %2428 = vmatpush1.bf16.msra.mxu0 %v1261
    %2429 = vmatprep.subr.bf16.mxu0 %v1266
    %2430 = vmatpush1.bf16.msra.mxu0 %v1265
    %2431 = vmatprep.subr.bf16.mxu0 %v1270
    %2432 = vmatpush1.bf16.msra.mxu0 %v1269
    %2433 = vmatprep.subr.bf16.mxu0 %v1274
    %2434 = vmatpush1.bf16.msra.mxu0 %v1273
    %2435 = vmatprep.subr.bf16.mxu0 %v1278
    %2436 = vmatpush1.bf16.msra.mxu0 %v1277
    %2437 = vmatprep.subr.bf16.mxu0 %v1282
    %2438 = vmatpush1.bf16.msra.mxu0 %v1281
    %2439 = vmatprep.subr.bf16.mxu0 %v1286
    %2440 = vmatpush1.bf16.msra.mxu0 %v1285
    %2441 = vmatprep.subr.bf16.mxu0 %v1290
    %2442 = vmatpush1.bf16.msra.mxu0 %v1289
    %2443 = vmatprep.subr.bf16.mxu0 %v1294
    %2444 = vmatpush1.bf16.msra.mxu0 %v1293
    %2445 = vmatprep.subr.bf16.mxu0 %v1298
    %2446 = vmatpush1.bf16.msra.mxu0 %v1297
    %2447 = vmatprep.subr.bf16.mxu0 %v1302
    %2448 = vmatpush1.bf16.msra.mxu0 %v1301
    %2449 = vmatprep.subr.bf16.mxu0 %v1306
    %2450 = vmatpush1.bf16.msra.mxu0 %v1305
    %2451 = vmatprep.mubr.bf16.mxu0 %v2295
    %2452 = vmatmul.mubr.bf16.gmra.mrb[0].mxu0 %v2294
    %v2453 = vpop.f32.mrb[0].mxu0
    %v2454 = vadd.f32 0.0, %v2453
    %v2455 = vpop.f32.mrb[0].mxu0
    %v2456 = vadd.f32 0.0, %v2455
    %v2457 = vpop.f32.mrb[0].mxu0
    %v2458 = vpop.f32.mrb[0].mxu0
    %2459 = vdwg.mxu0
    %v2460 = vadd.f32 %v2413, %v1539
    %v2461 = vadd.f32 %v2415, %v1543
    %v2462 = vadd.f32 %v2454, %v1547
    %v2463 = vadd.f32 %v2456, %v1551
    %v2464 = vxor.u32 %v2460, 2147483648
    %v2465 = vxor.u32 %v2461, 2147483648
    %v2466 = vxor.u32 %v2462, 2147483648
    %v2467 = vmul.f32 %v2464, 1.442695
    %v2468 = vpow.pop %v2467
    %v2469 = vmul.f32 %v2465, 1.442695
    %v2470 = vpow.pop %v2469
    %v2471 = vmul.f32 %v2466, 1.442695
    %v2472 = vpow.pop %v2471
    %v2473 = vadd.f32 %v2468, 1.0
    %v2474 = vadd.f32 %v2470, 1.0
    %v2475 = vadd.f32 %v2472, 1.0
    %v2476 = vrcp.pop %v2473
    %v2477 = vmul.f32 1.0, %v2476
    %v2478 = vrcp.pop %v2474
    %v2479 = vmul.f32 1.0, %v2478
    %v2480 = vrcp.pop %v2475
    %v2481 = vmul.f32 1.0, %v2480
    %v2482 = vtanh.pop %v2463
    %v2483 = vmul.f32 %v2479, %v2259
    %v2484 = vmul.f32 %v2477, %v2482
    %v2485 = vadd.f32 %v2483, %v2484
    %v2486 = vtanh.pop %v2485
    %v2487 = vmul.f32 %v2481, %v2486
    %v2488 = vld [vmem:[#allocation2 + $0xa0] sm:$0xff]
    %v2489 = vld [vmem:[#allocation2 + $0xa8] sm:$0xff]
    %v2490 = vld [vmem:[#allocation2 + $0xb0] sm:$0xff]
    %v2491 = vld [vmem:[#allocation2 + $0xb8] sm:$0xff]
    %v2492 = vadd.f32 %v2331, %v2488
    %v2493 = vadd.f32 %v2333, %v2489
    %v2494 = vadd.f32 %v2372, %v2490
    %v2495 = vadd.f32 %v2374, %v2491
    %v2496 = vxor.u32 %v2492, 2147483648
    %v2497 = vxor.u32 %v2493, 2147483648
    %v2498 = vxor.u32 %v2494, 2147483648
    %v2499 = vmul.f32 %v2496, 1.442695
    %v2500 = vpow.pop %v2499
    %v2501 = vmul.f32 %v2497, 1.442695
    %v2502 = vpow.pop %v2501
    %v2503 = vmul.f32 %v2498, 1.442695
    %v2504 = vpow.pop %v2503
    %v2505 = vadd.f32 %v2500, 1.0
    %v2506 = vadd.f32 %v2502, 1.0
    %v2507 = vadd.f32 %v2504, 1.0
    %v2508 = vrcp.pop %v2505
    %v2509 = vmul.f32 1.0, %v2508
    %v2510 = vrcp.pop %v2506
    %v2511 = vmul.f32 1.0, %v2510
    %v2512 = vrcp.pop %v2507
    %v2513 = vmul.f32 1.0, %v2512
    %v2514 = vtanh.pop %v2495
    %v2515 = vmul.f32 %v2511, %v2291
    %v2516 = vmul.f32 %v2509, %v2514
    %v2517 = vadd.f32 %v2515, %v2516
    %v2518 = vtanh.pop %v2517
    %v2519 = vmul.f32 %v2513, %v2518
    %v2520 = vpack.c.bf16 %v2519, %v2519
    %v2521 = vpack.c.bf16 %v2487, %v2487
    %2522 = vmatprep.subr.bf16.mxu0 %v809
    %2523 = vmatpush1.bf16.msra.mxu0 %v808
    %2524 = vmatprep.subr.bf16.mxu0 %v813
    %2525 = vmatpush1.bf16.msra.mxu0 %v812
    %2526 = vmatprep.subr.bf16.mxu0 %v817
    %2527 = vmatpush1.bf16.msra.mxu0 %v816
    %2528 = vmatprep.subr.bf16.mxu0 %v821
    %2529 = vmatpush1.bf16.msra.mxu0 %v820
    %2530 = vmatprep.subr.bf16.mxu0 %v825
    %2531 = vmatpush1.bf16.msra.mxu0 %v824
    %2532 = vmatprep.subr.bf16.mxu0 %v829
    %2533 = vmatpush1.bf16.msra.mxu0 %v828
    %2534 = vmatprep.subr.bf16.mxu0 %v833
    %2535 = vmatpush1.bf16.msra.mxu0 %v832
    %2536 = vmatprep.subr.bf16.mxu0 %v837
    %2537 = vmatpush1.bf16.msra.mxu0 %v836
    %2538 = vmatprep.subr.bf16.mxu0 %v841
    %2539 = vmatpush1.bf16.msra.mxu0 %v840
    %2540 = vmatprep.subr.bf16.mxu0 %v845
    %2541 = vmatpush1.bf16.msra.mxu0 %v844
    %2542 = vmatprep.subr.bf16.mxu0 %v849
    %2543 = vmatpush1.bf16.msra.mxu0 %v848
    %2544 = vmatprep.subr.bf16.mxu0 %v853
    %2545 = vmatpush1.bf16.msra.mxu0 %v852
    %2546 = vmatprep.subr.bf16.mxu0 %v857
    %2547 = vmatpush1.bf16.msra.mxu0 %v856
    %2548 = vmatprep.subr.bf16.mxu0 %v861
    %2549 = vmatpush1.bf16.msra.mxu0 %v860
    %2550 = vmatprep.subr.bf16.mxu0 %v865
    %2551 = vmatpush1.bf16.msra.mxu0 %v864
    %2552 = vmatprep.subr.bf16.mxu0 %v869
    %2553 = vmatpush1.bf16.msra.mxu0 %v868
    %2554 = vmatprep.mubr.bf16.mxu0 %v2521
    %2555 = vmatmul.mubr.bf16.gmra.mrb[0].mxu0 %v2520
    %v2556 = vpop.f32.mrb[0].mxu0
    %v2557 = vadd.f32 0.0, %v2556
    %v2558 = vpop.f32.mrb[0].mxu0
    %v2559 = vadd.f32 0.0, %v2558
    %v2560 = vpop.f32.mrb[0].mxu0
    %v2561 = vpop.f32.mrb[0].mxu0
    %2562 = vdwg.mxu0
    %2563 = vmatprep.subr.bf16.mxu0 %v811
    %2564 = vmatpush1.bf16.msra.mxu0 %v810
    %2565 = vmatprep.subr.bf16.mxu0 %v815
    %2566 = vmatpush1.bf16.msra.mxu0 %v814
    %2567 = vmatprep.subr.bf16.mxu0 %v819
    %2568 = vmatpush1.bf16.msra.mxu0 %v818
    %2569 = vmatprep.subr.bf16.mxu0 %v823
    %2570 = vmatpush1.bf16.msra.mxu0 %v822
    %2571 = vmatprep.subr.bf16.mxu0 %v827
    %2572 = vmatpush1.bf16.msra.mxu0 %v826
    %2573 = vmatprep.subr.bf16.mxu0 %v831
    %2574 = vmatpush1.bf16.msra.mxu0 %v830
    %2575 = vmatprep.subr.bf16.mxu0 %v835
    %2576 = vmatpush1.bf16.msra.mxu0 %v834
    %2577 = vmatprep.subr.bf16.mxu0 %v839
    %2578 = vmatpush1.bf16.msra.mxu0 %v838
    %2579 = vmatprep.subr.bf16.mxu0 %v843
    %2580 = vmatpush1.bf16.msra.mxu0 %v842
    %2581 = vmatprep.subr.bf16.mxu0 %v847
    %2582 = vmatpush1.bf16.msra.mxu0 %v846
    %2583 = vmatprep.subr.bf16.mxu0 %v851
    %2584 = vmatpush1.bf16.msra.mxu0 %v850
    %2585 = vmatprep.subr.bf16.mxu0 %v855
    %2586 = vmatpush1.bf16.msra.mxu0 %v854
    %2587 = vmatprep.subr.bf16.mxu0 %v859
    %2588 = vmatpush1.bf16.msra.mxu0 %v858
    %2589 = vmatprep.subr.bf16.mxu0 %v863
    %2590 = vmatpush1.bf16.msra.mxu0 %v862
    %2591 = vmatprep.subr.bf16.mxu0 %v867
    %2592 = vmatpush1.bf16.msra.mxu0 %v866
    %2593 = vmatprep.subr.bf16.mxu0 %v871
    %2594 = vmatpush1.bf16.msra.mxu0 %v870
    %2595 = vmatprep.mubr.bf16.mxu0 %v2521
    %2596 = vmatmul.mubr.bf16.gmra.mrb[0].mxu0 %v2520
    %v2597 = vpop.f32.mrb[0].mxu0
    %v2598 = vadd.f32 0.0, %v2597
    %v2599 = vpop.f32.mrb[0].mxu0
    %v2600 = vadd.f32 0.0, %v2599
    %v2601 = vpop.f32.mrb[0].mxu0
    %v2602 = vpop.f32.mrb[0].mxu0
    %2603 = vdwg.mxu0
    %2604 = vmatprep.subr.bf16.mxu0 %v1244
    %2605 = vmatpush1.bf16.msra.mxu0 %v1243
    %2606 = vmatprep.subr.bf16.mxu0 %v1248
    %2607 = vmatpush1.bf16.msra.mxu0 %v1247
    %2608 = vmatprep.subr.bf16.mxu0 %v1252
    %2609 = vmatpush1.bf16.msra.mxu0 %v1251
    %2610 = vmatprep.subr.bf16.mxu0 %v1256
    %2611 = vmatpush1.bf16.msra.mxu0 %v1255
    %2612 = vmatprep.subr.bf16.mxu0 %v1260
    %2613 = vmatpush1.bf16.msra.mxu0 %v1259
    %2614 = vmatprep.subr.bf16.mxu0 %v1264
    %2615 = vmatpush1.bf16.msra.mxu0 %v1263
    %2616 = vmatprep.subr.bf16.mxu0 %v1268
    %2617 = vmatpush1.bf16.msra.mxu0 %v1267
    %2618 = vmatprep.subr.bf16.mxu0 %v1272
    %2619 = vmatpush1.bf16.msra.mxu0 %v1271
    %2620 = vmatprep.subr.bf16.mxu0 %v1276
    %2621 = vmatpush1.bf16.msra.mxu0 %v1275
    %2622 = vmatprep.subr.bf16.mxu0 %v1280
    %2623 = vmatpush1.bf16.msra.mxu0 %v1279
    %2624 = vmatprep.subr.bf16.mxu0 %v1284
    %2625 = vmatpush1.bf16.msra.mxu0 %v1283
    %2626 = vmatprep.subr.bf16.mxu0 %v1288
    %2627 = vmatpush1.bf16.msra.mxu0 %v1287
    %2628 = vmatprep.subr.bf16.mxu0 %v1292
    %2629 = vmatpush1.bf16.msra.mxu0 %v1291
    %2630 = vmatprep.subr.bf16.mxu0 %v1296
    %2631 = vmatpush1.bf16.msra.mxu0 %v1295
    %2632 = vmatprep.subr.bf16.mxu0 %v1300
    %2633 = vmatpush1.bf16.msra.mxu0 %v1299
    %2634 = vmatprep.subr.bf16.mxu0 %v1304
    %2635 = vmatpush1.bf16.msra.mxu0 %v1303
    %2636 = vmatprep.mubr.bf16.mxu0 %v2521
    %2637 = vmatmul.mubr.bf16.gmra.mrb[0].mxu0 %v2520
    %v2638 = vpop.f32.mrb[0].mxu0
    %v2639 = vadd.f32 0.0, %v2638
    %v2640 = vpop.f32.mrb[0].mxu0
    %v2641 = vadd.f32 0.0, %v2640
    %v2642 = vpop.f32.mrb[0].mxu0
    %v2643 = vpop.f32.mrb[0].mxu0
    %2644 = vdwg.mxu0
    %2645 = vmatprep.subr.bf16.mxu0 %v1246
    %2646 = vmatpush1.bf16.msra.mxu0 %v1245
    %2647 = vmatprep.subr.bf16.mxu0 %v1250
    %2648 = vmatpush1.bf16.msra.mxu0 %v1249
    %2649 = vmatprep.subr.bf16.mxu0 %v1254
    %2650 = vmatpush1.bf16.msra.mxu0 %v1253
    %2651 = vmatprep.subr.bf16.mxu0 %v1258
    %2652 = vmatpush1.bf16.msra.mxu0 %v1257
    %2653 = vmatprep.subr.bf16.mxu0 %v1262
    %2654 = vmatpush1.bf16.msra.mxu0 %v1261
    %2655 = vmatprep.subr.bf16.mxu0 %v1266
    %2656 = vmatpush1.bf16.msra.mxu0 %v1265
    %2657 = vmatprep.subr.bf16.mxu0 %v1270
    %2658 = vmatpush1.bf16.msra.mxu0 %v1269
    %2659 = vmatprep.subr.bf16.mxu0 %v1274
    %2660 = vmatpush1.bf16.msra.mxu0 %v1273
    %2661 = vmatprep.subr.bf16.mxu0 %v1278
    %2662 = vmatpush1.bf16.msra.mxu0 %v1277
    %2663 = vmatprep.subr.bf16.mxu0 %v1282
    %2664 = vmatpush1.bf16.msra.mxu0 %v1281
    %2665 = vmatprep.subr.bf16.mxu0 %v1286
    %2666 = vmatpush1.bf16.msra.mxu0 %v1285
    %2667 = vmatprep.subr.bf16.mxu0 %v1290
    %2668 = vmatpush1.bf16.msra.mxu0 %v1289
    %2669 = vmatprep.subr.bf16.mxu0 %v1294
    %2670 = vmatpush1.bf16.msra.mxu0 %v1293
    %2671 = vmatprep.subr.bf16.mxu0 %v1298
    %2672 = vmatpush1.bf16.msra.mxu0 %v1297
    %2673 = vmatprep.subr.bf16.mxu0 %v1302
    %2674 = vmatpush1.bf16.msra.mxu0 %v1301
    %2675 = vmatprep.subr.bf16.mxu0 %v1306
    %2676 = vmatpush1.bf16.msra.mxu0 %v1305
    %2677 = vmatprep.mubr.bf16.mxu0 %v2521
    %2678 = vmatmul.mubr.bf16.gmra.mrb[0].mxu0 %v2520
    %v2679 = vpop.f32.mrb[0].mxu0
    %v2680 = vadd.f32 0.0, %v2679
    %v2681 = vpop.f32.mrb[0].mxu0
    %v2682 = vadd.f32 0.0, %v2681
    %v2683 = vpop.f32.mrb[0].mxu0
    %v2684 = vpop.f32.mrb[0].mxu0
    %2685 = vdwg.mxu0
    %v2686 = vadd.f32 %v2639, %v1539
    %v2687 = vadd.f32 %v2641, %v1543
    %v2688 = vadd.f32 %v2680, %v1547
    %v2689 = vadd.f32 %v2682, %v1551
    %v2690 = vxor.u32 %v2686, 2147483648
    %v2691 = vxor.u32 %v2687, 2147483648
    %v2692 = vxor.u32 %v2688, 2147483648
    %v2693 = vmul.f32 %v2690, 1.442695
    %v2694 = vpow.pop %v2693
    %v2695 = vmul.f32 %v2691, 1.442695
    %v2696 = vpow.pop %v2695
    %v2697 = vmul.f32 %v2692, 1.442695
    %v2698 = vpow.pop %v2697
    %v2699 = vadd.f32 %v2694, 1.0
    %v2700 = vadd.f32 %v2696, 1.0
    %v2701 = vadd.f32 %v2698, 1.0
    %v2702 = vrcp.pop %v2699
    %v2703 = vmul.f32 1.0, %v2702
    %v2704 = vrcp.pop %v2700
    %v2705 = vmul.f32 1.0, %v2704
    %v2706 = vrcp.pop %v2701
    %v2707 = vmul.f32 1.0, %v2706
    %v2708 = vtanh.pop %v2689
    %v2709 = vmul.f32 %v2705, %v2485
    %v2710 = vmul.f32 %v2703, %v2708
    %v2711 = vadd.f32 %v2709, %v2710
    %v2712 = vtanh.pop %v2711
    %v2713 = vmul.f32 %v2707, %v2712
    %v2714 = vld [vmem:[#allocation2 + $0xc0] sm:$0xff]
    %v2715 = vld [vmem:[#allocation2 + $0xc8] sm:$0xff]
    %v2716 = vld [vmem:[#allocation2 + $0xd0] sm:$0xff]
    %v2717 = vld [vmem:[#allocation2 + $0xd8] sm:$0xff]
    %v2718 = vadd.f32 %v2557, %v2714
    %v2719 = vadd.f32 %v2559, %v2715
    %v2720 = vadd.f32 %v2598, %v2716
    %v2721 = vadd.f32 %v2600, %v2717
    %v2722 = vxor.u32 %v2718, 2147483648
    %v2723 = vxor.u32 %v2719, 2147483648
    %v2724 = vxor.u32 %v2720, 2147483648
    %v2725 = vmul.f32 %v2722, 1.442695
    %v2726 = vpow.pop %v2725
    %v2727 = vmul.f32 %v2723, 1.442695
    %v2728 = vpow.pop %v2727
    %v2729 = vmul.f32 %v2724, 1.442695
    %v2730 = vpow.pop %v2729
    %v2731 = vadd.f32 %v2726, 1.0
    %v2732 = vadd.f32 %v2728, 1.0
    %v2733 = vadd.f32 %v2730, 1.0
    %v2734 = vrcp.pop %v2731
    %v2735 = vmul.f32 1.0, %v2734
    %v2736 = vrcp.pop %v2732
    %v2737 = vmul.f32 1.0, %v2736
    %v2738 = vrcp.pop %v2733
    %v2739 = vmul.f32 1.0, %v2738
    %v2740 = vtanh.pop %v2721
    %v2741 = vmul.f32 %v2737, %v2517
    %v2742 = vmul.f32 %v2735, %v2740
    %v2743 = vadd.f32 %v2741, %v2742
    %v2744 = vtanh.pop %v2743
    %v2745 = vmul.f32 %v2739, %v2744
    %v2746 = vpack.c.bf16 %v2745, %v2745
    %v2747 = vpack.c.bf16 %v2713, %v2713
    %2748 = vmatprep.subr.bf16.mxu0 %v809
    %2749 = vmatpush1.bf16.msra.mxu0 %v808
    %2750 = vmatprep.subr.bf16.mxu0 %v813
    %2751 = vmatpush1.bf16.msra.mxu0 %v812
    %2752 = vmatprep.subr.bf16.mxu0 %v817
    %2753 = vmatpush1.bf16.msra.mxu0 %v816
    %2754 = vmatprep.subr.bf16.mxu0 %v821
    %2755 = vmatpush1.bf16.msra.mxu0 %v820
    %2756 = vmatprep.subr.bf16.mxu0 %v825
    %2757 = vmatpush1.bf16.msra.mxu0 %v824
    %2758 = vmatprep.subr.bf16.mxu0 %v829
    %2759 = vmatpush1.bf16.msra.mxu0 %v828
    %2760 = vmatprep.subr.bf16.mxu0 %v833
    %2761 = vmatpush1.bf16.msra.mxu0 %v832
    %2762 = vmatprep.subr.bf16.mxu0 %v837
    %2763 = vmatpush1.bf16.msra.mxu0 %v836
    %2764 = vmatprep.subr.bf16.mxu0 %v841
    %2765 = vmatpush1.bf16.msra.mxu0 %v840
    %2766 = vmatprep.subr.bf16.mxu0 %v845
    %2767 = vmatpush1.bf16.msra.mxu0 %v844
    %2768 = vmatprep.subr.bf16.mxu0 %v849
    %2769 = vmatpush1.bf16.msra.mxu0 %v848
    %2770 = vmatprep.subr.bf16.mxu0 %v853
    %2771 = vmatpush1.bf16.msra.mxu0 %v852
    %2772 = vmatprep.subr.bf16.mxu0 %v857
    %2773 = vmatpush1.bf16.msra.mxu0 %v856
    %2774 = vmatprep.subr.bf16.mxu0 %v861
    %2775 = vmatpush1.bf16.msra.mxu0 %v860
    %2776 = vmatprep.subr.bf16.mxu0 %v865
    %2777 = vmatpush1.bf16.msra.mxu0 %v864
    %2778 = vmatprep.subr.bf16.mxu0 %v869
    %2779 = vmatpush1.bf16.msra.mxu0 %v868
    %2780 = vmatprep.mubr.bf16.mxu0 %v2747
    %2781 = vmatmul.mubr.bf16.gmra.mrb[0].mxu0 %v2746
    %v2782 = vpop.f32.mrb[0].mxu0
    %v2783 = vadd.f32 0.0, %v2782
    %v2784 = vpop.f32.mrb[0].mxu0
    %v2785 = vadd.f32 0.0, %v2784
    %v2786 = vpop.f32.mrb[0].mxu0
    %v2787 = vpop.f32.mrb[0].mxu0
    %2788 = vdwg.mxu0
    %2789 = vmatprep.subr.bf16.mxu0 %v811
    %2790 = vmatpush1.bf16.msra.mxu0 %v810
    %2791 = vmatprep.subr.bf16.mxu0 %v815
    %2792 = vmatpush1.bf16.msra.mxu0 %v814
    %2793 = vmatprep.subr.bf16.mxu0 %v819
    %2794 = vmatpush1.bf16.msra.mxu0 %v818
    %2795 = vmatprep.subr.bf16.mxu0 %v823
    %2796 = vmatpush1.bf16.msra.mxu0 %v822
    %2797 = vmatprep.subr.bf16.mxu0 %v827
    %2798 = vmatpush1.bf16.msra.mxu0 %v826
    %2799 = vmatprep.subr.bf16.mxu0 %v831
    %2800 = vmatpush1.bf16.msra.mxu0 %v830
    %2801 = vmatprep.subr.bf16.mxu0 %v835
    %2802 = vmatpush1.bf16.msra.mxu0 %v834
    %2803 = vmatprep.subr.bf16.mxu0 %v839
    %2804 = vmatpush1.bf16.msra.mxu0 %v838
    %2805 = vmatprep.subr.bf16.mxu0 %v843
    %2806 = vmatpush1.bf16.msra.mxu0 %v842
    %2807 = vmatprep.subr.bf16.mxu0 %v847
    %2808 = vmatpush1.bf16.msra.mxu0 %v846
    %2809 = vmatprep.subr.bf16.mxu0 %v851
    %2810 = vmatpush1.bf16.msra.mxu0 %v850
    %2811 = vmatprep.subr.bf16.mxu0 %v855
    %2812 = vmatpush1.bf16.msra.mxu0 %v854
    %2813 = vmatprep.subr.bf16.mxu0 %v859
    %2814 = vmatpush1.bf16.msra.mxu0 %v858
    %2815 = vmatprep.subr.bf16.mxu0 %v863
    %2816 = vmatpush1.bf16.msra.mxu0 %v862
    %2817 = vmatprep.subr.bf16.mxu0 %v867
    %2818 = vmatpush1.bf16.msra.mxu0 %v866
    %2819 = vmatprep.subr.bf16.mxu0 %v871
    %2820 = vmatpush1.bf16.msra.mxu0 %v870
    %2821 = vmatprep.mubr.bf16.mxu0 %v2747
    %2822 = vmatmul.mubr.bf16.gmra.mrb[0].mxu0 %v2746
    %v2823 = vpop.f32.mrb[0].mxu0
    %v2824 = vadd.f32 0.0, %v2823
    %v2825 = vpop.f32.mrb[0].mxu0
    %v2826 = vadd.f32 0.0, %v2825
    %v2827 = vpop.f32.mrb[0].mxu0
    %v2828 = vpop.f32.mrb[0].mxu0
    %2829 = vdwg.mxu0
    %2830 = vmatprep.subr.bf16.mxu0 %v1244
    %2831 = vmatpush1.bf16.msra.mxu0 %v1243
    %2832 = vmatprep.subr.bf16.mxu0 %v1248
    %2833 = vmatpush1.bf16.msra.mxu0 %v1247
    %2834 = vmatprep.subr.bf16.mxu0 %v1252
    %2835 = vmatpush1.bf16.msra.mxu0 %v1251
    %2836 = vmatprep.subr.bf16.mxu0 %v1256
    %2837 = vmatpush1.bf16.msra.mxu0 %v1255
    %2838 = vmatprep.subr.bf16.mxu0 %v1260
    %2839 = vmatpush1.bf16.msra.mxu0 %v1259
    %2840 = vmatprep.subr.bf16.mxu0 %v1264
    %2841 = vmatpush1.bf16.msra.mxu0 %v1263
    %2842 = vmatprep.subr.bf16.mxu0 %v1268
    %2843 = vmatpush1.bf16.msra.mxu0 %v1267
    %2844 = vmatprep.subr.bf16.mxu0 %v1272
    %2845 = vmatpush1.bf16.msra.mxu0 %v1271
    %2846 = vmatprep.subr.bf16.mxu0 %v1276
    %2847 = vmatpush1.bf16.msra.mxu0 %v1275
    %2848 = vmatprep.subr.bf16.mxu0 %v1280
    %2849 = vmatpush1.bf16.msra.mxu0 %v1279
    %2850 = vmatprep.subr.bf16.mxu0 %v1284
    %2851 = vmatpush1.bf16.msra.mxu0 %v1283
    %2852 = vmatprep.subr.bf16.mxu0 %v1288
    %2853 = vmatpush1.bf16.msra.mxu0 %v1287
    %2854 = vmatprep.subr.bf16.mxu0 %v1292
    %2855 = vmatpush1.bf16.msra.mxu0 %v1291
    %2856 = vmatprep.subr.bf16.mxu0 %v1296
    %2857 = vmatpush1.bf16.msra.mxu0 %v1295
    %2858 = vmatprep.subr.bf16.mxu0 %v1300
    %2859 = vmatpush1.bf16.msra.mxu0 %v1299
    %2860 = vmatprep.subr.bf16.mxu0 %v1304
    %2861 = vmatpush1.bf16.msra.mxu0 %v1303
    %2862 = vmatprep.mubr.bf16.mxu0 %v2747
    %2863 = vmatmul.mubr.bf16.gmra.mrb[0].mxu0 %v2746
    %v2864 = vpop.f32.mrb[0].mxu0
    %v2865 = vadd.f32 0.0, %v2864
    %v2866 = vpop.f32.mrb[0].mxu0
    %v2867 = vadd.f32 0.0, %v2866
    %v2868 = vpop.f32.mrb[0].mxu0
    %v2869 = vpop.f32.mrb[0].mxu0
    %2870 = vdwg.mxu0
    %2871 = vmatprep.subr.bf16.mxu0 %v1246
    %2872 = vmatpush1.bf16.msra.mxu0 %v1245
    %2873 = vmatprep.subr.bf16.mxu0 %v1250
    %2874 = vmatpush1.bf16.msra.mxu0 %v1249
    %2875 = vmatprep.subr.bf16.mxu0 %v1254
    %2876 = vmatpush1.bf16.msra.mxu0 %v1253
    %2877 = vmatprep.subr.bf16.mxu0 %v1258
    %2878 = vmatpush1.bf16.msra.mxu0 %v1257
    %2879 = vmatprep.subr.bf16.mxu0 %v1262
    %2880 = vmatpush1.bf16.msra.mxu0 %v1261
    %2881 = vmatprep.subr.bf16.mxu0 %v1266
    %2882 = vmatpush1.bf16.msra.mxu0 %v1265
    %2883 = vmatprep.subr.bf16.mxu0 %v1270
    %2884 = vmatpush1.bf16.msra.mxu0 %v1269
    %2885 = vmatprep.subr.bf16.mxu0 %v1274
    %2886 = vmatpush1.bf16.msra.mxu0 %v1273
    %2887 = vmatprep.subr.bf16.mxu0 %v1278
    %2888 = vmatpush1.bf16.msra.mxu0 %v1277
    %2889 = vmatprep.subr.bf16.mxu0 %v1282
    %2890 = vmatpush1.bf16.msra.mxu0 %v1281
    %2891 = vmatprep.subr.bf16.mxu0 %v1286
    %2892 = vmatpush1.bf16.msra.mxu0 %v1285
    %2893 = vmatprep.subr.bf16.mxu0 %v1290
    %2894 = vmatpush1.bf16.msra.mxu0 %v1289
    %2895 = vmatprep.subr.bf16.mxu0 %v1294
    %2896 = vmatpush1.bf16.msra.mxu0 %v1293
    %2897 = vmatprep.subr.bf16.mxu0 %v1298
    %2898 = vmatpush1.bf16.msra.mxu0 %v1297
    %2899 = vmatprep.subr.bf16.mxu0 %v1302
    %2900 = vmatpush1.bf16.msra.mxu0 %v1301
    %2901 = vmatprep.subr.bf16.mxu0 %v1306
    %2902 = vmatpush1.bf16.msra.mxu0 %v1305
    %2903 = vmatprep.mubr.bf16.mxu0 %v2747
    %2904 = vmatmul.mubr.bf16.gmra.mrb[0].mxu0 %v2746
    %v2905 = vpop.f32.mrb[0].mxu0
    %v2906 = vadd.f32 0.0, %v2905
    %v2907 = vpop.f32.mrb[0].mxu0
    %v2908 = vadd.f32 0.0, %v2907
    %v2909 = vpop.f32.mrb[0].mxu0
    %v2910 = vpop.f32.mrb[0].mxu0
    %2911 = vdwg.mxu0
    %v2912 = vadd.f32 %v2865, %v1539
    %v2913 = vadd.f32 %v2867, %v1543
    %v2914 = vadd.f32 %v2906, %v1547
    %v2915 = vadd.f32 %v2908, %v1551
    %v2916 = vxor.u32 %v2912, 2147483648
    %v2917 = vxor.u32 %v2913, 2147483648
    %v2918 = vxor.u32 %v2914, 2147483648
    %v2919 = vmul.f32 %v2916, 1.442695
    %v2920 = vpow.pop %v2919
    %v2921 = vmul.f32 %v2917, 1.442695
    %v2922 = vpow.pop %v2921
    %v2923 = vmul.f32 %v2918, 1.442695
    %v2924 = vpow.pop %v2923
    %v2925 = vadd.f32 %v2920, 1.0
    %v2926 = vadd.f32 %v2922, 1.0
    %v2927 = vadd.f32 %v2924, 1.0
    %v2928 = vrcp.pop %v2925
    %v2929 = vmul.f32 1.0, %v2928
    %v2930 = vrcp.pop %v2926
    %v2931 = vmul.f32 1.0, %v2930
    %v2932 = vrcp.pop %v2927
    %v2933 = vmul.f32 1.0, %v2932
    %v2934 = vtanh.pop %v2915
    %v2935 = vmul.f32 %v2931, %v2711
    %v2936 = vmul.f32 %v2929, %v2934
    %v2937 = vadd.f32 %v2935, %v2936
    %v2938 = vtanh.pop %v2937
    %v2939 = vmul.f32 %v2933, %v2938
    %v2940 = vld [vmem:[#allocation2 + $0xe0] sm:$0xff]
    %v2941 = vld [vmem:[#allocation2 + $0xe8] sm:$0xff]
    %v2942 = vld [vmem:[#allocation2 + $0xf0] sm:$0xff]
    %v2943 = vld [vmem:[#allocation2 + $0xf8] sm:$0xff]
    %v2944 = vadd.f32 %v2783, %v2940
    %v2945 = vadd.f32 %v2785, %v2941
    %v2946 = vadd.f32 %v2824, %v2942
    %v2947 = vadd.f32 %v2826, %v2943
    %v2948 = vxor.u32 %v2944, 2147483648
    %v2949 = vxor.u32 %v2945, 2147483648
    %v2950 = vxor.u32 %v2946, 2147483648
    %v2951 = vmul.f32 %v2948, 1.442695
    %v2952 = vpow.pop %v2951
    %v2953 = vmul.f32 %v2949, 1.442695
    %v2954 = vpow.pop %v2953
    %v2955 = vmul.f32 %v2950, 1.442695
    %v2956 = vpow.pop %v2955
    %v2957 = vadd.f32 %v2952, 1.0
    %v2958 = vadd.f32 %v2954, 1.0
    %v2959 = vadd.f32 %v2956, 1.0
    %v2960 = vrcp.pop %v2957
    %v2961 = vmul.f32 1.0, %v2960
    %v2962 = vrcp.pop %v2958
    %v2963 = vmul.f32 1.0, %v2962
    %v2964 = vrcp.pop %v2959
    %v2965 = vmul.f32 1.0, %v2964
    %v2966 = vtanh.pop %v2947
    %v2967 = vmul.f32 %v2963, %v2743
    %v2968 = vmul.f32 %v2961, %v2966
    %v2969 = vadd.f32 %v2967, %v2968
    %v2970 = vtanh.pop %v2969
    %v2971 = vmul.f32 %v2965, %v2970
    %v2972 = vpack.c.bf16 %v2971, %v2971
    %v2973 = vpack.c.bf16 %v2939, %v2939
    %2974 = vmatprep.subr.bf16.mxu0 %v1244
    %2975 = vmatpush1.bf16.msra.mxu0 %v1243
    %2976 = vmatprep.subr.bf16.mxu0 %v1248
    %2977 = vmatpush1.bf16.msra.mxu0 %v1247
    %2978 = vmatprep.subr.bf16.mxu0 %v1252
    %2979 = vmatpush1.bf16.msra.mxu0 %v1251
    %2980 = vmatprep.subr.bf16.mxu0 %v1256
    %2981 = vmatpush1.bf16.msra.mxu0 %v1255
    %2982 = vmatprep.subr.bf16.mxu0 %v1260
    %2983 = vmatpush1.bf16.msra.mxu0 %v1259
    %2984 = vmatprep.subr.bf16.mxu0 %v1264
    %2985 = vmatpush1.bf16.msra.mxu0 %v1263
    %2986 = vmatprep.subr.bf16.mxu0 %v1268
    %2987 = vmatpush1.bf16.msra.mxu0 %v1267
    %2988 = vmatprep.subr.bf16.mxu0 %v1272
    %2989 = vmatpush1.bf16.msra.mxu0 %v1271
    %2990 = vmatprep.subr.bf16.mxu0 %v1276
    %2991 = vmatpush1.bf16.msra.mxu0 %v1275
    %2992 = vmatprep.subr.bf16.mxu0 %v1280
    %2993 = vmatpush1.bf16.msra.mxu0 %v1279
    %2994 = vmatprep.subr.bf16.mxu0 %v1284
    %2995 = vmatpush1.bf16.msra.mxu0 %v1283
    %2996 = vmatprep.subr.bf16.mxu0 %v1288
    %2997 = vmatpush1.bf16.msra.mxu0 %v1287
    %2998 = vmatprep.subr.bf16.mxu0 %v1292
    %2999 = vmatpush1.bf16.msra.mxu0 %v1291
    %3000 = vmatprep.subr.bf16.mxu0 %v1296
    %3001 = vmatpush1.bf16.msra.mxu0 %v1295
    %3002 = vmatprep.subr.bf16.mxu0 %v1300
    %3003 = vmatpush1.bf16.msra.mxu0 %v1299
    %3004 = vmatprep.subr.bf16.mxu0 %v1304
    %3005 = vmatpush1.bf16.msra.mxu0 %v1303
    %3006 = vmatprep.mubr.bf16.mxu0 %v2973
    %3007 = vmatmul.mubr.bf16.gmra.mrb[0].mxu0 %v2972
    %v3008 = vpop.f32.mrb[0].mxu0
    %v3009 = vadd.f32 0.0, %v3008
    %v3010 = vpop.f32.mrb[0].mxu0
    %v3011 = vadd.f32 0.0, %v3010
    %v3012 = vpop.f32.mrb[0].mxu0
    %v3013 = vpop.f32.mrb[0].mxu0
    %3014 = vdwg.mxu0
    %3015 = vmatprep.subr.bf16.mxu0 %v1246
    %3016 = vmatpush1.bf16.msra.mxu0 %v1245
    %3017 = vmatprep.subr.bf16.mxu0 %v1250
    %3018 = vmatpush1.bf16.msra.mxu0 %v1249
    %3019 = vmatprep.subr.bf16.mxu0 %v1254
    %3020 = vmatpush1.bf16.msra.mxu0 %v1253
    %3021 = vmatprep.subr.bf16.mxu0 %v1258
    %3022 = vmatpush1.bf16.msra.mxu0 %v1257
    %3023 = vmatprep.subr.bf16.mxu0 %v1262
    %3024 = vmatpush1.bf16.msra.mxu0 %v1261
    %3025 = vmatprep.subr.bf16.mxu0 %v1266
    %3026 = vmatpush1.bf16.msra.mxu0 %v1265
    %3027 = vmatprep.subr.bf16.mxu0 %v1270
    %3028 = vmatpush1.bf16.msra.mxu0 %v1269
    %3029 = vmatprep.subr.bf16.mxu0 %v1274
    %3030 = vmatpush1.bf16.msra.mxu0 %v1273
    %3031 = vmatprep.subr.bf16.mxu0 %v1278
    %3032 = vmatpush1.bf16.msra.mxu0 %v1277
    %3033 = vmatprep.subr.bf16.mxu0 %v1282
    %3034 = vmatpush1.bf16.msra.mxu0 %v1281
    %3035 = vmatprep.subr.bf16.mxu0 %v1286
    %3036 = vmatpush1.bf16.msra.mxu0 %v1285
    %3037 = vmatprep.subr.bf16.mxu0 %v1290
    %3038 = vmatpush1.bf16.msra.mxu0 %v1289
    %3039 = vmatprep.subr.bf16.mxu0 %v1294
    %3040 = vmatpush1.bf16.msra.mxu0 %v1293
    %3041 = vmatprep.subr.bf16.mxu0 %v1298
    %3042 = vmatpush1.bf16.msra.mxu0 %v1297
    %3043 = vmatprep.subr.bf16.mxu0 %v1302
    %3044 = vmatpush1.bf16.msra.mxu0 %v1301
    %3045 = vmatprep.subr.bf16.mxu0 %v1306
    %3046 = vmatpush1.bf16.msra.mxu0 %v1305
    %3047 = vmatprep.mubr.bf16.mxu0 %v2973
    %3048 = vmatmul.mubr.bf16.gmra.mrb[0].mxu0 %v2972
    %v3049 = vpop.f32.mrb[0].mxu0
    %v3050 = vadd.f32 0.0, %v3049
    %v3051 = vpop.f32.mrb[0].mxu0
    %v3052 = vadd.f32 0.0, %v3051
    %v3053 = vpop.f32.mrb[0].mxu0
    %v3054 = vpop.f32.mrb[0].mxu0
    %3055 = vdwg.mxu0
    %v3056 = vadd.f32 %v3009, %v1539
    %v3057 = vadd.f32 %v3011, %v1543
    %v3058 = vadd.f32 %v3050, %v1547
    %v3059 = vadd.f32 %v3052, %v1551
    %v3060 = vxor.u32 %v3056, 2147483648
    %v3061 = vxor.u32 %v3057, 2147483648
    %v3062 = vxor.u32 %v3058, 2147483648
    %v3063 = vmul.f32 %v3060, 1.442695
    %v3064 = vpow.pop %v3063
    %v3065 = vmul.f32 %v3061, 1.442695
    %v3066 = vpow.pop %v3065
    %v3067 = vmul.f32 %v3062, 1.442695
    %v3068 = vpow.pop %v3067
    %v3069 = vadd.f32 %v3064, 1.0
    %v3070 = vadd.f32 %v3066, 1.0
    %v3071 = vadd.f32 %v3068, 1.0
    %v3072 = vrcp.pop %v3069
    %v3073 = vmul.f32 1.0, %v3072
    %v3074 = vrcp.pop %v3070
    %v3075 = vmul.f32 1.0, %v3074
    %v3076 = vrcp.pop %v3071
    %v3077 = vmul.f32 1.0, %v3076
    %v3078 = vtanh.pop %v3059
    %v3079 = vmul.f32 %v3075, %v2937
    %v3080 = vmul.f32 %v3073, %v3078
    %v3081 = vadd.f32 %v3079, %v3080
    %v3082 = vtanh.pop %v3081
    %v3083 = vmul.f32 %v3077, %v3082
    %3084 = vst [vmem:[%s12] sm:$0xff] %v2971
    %3085 = vst [vmem:[%s13] sm:$0xff] %v2969
    %s3086 = scalar_lea.vmem %s12, 8
    %3087 = vst [vmem:[%s3086] sm:$0xff] %v3083
    %s3088 = scalar_lea.vmem %s13, 8
    %3089 = vst [vmem:[%s3088] sm:$0xff] %v3081
    %v3090 = vmax.f32 %v3083, 0.0
    %v3091 = vpack.c.bf16 %v3090, %v3090
    %v3092 = vld [vmem:[%s7] sm:$0xf]
    %v3093 = vld [vmem:[%s7 + $0x4] sm:$0xf]
    %v3094 = vld [vmem:[%s7 + $0x8] sm:$0xf]
    %v3095 = vld [vmem:[%s7 + $0xc] sm:$0xf]
    %v3096 = vld [vmem:[%s7 + $0x10] sm:$0xf]
    %v3097 = vld [vmem:[%s7 + $0x14] sm:$0xf]
    %v3098 = vld [vmem:[%s7 + $0x18] sm:$0xf]
    %v3099 = vld [vmem:[%s7 + $0x1c] sm:$0xf]
    %v3100 = vld [vmem:[%s7 + $0x20] sm:$0xf]
    %v3101 = vld [vmem:[%s7 + $0x24] sm:$0xf]
    %v3102 = vld [vmem:[%s7 + $0x28] sm:$0xf]
    %v3103 = vld [vmem:[%s7 + $0x2c] sm:$0xf]
    %v3104 = vld [vmem:[%s7 + $0x30] sm:$0xf]
    %v3105 = vld [vmem:[%s7 + $0x34] sm:$0xf]
    %v3106 = vld [vmem:[%s7 + $0x38] sm:$0xf]
    %v3107 = vld [vmem:[%s7 + $0x3c] sm:$0xf]
    %v3108 = vld [vmem:[%s8] sm:$0x1]
    %v3110 = vlaneseq
    %v3111 = vshrl.u32 %v3110, 7
    %v3112 = vsub.s32 0, %v3111
    %v3113 = vrot.slane %v3108, %v3112
    %v3131 = vunpack.c.l.b16 %v3092
    %v3132 = vunpack.c.l.b16 %v3093
    %v3133 = vunpack.c.l.b16 %v3094
    %v3134 = vunpack.c.l.b16 %v3095
    %v3135 = vunpack.c.l.b16 %v3096
    %v3136 = vunpack.c.l.b16 %v3097
    %v3137 = vunpack.c.l.b16 %v3098
    %v3138 = vunpack.c.l.b16 %v3099
    %v3139 = vunpack.c.l.b16 %v3100
    %v3140 = vunpack.c.l.b16 %v3101
    %v3141 = vunpack.c.l.b16 %v3102
    %v3142 = vunpack.c.l.b16 %v3103
    %v3143 = vunpack.c.l.b16 %v3104
    %v3144 = vunpack.c.l.b16 %v3105
    %v3145 = vunpack.c.l.b16 %v3106
    %v3146 = vunpack.c.l.b16 %v3107
    %v3147 = vpack.c.b16 %v3132, %v3131
    %v3148 = vpack.c.b16 %v3134, %v3133
    %v3149 = vpack.c.b16 %v3136, %v3135
    %v3150 = vpack.c.b16 %v3138, %v3137
    %v3151 = vpack.c.b16 %v3140, %v3139
    %v3152 = vpack.c.b16 %v3142, %v3141
    %v3153 = vpack.c.b16 %v3144, %v3143
    %v3154 = vpack.c.b16 %v3146, %v3145
    %3163 = vmatprep.subr.bf16.mxu0 0
    %3164 = vmatpush1.bf16.msra.mxu0 %v3147
    %3165 = vmatprep.subr.bf16.mxu0 0
    %3166 = vmatpush1.bf16.msra.mxu0 %v3148
    %3167 = vmatprep.subr.bf16.mxu0 0
    %3168 = vmatpush1.bf16.msra.mxu0 %v3149
    %3169 = vmatprep.subr.bf16.mxu0 0
    %3170 = vmatpush1.bf16.msra.mxu0 %v3150
    %3171 = vmatprep.subr.bf16.mxu0 0
    %3172 = vmatpush1.bf16.msra.mxu0 %v3151
    %3173 = vmatprep.subr.bf16.mxu0 0
    %3174 = vmatpush1.bf16.msra.mxu0 %v3152
    %3175 = vmatprep.subr.bf16.mxu0 0
    %3176 = vmatpush1.bf16.msra.mxu0 %v3153
    %3177 = vmatprep.subr.bf16.mxu0 0
    %3178 = vmatpush1.bf16.msra.mxu0 %v3154
    %3179 = vmatprep.subr.bf16.mxu0 0
    %3180 = vmatpush1.bf16.msra.mxu0 0
    %3181 = vmatprep.subr.bf16.mxu0 0
    %3182 = vmatpush1.bf16.msra.mxu0 0
    %3183 = vmatprep.subr.bf16.mxu0 0
    %3184 = vmatpush1.bf16.msra.mxu0 0
    %3185 = vmatprep.subr.bf16.mxu0 0
    %3186 = vmatpush1.bf16.msra.mxu0 0
    %3187 = vmatprep.subr.bf16.mxu0 0
    %3188 = vmatpush1.bf16.msra.mxu0 0
    %3189 = vmatprep.subr.bf16.mxu0 0
    %3190 = vmatpush1.bf16.msra.mxu0 0
    %3191 = vmatprep.subr.bf16.mxu0 0
    %3192 = vmatpush1.bf16.msra.mxu0 0
    %3193 = vmatprep.subr.bf16.mxu0 0
    %3194 = vmatpush1.bf16.msra.mxu0 0
    %3195 = vmatprep.mubr.bf16.mxu0 0
    %3196 = vmatmul.mubr.bf16.gmra.mrb[0].mxu0 %v3091
    %v3197 = vpop.f32.mrb[0].mxu0
    %v3198 = vadd.f32 %v3113, %v3197
    %v3199 = vpop.f32.mrb[0].mxu0
    %v3200 = vpop.f32.mrb[0].mxu0
    %v3201 = vpop.f32.mrb[0].mxu0
    %3202 = vdwg.mxu0
    %3203 = vst [vmem:[%s11] sm:$0xff] %v3198
    // Predicated region
    $region50: #{classify_forward.1} parent=1 // pred_check
      _
    $region51: #{classify_forward.1} parent=1 // pred_check_branch
      %3205 = sbr.rel (0) target = $region53
    $region52: #{classify_forward.1} parent=1 // pred_region
      _
    $region53: #{classify_forward.1} parent=1 // pred_fallthru
      _
    // Predicated region
    $region54: #{classify_forward.1} parent=1 // pred_check
      _
    $region55: #{classify_forward.1} parent=1 // pred_check_branch
      %3207 = sbr.rel (0) target = $region57
    $region56: #{classify_forward.1} parent=1 // pred_region
      _
    $region57: #{classify_forward.1} parent=1 // pred_fallthru
      _
    // Predicated region
    $region58: #{classify_forward.1} parent=1 // pred_check
      _
    $region59: #{classify_forward.1} parent=1 // pred_check_branch
      %3209 = sbr.rel (0) target = $region61
    $region60: #{classify_forward.1} parent=1 // pred_region
      _
    $region61: #{classify_forward.1} parent=1 // pred_fallthru
      _
    // Predicated region
    $region62: #{classify_forward.1} parent=1 // pred_check
      _
    $region63: #{classify_forward.1} parent=1 // pred_check_branch
      %3211 = sbr.rel (0) target = $region65
    $region64: #{classify_forward.1} parent=1 // pred_region
      _
    $region65: #{classify_forward.1} parent=1 // pred_fallthru
      _
    // Predicated region
    $region66: #{classify_forward.1} parent=1 // pred_check
      _
    $region67: #{classify_forward.1} parent=1 // pred_check_branch
      %3213 = sbr.rel (0) target = $region69
    $region68: #{classify_forward.1} parent=1 // pred_region
      _
    $region69: #{classify_forward.1} parent=1 // pred_fallthru
      _
    // Predicated region
    $region70: #{classify_forward.1} parent=1 // pred_check
      _
    $region71: #{classify_forward.1} parent=1 // pred_check_branch
      %3215 = sbr.rel (0) target = $region73
    $region72: #{classify_forward.1} parent=1 // pred_region
      _
    $region73: #{classify_forward.1} parent=1 // pred_fallthru
      _
    %3216 = vsyncpa [#allocation4], 1

</llo_original>
